<compile_context>
chip_gen: v5e
topology: v5e:2x2
jax: 0.10.0
libtpu: 0.0.40
codegen_flags: <defaults>
</compile_context>

<pallas_src>
import jax
import jax.numpy as jnp
import numpy as np
from jax import lax
from jax.experimental import pallas as pl
from jax.experimental.pallas import tpu as pltpu

D_FEAT = 512          # hardcoded by the module: queues are (512, queue_size)
HIDDEN = 256          # synthetic combiner hidden dim (embed_dim hint)
ALPHA = 0.4
MOMENTUM = 0.995
LOSS_IDS = (1, 3)
QUEUE_DTYPE = jnp.bfloat16   # bf16 queue storage (perf review item 1)


# ----------------------------------------------------------------------------
# One fused kernel:
#   step 0  : live + momentum combiner MLPs (stacked hidden weights, one RHS
#             push), write fm_stack = [fusion ; fusion_m] (2bs, D) to the
#             output, fold the in-batch similarity block into the running
#             per-row stats, and seed the loss-3 / diagonal terms.
#   step k  : stream one (D, tn) bf16 tile of each momentum queue and update
#             per-row running (max, sum-exp, weighted-sum) stats online.
#   last    : combine the stats into the scalar ALBEF loss.
# ----------------------------------------------------------------------------
def _make_fused_kernel(n_queue, bs, hid, tn, alpha, loss_ids):
    alpha = float(alpha)
    ragged = (n_queue % tn) != 0   # trace-time: masking disappears when tn | Q

    def kernel(ref_ref, txt_ref, tgt_ref,
               whr_ref, wht_ref, bh_ref, wo_ref, bo_ref, wom_ref, bom_ref,
               tq_ref, fq_ref,
               fm_ref, loss_ref,
               m12, l12, w2, m3, l3, w3, extra):
        k = pl.program_id(0)
        nc = pl.num_programs(0)

        # -------------------- step 0: combiner + in-batch block -------------
        @pl.when(k == 0)
        def _():
            r = ref_ref[...]
            t = txt_ref[...]
            skip = r + t

            # Stacked hidden layer: h_both = relu(r @ [Wr|Wr_m] + t @ [Wt|Wt_m] + [b|b_m])
            h = jnp.dot(r, whr_ref[...], preferred_element_type=jnp.float32)
            h = h + jnp.dot(t, wht_ref[...], preferred_element_type=jnp.float32)
            h = jnp.maximum(h + bh_ref[...], 0.0)               # (bs, 2*hid)

            o = jnp.dot(h[:, 0:hid], wo_ref[...],
                        preferred_element_type=jnp.float32) + bo_ref[...] + skip
            om = jnp.dot(h[:, hid:2 * hid], wom_ref[...],
                         preferred_element_type=jnp.float32) + bom_ref[...] + skip
            # F.normalize(dim=-1) via rsqrt (EUP slot)
            o = o * lax.rsqrt(jnp.maximum(jnp.sum(o * o, -1, keepdims=True), 1e-24))
            om = om * lax.rsqrt(jnp.maximum(jnp.sum(om * om, -1, keepdims=True), 1e-24))
            fm_ref[0:bs, :] = o
            fm_ref[bs:2 * bs, :] = om

            # ---- in-batch columns of t_all / f_all (first bs columns) ----
            tgt = tgt_ref[...]                                   # (bs, D)
            fm = fm_ref[...]                                     # (2bs, D)
            fus_m = fm_ref[bs:2 * bs, :]

            # [fusion ; fusion_m] @ target_feat.T * 100      -> (2bs, bs)
            sb = lax.dot_general(fm, tgt, (((1,), (1,)), ((), ())),
                                 preferred_element_type=jnp.float32) * 100.0
            sb_i2t = sb[0:bs, :]
            # target_feat @ fusion_m.T * 100                 -> (bs, bs)
            sb_t2i = lax.dot_general(tgt, fus_m, (((1,), (1,)), ((), ())),
                                     preferred_element_type=jnp.float32) * 100.0

            row = lax.broadcasted_iota(jnp.int32, (bs, bs), 0)
            col = lax.broadcasted_iota(jnp.int32, (bs, bs), 1)
            diag = row == col
            diag_i2t = jnp.sum(jnp.where(diag, sb_i2t, 0.0), -1, keepdims=True)
            diag_t2i = jnp.sum(jnp.where(diag, sb_t2i, 0.0), -1, keepdims=True)

            m0 = jnp.max(sb, -1, keepdims=True)                  # (2bs, 1)
            p0 = jnp.exp(sb - m0)
            m12[...] = m0
            l12[...] = jnp.sum(p0, -1, keepdims=True)
            w2[...] = jnp.sum(p0[bs:2 * bs, :] * sb_i2t, -1, keepdims=True)

            m3_0 = jnp.max(sb_t2i, -1, keepdims=True)            # (bs, 1)
            p3_0 = jnp.exp(sb_t2i - m3_0)
            m3[...] = m3_0
            l3[...] = jnp.sum(p3_0, -1, keepdims=True)
            w3[...] = jnp.sum(p3_0 * sb_t2i, -1, keepdims=True)

            ext = jnp.zeros((bs, 1), jnp.float32)
            if 1 in loss_ids:
                ext = ext - (1.0 - alpha) * (diag_i2t + diag_t2i)
            if 3 in loss_ids:
                # CE(fusion @ target_feat.T * 100, arange(bs))
                mx3 = jnp.max(sb_i2t, -1, keepdims=True)
                lse3 = mx3 + jnp.log(jnp.sum(jnp.exp(sb_i2t - mx3), -1,
                                             keepdims=True))
                ext = ext + lse3 - diag_i2t
            extra[...] = ext

        # -------------------- every step: one bf16 queue tile ----------------
        qdt = tq_ref.dtype
        fm_q = fm_ref[...].astype(qdt)                           # (2bs, D)
        tgt_q = tgt_ref[...].astype(qdt)                         # (bs, D)

        # one stacked matmul gives sim_i2t (rows :bs) and sim_i2t_m (rows bs:)
        s = jnp.dot(fm_q, tq_ref[...],
                    preferred_element_type=jnp.float32) * 100.0  # (2bs, tn)
        st = jnp.dot(tgt_q, fq_ref[...],
                     preferred_element_type=jnp.float32) * 100.0  # (bs, tn)

        if ragged:
            # mask only the ragged remainder columns of the last tile
            col = k * tn + lax.broadcasted_iota(jnp.int32, (1, tn), 1)
            valid = col < n_queue
            s_msk = jnp.where(valid, s, -1e30)
            st_msk = jnp.where(valid, st, -1e30)
            s_w = jnp.where(valid, s[0:bs, :], 0.0)
            st_w = jnp.where(valid, st, 0.0)
        else:
            s_msk, st_msk = s, st
            s_w, st_w = s[0:bs, :], st

        # stacked i2t stats (sim_i2t and sim_i2t_m share the max/sum-exp update)
        m_new = jnp.maximum(m12[...], jnp.max(s_msk, -1, keepdims=True))
        scale = jnp.exp(m12[...] - m_new)
        p = jnp.exp(s_msk - m_new)
        l12[...] = l12[...] * scale + jnp.sum(p, -1, keepdims=True)
        w2[...] = w2[...] * scale[bs:2 * bs, :] + jnp.sum(
            p[bs:2 * bs, :] * s_w, -1, keepdims=True)
        m12[...] = m_new

        # t2i stats (sim_t2i_m == sim_t2i since target_feat_m == target_feat)
        m3n = jnp.maximum(m3[...], jnp.max(st_msk, -1, keepdims=True))
        sc3 = jnp.exp(m3[...] - m3n)
        p3 = jnp.exp(st_msk - m3n)
        l3[...] = l3[...] * sc3 + jnp.sum(p3, -1, keepdims=True)
        w3[...] = w3[...] * sc3 + jnp.sum(p3 * st_w, -1, keepdims=True)
        m3[...] = m3n

        # -------------------- last step: scalar loss -------------------------
        @pl.when(k == nc - 1)
        def _():
            per_row = extra[...]
            if 1 in loss_ids:
                lse_i2t = m12[0:bs, :] + jnp.log(l12[0:bs, :])
                lse_t2i = m3[...] + jnp.log(l3[...])
                inv_lm = pl.reciprocal(l12[bs:2 * bs, :], approx=True)
                inv_l3 = pl.reciprocal(l3[...], approx=True)
                per_row = per_row + lse_i2t + lse_t2i \
                    - alpha * (w2[...] * inv_lm + w3[...] * inv_l3)
            loss_ref[0, 0] = jnp.sum(per_row) * (1.0 / bs)

    return kernel


def albef_fused_loss(combiner, combiner_m, reference_features, text_features,
                     target_feat, target_queue, fusion_queue,
                     alpha, loss_ids, tn=640):
    """One pallas_call: combiner MLPs + ALBEF contrastive loss over the queues.

    Returns (fm_stack (2bs, D) f32 with rows [:bs]=fusion, [bs:]=fusion_m,
             scalar loss)."""
    bs, d = reference_features.shape
    assert bs % 8 == 0, "bs must be a multiple of 8 (f32 sublane tiling)"
    n_queue = target_queue.shape[1]
    nc = pl.cdiv(n_queue, tn)
    hid = combiner["w_out"].shape[0]

    # Stack live + momentum hidden-layer weights along N (one MXU RHS push).
    w_hid_ref = jnp.concatenate([combiner["w_ref"], combiner_m["w_ref"]], axis=1)
    w_hid_txt = jnp.concatenate([combiner["w_txt"], combiner_m["w_txt"]], axis=1)
    b_hid = jnp.concatenate([combiner["b_h"], combiner_m["b_h"]], axis=1)

    kernel = _make_fused_kernel(n_queue=n_queue, bs=bs, hid=hid, tn=tn,
                                alpha=float(alpha), loss_ids=tuple(loss_ids))

    const = lambda k: (0, 0)
    fm_stack, loss = pl.pallas_call(
        kernel,
        out_shape=(jax.ShapeDtypeStruct((2 * bs, d), jnp.float32),
                   jax.ShapeDtypeStruct((1, 1), jnp.float32)),
        grid_spec=pltpu.PrefetchScalarGridSpec(
            num_scalar_prefetch=0,
            grid=(nc,),
            in_specs=[
                pl.BlockSpec((bs, d), const),              # reference_features
                pl.BlockSpec((bs, d), const),              # text_features
                pl.BlockSpec((bs, d), const),              # target_feat (normalized)
                pl.BlockSpec((d, 2 * hid), const),         # [w_ref | w_ref_m]
                pl.BlockSpec((d, 2 * hid), const),         # [w_txt | w_txt_m]
                pl.BlockSpec((1, 2 * hid), const),         # [b_h | b_h_m]
                pl.BlockSpec((hid, d), const),             # w_out
                pl.BlockSpec((1, d), const),               # b_out
                pl.BlockSpec((hid, d), const),             # w_out_m
                pl.BlockSpec((1, d), const),               # b_out_m
                pl.BlockSpec((d, tn), lambda k: (0, k)),   # target_queue tile (bf16)
                pl.BlockSpec((d, tn), lambda k: (0, k)),   # fusion_queue tile (bf16)
            ],
            out_specs=[
                pl.BlockSpec((2 * bs, d), const),          # fm_stack
                pl.BlockSpec((1, 1), const,
                             memory_space=pltpu.MemorySpace.SMEM),  # loss
            ],
            scratch_shapes=[
                pltpu.VMEM((2 * bs, 1), jnp.float32),  # m12 (i2t + i2t_m max)
                pltpu.VMEM((2 * bs, 1), jnp.float32),  # l12 (sum-exp)
                pltpu.VMEM((bs, 1), jnp.float32),      # w2  (i2t weighted sum)
                pltpu.VMEM((bs, 1), jnp.float32),      # m3  (t2i max)
                pltpu.VMEM((bs, 1), jnp.float32),      # l3  (t2i sum-exp)
                pltpu.VMEM((bs, 1), jnp.float32),      # w3  (t2i weighted sum)
                pltpu.VMEM((bs, 1), jnp.float32),      # extra (diag / loss3)
            ],
        ),
        compiler_params=pltpu.CompilerParams(
            dimension_semantics=("arbitrary",),
            vmem_limit_bytes=32 * 1024 * 1024),
    )(reference_features, text_features, target_feat,
      w_hid_ref, w_hid_txt, b_hid,
      combiner["w_out"], combiner["b_out"],
      combiner_m["w_out"], combiner_m["b_out"],
      target_queue, fusion_queue)
    return fm_stack, loss[0, 0]


# ----------------------------------------------------------------------------
# AlbefCombiner state + forward (functional)
# ----------------------------------------------------------------------------
def init_combiner_params(key):
    k1, k2, k3 = jax.random.split(key, 3)
    s = 0.02
    return {
        "w_ref": s * jax.random.normal(k1, (D_FEAT, HIDDEN), jnp.float32),
        "w_txt": s * jax.random.normal(k2, (D_FEAT, HIDDEN), jnp.float32),
        "b_h": jnp.zeros((1, HIDDEN), jnp.float32),
        "w_out": s * jax.random.normal(k3, (HIDDEN, D_FEAT), jnp.float32),
        "b_out": jnp.zeros((1, D_FEAT), jnp.float32),
    }


def init_albef_state(key, queue_size, queue_dtype=QUEUE_DTYPE):
    kc, kq1, kq2 = jax.random.split(key, 3)
    combiner = init_combiner_params(kc)
    combiner_m = jax.tree_util.tree_map(lambda p: p, combiner)  # copy_params()
    fq = jax.random.normal(kq1, (D_FEAT, queue_size), jnp.float32)
    tq = jax.random.normal(kq2, (D_FEAT, queue_size), jnp.float32)
    fq = (fq / jnp.linalg.norm(fq, axis=0, keepdims=True)).astype(queue_dtype)
    tq = (tq / jnp.linalg.norm(tq, axis=0, keepdims=True)).astype(queue_dtype)
    return {
        "combiner": combiner, "combiner_m": combiner_m,
        "fusion_queue": fq, "target_queue": tq,
        "queue_ptr": 0, "queue_size": queue_size,
        "alpha": ALPHA, "momentum": MOMENTUM, "loss_ids": LOSS_IDS,
    }


def albef_forward(state, reference_features, target_features, text_features,
                  tn=640):
    bs = reference_features.shape[0]
    # target_feat = F.normalize(target_features, dim=-1)
    target_feat = target_features / jnp.maximum(
        jnp.linalg.norm(target_features, axis=-1, keepdims=True), 1e-12)

    # momentum update (no_grad) -- applied before the momentum forward
    m = state["momentum"]
    combiner_m = jax.tree_util.tree_map(
        lambda pm, p: pm * m + p * (1.0 - m),
        state["combiner_m"], state["combiner"])

    # single fused kernel: combiner MLPs + contrastive loss over the queues
    fm_stack, loss = albef_fused_loss(
        state["combiner"], combiner_m, reference_features, text_features,
        target_feat, state["target_queue"], state["fusion_queue"],
        state["alpha"], state["loss_ids"], tn=tn)
    fusion_feature_m = fm_stack[bs:]
    target_feat_m = target_feat   # no momentum target encoder in the module

    # _dequeue_and_enqueue (functional; queues kept in bf16)
    ptr = state["queue_ptr"]
    if ptr + bs > state["queue_size"]:
        ptr = 0
    qdt = state["fusion_queue"].dtype
    fq = state["fusion_queue"].at[:, ptr:ptr + bs].set(
        fusion_feature_m.T.astype(qdt))
    tq = state["target_queue"].at[:, ptr:ptr + bs].set(
        target_feat_m.T.astype(qdt))
    new_state = dict(state, combiner_m=combiner_m, fusion_queue=fq,
                     target_queue=tq,
                     queue_ptr=(ptr + bs) % state["queue_size"])
    return loss, new_state


# ----------------------------------------------------------------------------
# Pure-JAX reference (mirrors the PyTorch math) for a sanity check
# ----------------------------------------------------------------------------
def _ref_combine(params, r, t):
    h = jnp.maximum(r @ params["w_ref"] + t @ params["w_txt"] + params["b_h"],
                    0.0)
    out = h @ params["w_out"] + params["b_out"] + r + t
    return out / jnp.maximum(jnp.linalg.norm(out, axis=-1, keepdims=True),
                             1e-12)


def _ref_forward(state, ref, tgt, txt):
    target_feat = tgt / jnp.maximum(
        jnp.linalg.norm(tgt, axis=-1, keepdims=True), 1e-12)
    fusion = _ref_combine(state["combiner"], ref, txt)
    m = state["momentum"]
    combiner_m = jax.tree_util.tree_map(lambda pm, p: pm * m + p * (1.0 - m),
                                        state["combiner_m"], state["combiner"])
    fusion_m = _ref_combine(combiner_m, ref, txt)
    t_all = jnp.concatenate(
        [target_feat.T, state["target_queue"].astype(jnp.float32)], axis=1)
    f_all = jnp.concatenate(
        [fusion_m.T, state["fusion_queue"].astype(jnp.float32)], axis=1)

    sim_i2t = fusion @ t_all * 100.0
    sim_t2i = target_feat @ f_all * 100.0
    sim_i2t_m = fusion_m @ t_all * 100.0
    sim_t2i_m = target_feat @ f_all * 100.0
    bs, n = sim_i2t.shape
    sim_targets = jnp.zeros((bs, n)).at[jnp.arange(bs), jnp.arange(bs)].set(1.0)
    a = state["alpha"]
    i2t_tgt = a * jax.nn.softmax(sim_i2t_m, axis=1) + (1 - a) * sim_targets
    t2i_tgt = a * jax.nn.softmax(sim_t2i_m, axis=1) + (1 - a) * sim_targets
    loss = 0.0
    if 1 in state["loss_ids"]:
        loss += -(jax.nn.log_softmax(sim_i2t, axis=1) * i2t_tgt).sum(1).mean()
        loss += -(jax.nn.log_softmax(sim_t2i, axis=1) * t2i_tgt).sum(1).mean()
    if 3 in state["loss_ids"]:
        logits = fusion @ target_feat.T * 100.0
        ls = jax.nn.log_softmax(logits, axis=1)
        loss += -(ls[jnp.arange(bs), jnp.arange(bs)]).mean()
    return loss


# ----------------------------------------------------------------------------
if __name__ == "__main__":
    key = jax.random.PRNGKey(0)
    k_state, k_ref, k_tgt, k_txt = jax.random.split(key, 4)

    BATCH = 8
    TN = 640       # divides the production queue_size 16000 (= 25 * 640)
    QUEUE = 1920   # module hardcodes 16000; reduced for the demo but still a
                   # multiple of TN so the no-masking fast path is exercised
                   # and multi-tile streaming (3 tiles) is covered.

    state = init_albef_state(k_state, QUEUE)
    reference_features = jax.random.normal(k_ref, (BATCH, D_FEAT), jnp.float32)
    target_features = jax.random.normal(k_tgt, (BATCH, D_FEAT), jnp.float32)
    text_features = jax.random.normal(k_txt, (BATCH, D_FEAT), jnp.float32)

    loss, new_state = albef_forward(state, reference_features, target_features,
                                    text_features, tn=TN)
    loss = jax.block_until_ready(loss)

    ref_loss = jax.block_until_ready(
        _ref_forward(state, reference_features, target_features,
                     text_features))

    assert np.isfinite(float(loss))
    np.testing.assert_allclose(float(loss), float(ref_loss),
                               rtol=5e-2, atol=5e-2)
    assert new_state["queue_ptr"] == BATCH
    print("KERNEL_OK")
</pallas_src>

<mosaic_0001>
module attributes {stable_mosaic.version = 11 : i64} {
  func.func @kernel(%arg0: i32, %arg1: memref<8x512xf32, #tpu.memory_space<vmem>>, %arg2: memref<8x512xf32, #tpu.memory_space<vmem>>, %arg3: memref<8x512xf32, #tpu.memory_space<vmem>>, %arg4: memref<512x512xf32, #tpu.memory_space<vmem>>, %arg5: memref<512x512xf32, #tpu.memory_space<vmem>>, %arg6: memref<1x512xf32, #tpu.memory_space<vmem>>, %arg7: memref<256x512xf32, #tpu.memory_space<vmem>>, %arg8: memref<1x512xf32, #tpu.memory_space<vmem>>, %arg9: memref<256x512xf32, #tpu.memory_space<vmem>>, %arg10: memref<1x512xf32, #tpu.memory_space<vmem>>, %arg11: memref<512x640xbf16, #tpu.memory_space<vmem>>, %arg12: memref<512x640xbf16, #tpu.memory_space<vmem>>, %arg13: memref<16x512xf32, #tpu.memory_space<vmem>>, %arg14: memref<1x1xf32, #tpu.memory_space<smem>>, %arg15: memref<16x1xf32, #tpu.memory_space<vmem>>, %arg16: memref<16x1xf32, #tpu.memory_space<vmem>>, %arg17: memref<8x1xf32, #tpu.memory_space<vmem>>, %arg18: memref<8x1xf32, #tpu.memory_space<vmem>>, %arg19: memref<8x1xf32, #tpu.memory_space<vmem>>, %arg20: memref<8x1xf32, #tpu.memory_space<vmem>>, %arg21: memref<8x1xf32, #tpu.memory_space<vmem>>) attributes {dimension_semantics = [#tpu.dimension_semantics<arbitrary>], iteration_bounds = array<i64: 3>, scalar_prefetch = 0 : i64, scratch_operands = 7 : i64, tpu.core_type = #tpu.core_type<tc>, window_params = [{pipeline_mode = #tpu.pipeline_mode<synchronous>, transform_indices = @transform_0, window_bounds = array<i64: 8, 512>}, {pipeline_mode = #tpu.pipeline_mode<synchronous>, transform_indices = @transform_1, window_bounds = array<i64: 8, 512>}, {pipeline_mode = #tpu.pipeline_mode<synchronous>, transform_indices = @transform_2, window_bounds = array<i64: 8, 512>}, {pipeline_mode = #tpu.pipeline_mode<synchronous>, transform_indices = @transform_3, window_bounds = array<i64: 512, 512>}, {pipeline_mode = #tpu.pipeline_mode<synchronous>, transform_indices = @transform_4, window_bounds = array<i64: 512, 512>}, {pipeline_mode = #tpu.pipeline_mode<synchronous>, transform_indices = @transform_5, window_bounds = array<i64: 1, 512>}, {pipeline_mode = #tpu.pipeline_mode<synchronous>, transform_indices = @transform_6, window_bounds = array<i64: 256, 512>}, {pipeline_mode = #tpu.pipeline_mode<synchronous>, transform_indices = @transform_7, window_bounds = array<i64: 1, 512>}, {pipeline_mode = #tpu.pipeline_mode<synchronous>, transform_indices = @transform_8, window_bounds = array<i64: 256, 512>}, {pipeline_mode = #tpu.pipeline_mode<synchronous>, transform_indices = @transform_9, window_bounds = array<i64: 1, 512>}, {transform_indices = @transform_10, window_bounds = array<i64: 512, 640>}, {transform_indices = @transform_11, window_bounds = array<i64: 512, 640>}, {pipeline_mode = #tpu.pipeline_mode<synchronous>, transform_indices = @transform_12, window_bounds = array<i64: 16, 512>}, {transform_indices = @transform_13, window_bounds = array<i64: 1, 1>}]} {
    %c0_i32 = arith.constant 0 : i32
    %0 = arith.cmpi eq, %arg0, %c0_i32 : i32
    %1 = arith.extui %0 : i1 to i32
    %c0_i32_0 = arith.constant 0 : i32
    %2 = arith.cmpi ne, %1, %c0_i32_0 : i32
    scf.if %2 {
      %c0_46 = arith.constant 0 : index
      %c0_47 = arith.constant 0 : index
      %69 = vector.load %arg1[%c0_46, %c0_47] : memref<8x512xf32, #tpu.memory_space<vmem>>, vector<8x512xf32>
      %c0_48 = arith.constant 0 : index
      %c0_49 = arith.constant 0 : index
      %70 = vector.load %arg2[%c0_48, %c0_49] : memref<8x512xf32, #tpu.memory_space<vmem>>, vector<8x512xf32>
      %71 = arith.addf %69, %70 : vector<8x512xf32>
      %c0_50 = arith.constant 0 : index
      %c0_51 = arith.constant 0 : index
      %72 = vector.load %arg4[%c0_50, %c0_51] : memref<512x512xf32, #tpu.memory_space<vmem>>, vector<512x512xf32>
      %cst_52 = arith.constant dense<0.000000e+00> : vector<8x512xf32>
      %73 = tpu.matmul %69, %72, %cst_52 {dimension_numbers = #tpu.dot_dimension_numbers<[1], [0], [0], [1], [0, 0, 1, 1], [], []>} : vector<8x512xf32>, vector<512x512xf32>, vector<8x512xf32> -> vector<8x512xf32>
      %c0_53 = arith.constant 0 : index
      %c0_54 = arith.constant 0 : index
      %74 = vector.load %arg5[%c0_53, %c0_54] : memref<512x512xf32, #tpu.memory_space<vmem>>, vector<512x512xf32>
      %cst_55 = arith.constant dense<0.000000e+00> : vector<8x512xf32>
      %75 = tpu.matmul %70, %74, %cst_55 {dimension_numbers = #tpu.dot_dimension_numbers<[1], [0], [0], [1], [0, 0, 1, 1], [], []>} : vector<8x512xf32>, vector<512x512xf32>, vector<8x512xf32> -> vector<8x512xf32>
      %76 = arith.addf %73, %75 : vector<8x512xf32>
      %c0_56 = arith.constant 0 : index
      %c0_57 = arith.constant 0 : index
      %77 = vector.load %arg6[%c0_56, %c0_57] : memref<1x512xf32, #tpu.memory_space<vmem>>, vector<1x512xf32>
      %78 = vector.broadcast %77 : vector<1x512xf32> to vector<8x512xf32>
      %79 = arith.addf %76, %78 : vector<8x512xf32>
      %cst_58 = arith.constant 0.000000e+00 : f32
      %80 = vector.broadcast %cst_58 : f32 to vector<8x512xf32>
      %81 = arith.maximumf %79, %80 : vector<8x512xf32>
      %82 = vector.extract_strided_slice %81 {offsets = [0, 0], sizes = [8, 256], strides = [1, 1]} : vector<8x512xf32> to vector<8x256xf32>
      %c0_59 = arith.constant 0 : index
      %c0_60 = arith.constant 0 : index
      %83 = vector.load %arg7[%c0_59, %c0_60] : memref<256x512xf32, #tpu.memory_space<vmem>>, vector<256x512xf32>
      %cst_61 = arith.constant dense<0.000000e+00> : vector<8x512xf32>
      %84 = tpu.matmul %82, %83, %cst_61 {dimension_numbers = #tpu.dot_dimension_numbers<[1], [0], [0], [1], [0, 0, 1, 1], [], []>} : vector<8x256xf32>, vector<256x512xf32>, vector<8x512xf32> -> vector<8x512xf32>
      %c0_62 = arith.constant 0 : index
      %c0_63 = arith.constant 0 : index
      %85 = vector.load %arg8[%c0_62, %c0_63] : memref<1x512xf32, #tpu.memory_space<vmem>>, vector<1x512xf32>
      %86 = vector.broadcast %85 : vector<1x512xf32> to vector<8x512xf32>
      %87 = arith.addf %84, %86 : vector<8x512xf32>
      %88 = arith.addf %87, %71 : vector<8x512xf32>
      %89 = vector.extract_strided_slice %81 {offsets = [0, 256], sizes = [8, 256], strides = [1, 1]} : vector<8x512xf32> to vector<8x256xf32>
      %c0_64 = arith.constant 0 : index
      %c0_65 = arith.constant 0 : index
      %90 = vector.load %arg9[%c0_64, %c0_65] : memref<256x512xf32, #tpu.memory_space<vmem>>, vector<256x512xf32>
      %cst_66 = arith.constant dense<0.000000e+00> : vector<8x512xf32>
      %91 = tpu.matmul %89, %90, %cst_66 {dimension_numbers = #tpu.dot_dimension_numbers<[1], [0], [0], [1], [0, 0, 1, 1], [], []>} : vector<8x256xf32>, vector<256x512xf32>, vector<8x512xf32> -> vector<8x512xf32>
      %c0_67 = arith.constant 0 : index
      %c0_68 = arith.constant 0 : index
      %92 = vector.load %arg10[%c0_67, %c0_68] : memref<1x512xf32, #tpu.memory_space<vmem>>, vector<1x512xf32>
      %93 = vector.broadcast %92 : vector<1x512xf32> to vector<8x512xf32>
      %94 = arith.addf %91, %93 : vector<8x512xf32>
      %95 = arith.addf %94, %71 : vector<8x512xf32>
      %96 = arith.mulf %88, %88 : vector<8x512xf32>
      %cst_69 = arith.constant dense<0.000000e+00> : vector<8xf32>
      %97 = vector.multi_reduction <add>, %96, %cst_69 [1] : vector<8x512xf32> to vector<8xf32>
      %98 = vector.shape_cast %97 : vector<8xf32> to vector<8x1xf32>
      %cst_70 = arith.constant 1.000000e-24 : f32
      %99 = vector.broadcast %cst_70 : f32 to vector<8x1xf32>
      %100 = arith.maximumf %98, %99 : vector<8x1xf32>
      %101 = math.rsqrt %100 : vector<8x1xf32>
      %102 = vector.broadcast %101 : vector<8x1xf32> to vector<8x512xf32>
      %103 = arith.mulf %88, %102 : vector<8x512xf32>
      %104 = arith.mulf %95, %95 : vector<8x512xf32>
      %cst_71 = arith.constant dense<0.000000e+00> : vector<8xf32>
      %105 = vector.multi_reduction <add>, %104, %cst_71 [1] : vector<8x512xf32> to vector<8xf32>
      %106 = vector.shape_cast %105 : vector<8xf32> to vector<8x1xf32>
      %cst_72 = arith.constant 1.000000e-24 : f32
      %107 = vector.broadcast %cst_72 : f32 to vector<8x1xf32>
      %108 = arith.maximumf %106, %107 : vector<8x1xf32>
      %109 = math.rsqrt %108 : vector<8x1xf32>
      %110 = vector.broadcast %109 : vector<8x1xf32> to vector<8x512xf32>
      %111 = arith.mulf %95, %110 : vector<8x512xf32>
      %c0_73 = arith.constant 0 : index
      %c0_74 = arith.constant 0 : index
      %112 = vector.load %arg13[%c0_73, %c0_74] : memref<16x512xf32, #tpu.memory_space<vmem>>, vector<8x512xf32>
      tpu.vector_store %arg13[%c0_73, %c0_74], %103 {strides = array<i32>} : memref<16x512xf32, #tpu.memory_space<vmem>>, vector<8x512xf32>,
      %c8 = arith.constant 8 : index
      %c0_75 = arith.constant 0 : index
      %113 = vector.load %arg13[%c8, %c0_75] : memref<16x512xf32, #tpu.memory_space<vmem>>, vector<8x512xf32>
      tpu.vector_store %arg13[%c8, %c0_75], %111 {strides = array<i32>} : memref<16x512xf32, #tpu.memory_space<vmem>>, vector<8x512xf32>,
      %c0_76 = arith.constant 0 : index
      %c0_77 = arith.constant 0 : index
      %114 = vector.load %arg3[%c0_76, %c0_77] : memref<8x512xf32, #tpu.memory_space<vmem>>, vector<8x512xf32>
      %c0_78 = arith.constant 0 : index
      %c0_79 = arith.constant 0 : index
      %115 = vector.load %arg13[%c0_78, %c0_79] : memref<16x512xf32, #tpu.memory_space<vmem>>, vector<16x512xf32>
      %c8_80 = arith.constant 8 : index
      %c0_81 = arith.constant 0 : index
      %116 = vector.load %arg13[%c8_80, %c0_81] : memref<16x512xf32, #tpu.memory_space<vmem>>, vector<8x512xf32>
      %cst_82 = arith.constant dense<0.000000e+00> : vector<16x8xf32>
      %117 = tpu.matmul %115, %114, %cst_82 {dimension_numbers = #tpu.dot_dimension_numbers<[1], [1], [0], [0], [0, 0, 1, 0], [], []>} : vector<16x512xf32>, vector<8x512xf32>, vector<16x8xf32> -> vector<16x8xf32>
      %cst_83 = arith.constant 1.000000e+02 : f32
      %118 = vector.broadcast %cst_83 : f32 to vector<16x8xf32>
      %119 = arith.mulf %117, %118 : vector<16x8xf32>
      %120 = vector.extract_strided_slice %119 {offsets = [0, 0], sizes = [8, 8], strides = [1, 1]} : vector<16x8xf32> to vector<8x8xf32>
      %cst_84 = arith.constant dense<0.000000e+00> : vector<8x8xf32>
      %121 = tpu.matmul %114, %116, %cst_84 {dimension_numbers = #tpu.dot_dimension_numbers<[1], [1], [0], [0], [0, 0, 1, 0], [], []>} : vector<8x512xf32>, vector<8x512xf32>, vector<8x8xf32> -> vector<8x8xf32>
      %cst_85 = arith.constant 1.000000e+02 : f32
      %122 = vector.broadcast %cst_85 : f32 to vector<8x8xf32>
      %123 = arith.mulf %121, %122 : vector<8x8xf32>
      %124 = tpu.iota {dimensions = array<i32: 0>} : vector<8x8xi32>
      %125 = tpu.iota {dimensions = array<i32: 1>} : vector<8x8xi32>
      %126 = arith.cmpi eq, %124, %125 : vector<8x8xi32>
      %cst_86 = arith.constant 0.000000e+00 : f32
      %127 = vector.broadcast %cst_86 : f32 to vector<8x8xf32>
      %128 = arith.select %126, %120, %127 : vector<8x8xi1>, vector<8x8xf32>
      %cst_87 = arith.constant dense<0.000000e+00> : vector<8xf32>
      %129 = vector.multi_reduction <add>, %128, %cst_87 [1] : vector<8x8xf32> to vector<8xf32>
      %130 = vector.shape_cast %129 : vector<8xf32> to vector<8x1xf32>
      %cst_88 = arith.constant 0.000000e+00 : f32
      %131 = vector.broadcast %cst_88 : f32 to vector<8x8xf32>
      %132 = arith.select %126, %123, %131 : vector<8x8xi1>, vector<8x8xf32>
      %cst_89 = arith.constant dense<0.000000e+00> : vector<8xf32>
      %133 = vector.multi_reduction <add>, %132, %cst_89 [1] : vector<8x8xf32> to vector<8xf32>
      %134 = vector.shape_cast %133 : vector<8xf32> to vector<8x1xf32>
      %cst_90 = arith.constant dense<0xFF800000> : vector<16xf32>
      %135 = vector.multi_reduction <maximumf>, %119, %cst_90 [1] : vector<16x8xf32> to vector<16xf32>
      %136 = vector.shape_cast %135 : vector<16xf32> to vector<16x1xf32>
      %137 = vector.broadcast %136 : vector<16x1xf32> to vector<16x8xf32>
      %138 = arith.subf %119, %137 : vector<16x8xf32>
      %139 = math.exp %138 : vector<16x8xf32>
      %c0_91 = arith.constant 0 : index
      %c0_92 = arith.constant 0 : index
      %140 = vector.load %arg15[%c0_91, %c0_92] : memref<16x1xf32, #tpu.memory_space<vmem>>, vector<16x1xf32>
      tpu.vector_store %arg15[%c0_91, %c0_92], %136 {strides = array<i32>} : memref<16x1xf32, #tpu.memory_space<vmem>>, vector<16x1xf32>,
      %cst_93 = arith.constant dense<0.000000e+00> : vector<16xf32>
      %141 = vector.multi_reduction <add>, %139, %cst_93 [1] : vector<16x8xf32> to vector<16xf32>
      %142 = vector.shape_cast %141 : vector<16xf32> to vector<16x1xf32>
      %c0_94 = arith.constant 0 : index
      %c0_95 = arith.constant 0 : index
      %143 = vector.load %arg16[%c0_94, %c0_95] : memref<16x1xf32, #tpu.memory_space<vmem>>, vector<16x1xf32>
      tpu.vector_store %arg16[%c0_94, %c0_95], %142 {strides = array<i32>} : memref<16x1xf32, #tpu.memory_space<vmem>>, vector<16x1xf32>,
      %144 = vector.extract_strided_slice %139 {offsets = [8, 0], sizes = [8, 8], strides = [1, 1]} : vector<16x8xf32> to vector<8x8xf32>
      %145 = arith.mulf %144, %120 : vector<8x8xf32>
      %cst_96 = arith.constant dense<0.000000e+00> : vector<8xf32>
      %146 = vector.multi_reduction <add>, %145, %cst_96 [1] : vector<8x8xf32> to vector<8xf32>
      %147 = vector.shape_cast %146 : vector<8xf32> to vector<8x1xf32>
      %c0_97 = arith.constant 0 : index
      %c0_98 = arith.constant 0 : index
      %148 = vector.load %arg17[%c0_97, %c0_98] : memref<8x1xf32, #tpu.memory_space<vmem>>, vector<8x1xf32>
      tpu.vector_store %arg17[%c0_97, %c0_98], %147 {strides = array<i32>} : memref<8x1xf32, #tpu.memory_space<vmem>>, vector<8x1xf32>,
      %cst_99 = arith.constant dense<0xFF800000> : vector<8xf32>
      %149 = vector.multi_reduction <maximumf>, %123, %cst_99 [1] : vector<8x8xf32> to vector<8xf32>
      %150 = vector.shape_cast %149 : vector<8xf32> to vector<8x1xf32>
      %151 = vector.broadcast %150 : vector<8x1xf32> to vector<8x8xf32>
      %152 = arith.subf %123, %151 : vector<8x8xf32>
      %153 = math.exp %152 : vector<8x8xf32>
      %c0_100 = arith.constant 0 : index
      %c0_101 = arith.constant 0 : index
      %154 = vector.load %arg18[%c0_100, %c0_101] : memref<8x1xf32, #tpu.memory_space<vmem>>, vector<8x1xf32>
      tpu.vector_store %arg18[%c0_100, %c0_101], %150 {strides = array<i32>} : memref<8x1xf32, #tpu.memory_space<vmem>>, vector<8x1xf32>,
      %cst_102 = arith.constant dense<0.000000e+00> : vector<8xf32>
      %155 = vector.multi_reduction <add>, %153, %cst_102 [1] : vector<8x8xf32> to vector<8xf32>
      %156 = vector.shape_cast %155 : vector<8xf32> to vector<8x1xf32>
      %c0_103 = arith.constant 0 : index
      %c0_104 = arith.constant 0 : index
      %157 = vector.load %arg19[%c0_103, %c0_104] : memref<8x1xf32, #tpu.memory_space<vmem>>, vector<8x1xf32>
      tpu.vector_store %arg19[%c0_103, %c0_104], %156 {strides = array<i32>} : memref<8x1xf32, #tpu.memory_space<vmem>>, vector<8x1xf32>,
      %158 = arith.mulf %153, %123 : vector<8x8xf32>
      %cst_105 = arith.constant dense<0.000000e+00> : vector<8xf32>
      %159 = vector.multi_reduction <add>, %158, %cst_105 [1] : vector<8x8xf32> to vector<8xf32>
      %160 = vector.shape_cast %159 : vector<8xf32> to vector<8x1xf32>
      %c0_106 = arith.constant 0 : index
      %c0_107 = arith.constant 0 : index
      %161 = vector.load %arg20[%c0_106, %c0_107] : memref<8x1xf32, #tpu.memory_space<vmem>>, vector<8x1xf32>
      tpu.vector_store %arg20[%c0_106, %c0_107], %160 {strides = array<i32>} : memref<8x1xf32, #tpu.memory_space<vmem>>, vector<8x1xf32>,
      %cst_108 = arith.constant 0.000000e+00 : f32
      %162 = vector.broadcast %cst_108 : f32 to vector<8x1xf32>
      %163 = arith.addf %130, %134 : vector<8x1xf32>
      %cst_109 = arith.constant 6.000000e-01 : f32
      %164 = vector.broadcast %cst_109 : f32 to vector<8x1xf32>
      %165 = arith.mulf %164, %163 : vector<8x1xf32>
      %166 = arith.subf %162, %165 : vector<8x1xf32>
      %cst_110 = arith.constant dense<0xFF800000> : vector<8xf32>
      %167 = vector.multi_reduction <maximumf>, %120, %cst_110 [1] : vector<8x8xf32> to vector<8xf32>
      %168 = vector.shape_cast %167 : vector<8xf32> to vector<8x1xf32>
      %169 = vector.broadcast %168 : vector<8x1xf32> to vector<8x8xf32>
      %170 = arith.subf %120, %169 : vector<8x8xf32>
      %171 = math.exp %170 : vector<8x8xf32>
      %cst_111 = arith.constant dense<0.000000e+00> : vector<8xf32>
      %172 = vector.multi_reduction <add>, %171, %cst_111 [1] : vector<8x8xf32> to vector<8xf32>
      %173 = vector.shape_cast %172 : vector<8xf32> to vector<8x1xf32>
      %174 = math.log %173 : vector<8x1xf32>
      %175 = arith.addf %168, %174 : vector<8x1xf32>
      %176 = arith.addf %166, %175 : vector<8x1xf32>
      %177 = arith.subf %176, %130 : vector<8x1xf32>
      %c0_112 = arith.constant 0 : index
      %c0_113 = arith.constant 0 : index
      %178 = vector.load %arg21[%c0_112, %c0_113] : memref<8x1xf32, #tpu.memory_space<vmem>>, vector<8x1xf32>
      tpu.vector_store %arg21[%c0_112, %c0_113], %177 {strides = array<i32>} : memref<8x1xf32, #tpu.memory_space<vmem>>, vector<8x1xf32>,
    } else {
    }
    %c0 = arith.constant 0 : index
    %c0_1 = arith.constant 0 : index
    %3 = vector.load %arg13[%c0, %c0_1] : memref<16x512xf32, #tpu.memory_space<vmem>>, vector<16x512xf32>
    %4 = arith.truncf %3 : vector<16x512xf32> to vector<16x512xbf16>
    %c0_2 = arith.constant 0 : index
    %c0_3 = arith.constant 0 : index
    %5 = vector.load %arg3[%c0_2, %c0_3] : memref<8x512xf32, #tpu.memory_space<vmem>>, vector<8x512xf32>
    %6 = arith.truncf %5 : vector<8x512xf32> to vector<8x512xbf16>
    %c0_4 = arith.constant 0 : index
    %c0_5 = arith.constant 0 : index
    %7 = vector.load %arg11[%c0_4, %c0_5] : memref<512x640xbf16, #tpu.memory_space<vmem>>, vector<512x640xbf16>
    %cst = arith.constant dense<0.000000e+00> : vector<16x640xf32>
    %8 = tpu.matmul %4, %7, %cst {dimension_numbers = #tpu.dot_dimension_numbers<[1], [0], [0], [1], [0, 0, 1, 1], [], []>} : vector<16x512xbf16>, vector<512x640xbf16>, vector<16x640xf32> -> vector<16x640xf32>
    %cst_6 = arith.constant 1.000000e+02 : f32
    %9 = vector.broadcast %cst_6 : f32 to vector<16x640xf32>
    %10 = arith.mulf %8, %9 : vector<16x640xf32>
    %c0_7 = arith.constant 0 : index
    %c0_8 = arith.constant 0 : index
    %11 = vector.load %arg12[%c0_7, %c0_8] : memref<512x640xbf16, #tpu.memory_space<vmem>>, vector<512x640xbf16>
    %cst_9 = arith.constant dense<0.000000e+00> : vector<8x640xf32>
    %12 = tpu.matmul %6, %11, %cst_9 {dimension_numbers = #tpu.dot_dimension_numbers<[1], [0], [0], [1], [0, 0, 1, 1], [], []>} : vector<8x512xbf16>, vector<512x640xbf16>, vector<8x640xf32> -> vector<8x640xf32>
    %cst_10 = arith.constant 1.000000e+02 : f32
    %13 = vector.broadcast %cst_10 : f32 to vector<8x640xf32>
    %14 = arith.mulf %12, %13 : vector<8x640xf32>
    %15 = vector.extract_strided_slice %10 {offsets = [0, 0], sizes = [8, 640], strides = [1, 1]} : vector<16x640xf32> to vector<8x640xf32>
    %c0_11 = arith.constant 0 : index
    %c0_12 = arith.constant 0 : index
    %16 = vector.load %arg15[%c0_11, %c0_12] : memref<16x1xf32, #tpu.memory_space<vmem>>, vector<16x1xf32>
    %cst_13 = arith.constant dense<0xFF800000> : vector<16xf32>
    %17 = vector.multi_reduction <maximumf>, %10, %cst_13 [1] : vector<16x640xf32> to vector<16xf32>
    %18 = vector.shape_cast %17 : vector<16xf32> to vector<16x1xf32>
    %19 = arith.maximumf %16, %18 : vector<16x1xf32>
    %c0_14 = arith.constant 0 : index
    %c0_15 = arith.constant 0 : index
    %20 = vector.load %arg15[%c0_14, %c0_15] : memref<16x1xf32, #tpu.memory_space<vmem>>, vector<16x1xf32>
    %21 = arith.subf %20, %19 : vector<16x1xf32>
    %22 = math.exp %21 : vector<16x1xf32>
    %23 = vector.broadcast %19 : vector<16x1xf32> to vector<16x640xf32>
    %24 = arith.subf %10, %23 : vector<16x640xf32>
    %25 = math.exp %24 : vector<16x640xf32>
    %c0_16 = arith.constant 0 : index
    %c0_17 = arith.constant 0 : index
    %26 = vector.load %arg16[%c0_16, %c0_17] : memref<16x1xf32, #tpu.memory_space<vmem>>, vector<16x1xf32>
    %27 = arith.mulf %26, %22 : vector<16x1xf32>
    %cst_18 = arith.constant dense<0.000000e+00> : vector<16xf32>
    %28 = vector.multi_reduction <add>, %25, %cst_18 [1] : vector<16x640xf32> to vector<16xf32>
    %29 = vector.shape_cast %28 : vector<16xf32> to vector<16x1xf32>
    %30 = arith.addf %27, %29 : vector<16x1xf32>
    %c0_19 = arith.constant 0 : index
    %c0_20 = arith.constant 0 : index
    %31 = vector.load %arg16[%c0_19, %c0_20] : memref<16x1xf32, #tpu.memory_space<vmem>>, vector<16x1xf32>
    tpu.vector_store %arg16[%c0_19, %c0_20], %30 {strides = array<i32>} : memref<16x1xf32, #tpu.memory_space<vmem>>, vector<16x1xf32>,
    %c0_21 = arith.constant 0 : index
    %c0_22 = arith.constant 0 : index
    %32 = vector.load %arg17[%c0_21, %c0_22] : memref<8x1xf32, #tpu.memory_space<vmem>>, vector<8x1xf32>
    %33 = vector.extract_strided_slice %22 {offsets = [8, 0], sizes = [8, 1], strides = [1, 1]} : vector<16x1xf32> to vector<8x1xf32>
    %34 = arith.mulf %32, %33 : vector<8x1xf32>
    %35 = vector.extract_strided_slice %25 {offsets = [8, 0], sizes = [8, 640], strides = [1, 1]} : vector<16x640xf32> to vector<8x640xf32>
    %36 = arith.mulf %35, %15 : vector<8x640xf32>
    %cst_23 = arith.constant dense<0.000000e+00> : vector<8xf32>
    %37 = vector.multi_reduction <add>, %36, %cst_23 [1] : vector<8x640xf32> to vector<8xf32>
    %38 = vector.shape_cast %37 : vector<8xf32> to vector<8x1xf32>
    %39 = arith.addf %34, %38 : vector<8x1xf32>
    %c0_24 = arith.constant 0 : index
    %c0_25 = arith.constant 0 : index
    %40 = vector.load %arg17[%c0_24, %c0_25] : memref<8x1xf32, #tpu.memory_space<vmem>>, vector<8x1xf32>
    tpu.vector_store %arg17[%c0_24, %c0_25], %39 {strides = array<i32>} : memref<8x1xf32, #tpu.memory_space<vmem>>, vector<8x1xf32>,
    %c0_26 = arith.constant 0 : index
    %c0_27 = arith.constant 0 : index
    %41 = vector.load %arg15[%c0_26, %c0_27] : memref<16x1xf32, #tpu.memory_space<vmem>>, vector<16x1xf32>
    tpu.vector_store %arg15[%c0_26, %c0_27], %19 {strides = array<i32>} : memref<16x1xf32, #tpu.memory_space<vmem>>, vector<16x1xf32>,
    %c0_28 = arith.constant 0 : index
    %c0_29 = arith.constant 0 : index
    %42 = vector.load %arg18[%c0_28, %c0_29] : memref<8x1xf32, #tpu.memory_space<vmem>>, vector<8x1xf32>
    %cst_30 = arith.constant dense<0xFF800000> : vector<8xf32>
    %43 = vector.multi_reduction <maximumf>, %14, %cst_30 [1] : vector<8x640xf32> to vector<8xf32>
    %44 = vector.shape_cast %43 : vector<8xf32> to vector<8x1xf32>
    %45 = arith.maximumf %42, %44 : vector<8x1xf32>
    %c0_31 = arith.constant 0 : index
    %c0_32 = arith.constant 0 : index
    %46 = vector.load %arg18[%c0_31, %c0_32] : memref<8x1xf32, #tpu.memory_space<vmem>>, vector<8x1xf32>
    %47 = arith.subf %46, %45 : vector<8x1xf32>
    %48 = math.exp %47 : vector<8x1xf32>
    %49 = vector.broadcast %45 : vector<8x1xf32> to vector<8x640xf32>
    %50 = arith.subf %14, %49 : vector<8x640xf32>
    %51 = math.exp %50 : vector<8x640xf32>
    %c0_33 = arith.constant 0 : index
    %c0_34 = arith.constant 0 : index
    %52 = vector.load %arg19[%c0_33, %c0_34] : memref<8x1xf32, #tpu.memory_space<vmem>>, vector<8x1xf32>
    %53 = arith.mulf %52, %48 : vector<8x1xf32>
    %cst_35 = arith.constant dense<0.000000e+00> : vector<8xf32>
    %54 = vector.multi_reduction <add>, %51, %cst_35 [1] : vector<8x640xf32> to vector<8xf32>
    %55 = vector.shape_cast %54 : vector<8xf32> to vector<8x1xf32>
    %56 = arith.addf %53, %55 : vector<8x1xf32>
    %c0_36 = arith.constant 0 : index
    %c0_37 = arith.constant 0 : index
    %57 = vector.load %arg19[%c0_36, %c0_37] : memref<8x1xf32, #tpu.memory_space<vmem>>, vector<8x1xf32>
    tpu.vector_store %arg19[%c0_36, %c0_37], %56 {strides = array<i32>} : memref<8x1xf32, #tpu.memory_space<vmem>>, vector<8x1xf32>,
    %c0_38 = arith.constant 0 : index
    %c0_39 = arith.constant 0 : index
    %58 = vector.load %arg20[%c0_38, %c0_39] : memref<8x1xf32, #tpu.memory_space<vmem>>, vector<8x1xf32>
    %59 = arith.mulf %58, %48 : vector<8x1xf32>
    %60 = arith.mulf %51, %14 : vector<8x640xf32>
    %cst_40 = arith.constant dense<0.000000e+00> : vector<8xf32>
    %61 = vector.multi_reduction <add>, %60, %cst_40 [1] : vector<8x640xf32> to vector<8xf32>
    %62 = vector.shape_cast %61 : vector<8xf32> to vector<8x1xf32>
    %63 = arith.addf %59, %62 : vector<8x1xf32>
    %c0_41 = arith.constant 0 : index
    %c0_42 = arith.constant 0 : index
    %64 = vector.load %arg20[%c0_41, %c0_42] : memref<8x1xf32, #tpu.memory_space<vmem>>, vector<8x1xf32>
    tpu.vector_store %arg20[%c0_41, %c0_42], %63 {strides = array<i32>} : memref<8x1xf32, #tpu.memory_space<vmem>>, vector<8x1xf32>,
    %c0_43 = arith.constant 0 : index
    %c0_44 = arith.constant 0 : index
    %65 = vector.load %arg18[%c0_43, %c0_44] : memref<8x1xf32, #tpu.memory_space<vmem>>, vector<8x1xf32>
    tpu.vector_store %arg18[%c0_43, %c0_44], %45 {strides = array<i32>} : memref<8x1xf32, #tpu.memory_space<vmem>>, vector<8x1xf32>,
    %c2_i32 = arith.constant 2 : i32
    %66 = arith.cmpi eq, %arg0, %c2_i32 : i32
    %67 = arith.extui %66 : i1 to i32
    %c0_i32_45 = arith.constant 0 : i32
    %68 = arith.cmpi ne, %67, %c0_i32_45 : i32
    scf.if %68 {
      %c0_46 = arith.constant 0 : index
      %c0_47 = arith.constant 0 : index
      %69 = vector.load %arg21[%c0_46, %c0_47] : memref<8x1xf32, #tpu.memory_space<vmem>>, vector<8x1xf32>
      %c0_48 = arith.constant 0 : index
      %c0_49 = arith.constant 0 : index
      %70 = vector.load %arg15[%c0_48, %c0_49] : memref<16x1xf32, #tpu.memory_space<vmem>>, vector<8x1xf32>
      %c0_50 = arith.constant 0 : index
      %c0_51 = arith.constant 0 : index
      %71 = vector.load %arg16[%c0_50, %c0_51] : memref<16x1xf32, #tpu.memory_space<vmem>>, vector<8x1xf32>
      %72 = math.log %71 : vector<8x1xf32>
      %73 = arith.addf %70, %72 : vector<8x1xf32>
      %c0_52 = arith.constant 0 : index
      %c0_53 = arith.constant 0 : index
      %74 = vector.load %arg18[%c0_52, %c0_53] : memref<8x1xf32, #tpu.memory_space<vmem>>, vector<8x1xf32>
      %c0_54 = arith.constant 0 : index
      %c0_55 = arith.constant 0 : index
      %75 = vector.load %arg19[%c0_54, %c0_55] : memref<8x1xf32, #tpu.memory_space<vmem>>, vector<8x1xf32>
      %76 = math.log %75 : vector<8x1xf32>
      %77 = arith.addf %74, %76 : vector<8x1xf32>
      %c8 = arith.constant 8 : index
      %c0_56 = arith.constant 0 : index
      %78 = vector.load %arg16[%c8, %c0_56] : memref<16x1xf32, #tpu.memory_space<vmem>>, vector<8x1xf32>
      %79 = tpu.reciprocal %78 {approx = true} : vector<8x1xf32> -> vector<8x1xf32>
      %c0_57 = arith.constant 0 : index
      %c0_58 = arith.constant 0 : index
      %80 = vector.load %arg19[%c0_57, %c0_58] : memref<8x1xf32, #tpu.memory_space<vmem>>, vector<8x1xf32>
      %81 = tpu.reciprocal %80 {approx = true} : vector<8x1xf32> -> vector<8x1xf32>
      %82 = arith.addf %69, %73 : vector<8x1xf32>
      %83 = arith.addf %82, %77 : vector<8x1xf32>
      %c0_59 = arith.constant 0 : index
      %c0_60 = arith.constant 0 : index
      %84 = vector.load %arg17[%c0_59, %c0_60] : memref<8x1xf32, #tpu.memory_space<vmem>>, vector<8x1xf32>
      %85 = arith.mulf %84, %79 : vector<8x1xf32>
      %c0_61 = arith.constant 0 : index
      %c0_62 = arith.constant 0 : index
      %86 = vector.load %arg20[%c0_61, %c0_62] : memref<8x1xf32, #tpu.memory_space<vmem>>, vector<8x1xf32>
      %87 = arith.mulf %86, %81 : vector<8x1xf32>
      %88 = arith.addf %85, %87 : vector<8x1xf32>
      %cst_63 = arith.constant 4.000000e-01 : f32
      %89 = vector.broadcast %cst_63 : f32 to vector<8x1xf32>
      %90 = arith.mulf %89, %88 : vector<8x1xf32>
      %91 = arith.subf %83, %90 : vector<8x1xf32>
      %92 = vector.shape_cast %91 : vector<8x1xf32> to vector<1x8x1xf32>
      %cst_64 = arith.constant dense<0.000000e+00> : vector<1xf32>
      %93 = vector.multi_reduction <add>, %92, %cst_64 [1, 2] : vector<1x8x1xf32> to vector<1xf32>
      %94 = vector.shape_cast %93 : vector<1xf32> to vector<1x1x1xf32>
      %95 = vector.extract %94[0, 0, 0] : f32 from vector<1x1x1xf32>
      %cst_65 = arith.constant 1.250000e-01 : f32
      %96 = arith.mulf %95, %cst_65 : f32
      %c0_66 = arith.constant 0 : index
      %c0_67 = arith.constant 0 : index
      %97 = memref.load %arg14[%c0_66, %c0_67] : memref<1x1xf32, #tpu.memory_space<smem>>
      memref.store %96, %arg14[%c0_66, %c0_67] : memref<1x1xf32, #tpu.memory_space<smem>>
    } else {
    }
    return
  }
  func.func @transform_0(%arg0: i32) -> (i32, i32) {
    %c0_i32 = arith.constant 0 : i32
    %c0_i32_0 = arith.constant 0 : i32
    %c0_i32_1 = arith.constant 0 : i32
    return %c0_i32, %c0_i32_0 : i32, i32
  }
  func.func @transform_1(%arg0: i32) -> (i32, i32) {
    %c0_i32 = arith.constant 0 : i32
    %c0_i32_0 = arith.constant 0 : i32
    %c0_i32_1 = arith.constant 0 : i32
    return %c0_i32, %c0_i32_0 : i32, i32
  }
  func.func @transform_2(%arg0: i32) -> (i32, i32) {
    %c0_i32 = arith.constant 0 : i32
    %c0_i32_0 = arith.constant 0 : i32
    %c0_i32_1 = arith.constant 0 : i32
    return %c0_i32, %c0_i32_0 : i32, i32
  }
  func.func @transform_3(%arg0: i32) -> (i32, i32) {
    %c0_i32 = arith.constant 0 : i32
    %c0_i32_0 = arith.constant 0 : i32
    %c0_i32_1 = arith.constant 0 : i32
    return %c0_i32, %c0_i32_0 : i32, i32
  }
  func.func @transform_4(%arg0: i32) -> (i32, i32) {
    %c0_i32 = arith.constant 0 : i32
    %c0_i32_0 = arith.constant 0 : i32
    %c0_i32_1 = arith.constant 0 : i32
    return %c0_i32, %c0_i32_0 : i32, i32
  }
  func.func @transform_5(%arg0: i32) -> (i32, i32) {
    %c0_i32 = arith.constant 0 : i32
    %c0_i32_0 = arith.constant 0 : i32
    %c0_i32_1 = arith.constant 0 : i32
    return %c0_i32, %c0_i32_0 : i32, i32
  }
  func.func @transform_6(%arg0: i32) -> (i32, i32) {
    %c0_i32 = arith.constant 0 : i32
    %c0_i32_0 = arith.constant 0 : i32
    %c0_i32_1 = arith.constant 0 : i32
    return %c0_i32, %c0_i32_0 : i32, i32
  }
  func.func @transform_7(%arg0: i32) -> (i32, i32) {
    %c0_i32 = arith.constant 0 : i32
    %c0_i32_0 = arith.constant 0 : i32
    %c0_i32_1 = arith.constant 0 : i32
    return %c0_i32, %c0_i32_0 : i32, i32
  }
  func.func @transform_8(%arg0: i32) -> (i32, i32) {
    %c0_i32 = arith.constant 0 : i32
    %c0_i32_0 = arith.constant 0 : i32
    %c0_i32_1 = arith.constant 0 : i32
    return %c0_i32, %c0_i32_0 : i32, i32
  }
  func.func @transform_9(%arg0: i32) -> (i32, i32) {
    %c0_i32 = arith.constant 0 : i32
    %c0_i32_0 = arith.constant 0 : i32
    %c0_i32_1 = arith.constant 0 : i32
    return %c0_i32, %c0_i32_0 : i32, i32
  }
  func.func @transform_10(%arg0: i32) -> (i32, i32) {
    %c0_i32 = arith.constant 0 : i32
    %c0_i32_0 = arith.constant 0 : i32
    return %c0_i32, %arg0 : i32, i32
  }
  func.func @transform_11(%arg0: i32) -> (i32, i32) {
    %c0_i32 = arith.constant 0 : i32
    %c0_i32_0 = arith.constant 0 : i32
    return %c0_i32, %arg0 : i32, i32
  }
  func.func @transform_12(%arg0: i32) -> (i32, i32) {
    %c0_i32 = arith.constant 0 : i32
    %c0_i32_0 = arith.constant 0 : i32
    %c0_i32_1 = arith.constant 0 : i32
    return %c0_i32, %c0_i32_0 : i32, i32
  }
  func.func @transform_13(%arg0: i32) -> (i32, i32) {
    %c0_i32 = arith.constant 0 : i32
    %c0_i32_0 = arith.constant 0 : i32
    %c0_i32_1 = arith.constant 0 : i32
    return %c0_i32, %c0_i32_0 : i32, i32
  }
}

</mosaic_0001>

<llo_original>
// kernel: tpu_custom_call.1
$region0: #{tpu_custom_call.1}
  #allocation0 [shape = 'u32[]', space=smem, size = 0x4, offset = 0x4, fixed_abs, tag = 'smem constant byte address 0x4 - core index']
  #allocation1 [shape = 'u32[72,128]{1,0:T(1,128)}', space=vmem, size = 0x9000, scoped, tag = 'internal scratch']
  #allocation2 [shape = 'f32[16,1]{1,0:T(8,128)}', space=vmem, size = 0x2000, scoped, tag = 'scratch operand']
  #allocation3 [shape = 'f32[16,1]{1,0:T(8,128)}', space=vmem, size = 0x2000, scoped, tag = 'scratch operand']
  #allocation4 [shape = 'f32[8,1]{1,0:T(8,128)}', space=vmem, size = 0x1000, scoped, tag = 'scratch operand']
  #allocation5 [shape = 'f32[8,1]{1,0:T(8,128)}', space=vmem, size = 0x1000, scoped, tag = 'scratch operand']
  #allocation6 [shape = 'f32[8,1]{1,0:T(8,128)}', space=vmem, size = 0x1000, scoped, tag = 'scratch operand']
  #allocation7 [shape = 'f32[8,1]{1,0:T(8,128)}', space=vmem, size = 0x1000, scoped, tag = 'scratch operand']
  #allocation8 [shape = 'f32[8,1]{1,0:T(8,128)}', space=vmem, size = 0x1000, scoped, tag = 'scratch operand']
  %s0 = inlined_call_operand.hbm [shape: f32[8,512], index: 0, kind: input, shape index: {}]
  %s1 = inlined_call_operand.hbm [shape: f32[8,512], index: 1, kind: input, shape index: {}]
  %s2 = inlined_call_operand.hbm [shape: f32[8,512], index: 2, kind: input, shape index: {}]
  %s3 = inlined_call_operand.hbm [shape: f32[512,512], index: 3, kind: input, shape index: {}]
  %s4 = inlined_call_operand.hbm [shape: f32[512,512], index: 4, kind: input, shape index: {}]
  %s5 = inlined_call_operand.hbm [shape: f32[1,512], index: 5, kind: input, shape index: {}]
  %s6 = inlined_call_operand.hbm [shape: f32[256,512], index: 6, kind: input, shape index: {}]
  %s7 = inlined_call_operand.hbm [shape: f32[1,512], index: 7, kind: input, shape index: {}]
  %s8 = inlined_call_operand.hbm [shape: f32[256,512], index: 8, kind: input, shape index: {}]
  %s9 = inlined_call_operand.hbm [shape: f32[1,512], index: 9, kind: input, shape index: {}]
  %s10 = inlined_call_operand.hbm [shape: bf16[512,1920], index: 10, kind: input, shape index: {}]
  %s11 = inlined_call_operand.hbm [shape: bf16[512,1920], index: 11, kind: input, shape index: {}]
  %s12 = inlined_call_operand.hbm [shape: f32[16,512], index: 12, kind: output, shape index: {0}]
  %s13 = inlined_call_operand.hbm [shape: f32[1,1], index: 13, kind: output, shape index: {1}]
  %14 = xla_tuple %s12, %s13
  %s15 = sld [smem:[#allocation0]]
  $region145: #{tpu_custom_call.1} parent=0
    _
  %s17 = ssub.s32 1, %s15
  %s18 = scalar_select 0, %s17, %s15
  $region1: #{tpu_custom_call.1} parent=0
    #allocation9 [shape = 'u8[16384]{0}', space=vmem, size = 0x4000, scoped, tag = 'input window, operand 0, single buffered']
    #allocation10 [shape = 's32[2]{0}', space=sflag, size = 0x8, scoped, tag = 'scoped memory for tpu_custom_call.1']
    #allocation11 [shape = 's32[2]{0}', space=sflag, size = 0x8, scoped, tag = 'scoped memory for tpu_custom_call.1']
    #allocation12 [shape = 's32[2]{0}', space=sflag, size = 0x8, scoped, tag = 'scoped memory for tpu_custom_call.1']
    #allocation13 [shape = 'u8[16384]{0}', space=vmem, size = 0x4000, scoped, tag = 'input window, operand 1, single buffered']
    #allocation14 [shape = 's32[1]{0}', space=sflag, size = 0x4, scoped, tag = 'scoped memory for tpu_custom_call.1']
    #allocation15 [shape = 'u8[16384]{0}', space=vmem, size = 0x4000, scoped, tag = 'input window, operand 2, single buffered']
    #allocation16 [shape = 'u8[1048576]{0}', space=vmem, size = 0x100000, scoped, tag = 'input window, operand 3, single buffered']
    #allocation17 [shape = 's32[1]{0}', space=sflag, size = 0x4, scoped, tag = 'scoped memory for tpu_custom_call.1']
    #allocation18 [shape = 'u8[1048576]{0}', space=vmem, size = 0x100000, scoped, tag = 'input window, operand 4, single buffered']
    #allocation19 [shape = 'u8[2048]{0}', space=vmem, size = 0x800, scoped, tag = 'input window, operand 5, single buffered']
    #allocation20 [shape = 's32[1]{0}', space=sflag, size = 0x4, scoped, tag = 'scoped memory for tpu_custom_call.1']
    #allocation21 [shape = 'u8[524288]{0}', space=vmem, size = 0x80000, scoped, tag = 'input window, operand 6, single buffered']
    #allocation22 [shape = 'u8[2048]{0}', space=vmem, size = 0x800, scoped, tag = 'input window, operand 7, single buffered']
    #allocation23 [shape = 's32[1]{0}', space=sflag, size = 0x4, scoped, tag = 'scoped memory for tpu_custom_call.1']
    #allocation24 [shape = 'u8[524288]{0}', space=vmem, size = 0x80000, scoped, tag = 'input window, operand 8, single buffered']
    #allocation25 [shape = 'u8[2048]{0}', space=vmem, size = 0x800, scoped, tag = 'input window, operand 9, single buffered']
    #allocation26 [shape = 's32[1]{0}', space=sflag, size = 0x4, scoped, tag = 'scoped memory for tpu_custom_call.1']
    #allocation27 [shape = 'u8[1310720]{0}', space=vmem, size = 0x140000, scoped, tag = 'input window, operand 10']
    #allocation28 [shape = 'u8[1310720]{0}', space=vmem, size = 0x140000, scoped, tag = 'input window, operand 11']
    #allocation29 [shape = 'u8[32768]{0}', space=vmem, size = 0x8000, scoped, tag = 'output window, operand 0, single buffered']
    #allocation30 [shape = 'u8[512]{0}', space=smem, size = 0x200, scoped, tag = 'output window, operand 1, single buffered']
    %19 = vsyncpa [#allocation10], 0
    %20 = vsyncpa [#allocation14], 0
    %21 = vsyncpa [#allocation17], 0
    %22 = vsyncpa [#allocation20], 0
    %23 = vsyncpa [#allocation23], 0
    %24 = vsyncpa [#allocation26], 0
    %25 = vsyncpa [#allocation11], 0
    %26 = vsyncpa [#allocation12], 0
    loop: start=0, step=1, limit=5
    $region2: #{tpu_custom_call.1} parent=1 // loop_pre_header
      _
    $region3: #{tpu_custom_call.1} parent=1 // loop_header
      %s28 = sphi 0, %s32
      %p29 = scmp.ge.s32.totalorder %s28, 5
      %s36 = sphi 0, %s36
      %s38 = sphi 0, %s36
      %s39 = sphi 0, %s38
      %s53 = sphi 0, %s39
      %s57 = sphi 0, %s57
      %s59 = sphi 0, %s57
      %s60 = sphi 0, %s59
      %s74 = sphi 0, %s60
      %s78 = sphi 0, %s78
      %s80 = sphi 0, %s78
      %s81 = sphi 0, %s80
      %s95 = sphi 0, %s81
      %s99 = sphi 0, %s99
      %s101 = sphi 0, %s99
      %s102 = sphi 0, %s101
      %s116 = sphi 0, %s102
      %s120 = sphi 0, %s120
      %s122 = sphi 0, %s120
      %s123 = sphi 0, %s122
      %s137 = sphi 0, %s123
      %s141 = sphi 0, %s141
      %s143 = sphi 0, %s141
      %s144 = sphi 0, %s143
      %s158 = sphi 0, %s144
      %s162 = sphi 0, %s162
      %s164 = sphi 0, %s162
      %s165 = sphi 0, %s164
      %s179 = sphi 0, %s165
      %s183 = sphi 0, %s183
      %s185 = sphi 0, %s183
      %s186 = sphi 0, %s185
      %s200 = sphi 0, %s186
      %s204 = sphi 0, %s204
      %s206 = sphi 0, %s204
      %s207 = sphi 0, %s206
      %s221 = sphi 0, %s207
      %s225 = sphi 0, %s225
      %s227 = sphi 0, %s225
      %s228 = sphi 0, %s227
      %s242 = sphi 0, %s228
      %s248 = sphi 0, %s250
      %s251 = sphi 0, %s248
      %s252 = sphi 0, %s251
      %s268 = sphi 0, %s252
      %s274 = sphi 0, %s276
      %s277 = sphi 0, %s274
      %s278 = sphi 0, %s277
      %s294 = sphi 0, %s278
      %s298 = sphi 0, %s298
      %s300 = sphi 0, %s298
      %s301 = sphi 0, %s300
      %s315 = sphi 0, %s301
      %s319 = sphi 0, %s319
      %s321 = sphi 0, %s319
      %s322 = sphi 0, %s321
      %s336 = sphi 0, %s322
    $region4: #{tpu_custom_call.1} parent=1 // loop_header_branch
      %31 = sbr.rel (%p29) target = $region8
    $region5: #{tpu_custom_call.1} parent=1 // loop_body
      %s33 = ssub.s32 %s28, 1
      %s34 = ssub.s32 %s28, 2
      %s35 = sadd.s32 %s28, 1
      %s37 = sadd.s32 %s36, 1
      %p40 = scmp.eq.s32.totalorder %s28, 2
      %p41 = scmp.ne.s32.totalorder %s36, %s38
      %p42 = scmp.eq.s32.totalorder %s28, 0
      %p43 = por %p41, %p42
      %p44 = scmp.ne.s32.totalorder %s36, %s38
      %p45 = scmp.eq.s32.totalorder %s33, 2
      %p46 = por %p44, %p45
      %p47 = scmp.ne.s32.totalorder %s38, %s39
      %p48 = scmp.eq.s32.totalorder %s33, 0
      %p49 = por %p47, %p48
      %p50 = scmp.ne.s32.totalorder %s38, %s39
      %p51 = scmp.eq.s32.totalorder %s34, 2
      %p52 = por %p50, %p51
      %p54 = scmp.ne.s32.totalorder %s39, %s53
      %p55 = scmp.eq.s32.totalorder %s34, 0
      %p56 = por %p54, %p55
      %s58 = sadd.s32 %s57, 1
      %p61 = scmp.eq.s32.totalorder %s28, 2
      %p62 = scmp.ne.s32.totalorder %s57, %s59
      %p63 = scmp.eq.s32.totalorder %s28, 0
      %p64 = por %p62, %p63
      %p65 = scmp.ne.s32.totalorder %s57, %s59
      %p66 = scmp.eq.s32.totalorder %s33, 2
      %p67 = por %p65, %p66
      %p68 = scmp.ne.s32.totalorder %s59, %s60
      %p69 = scmp.eq.s32.totalorder %s33, 0
      %p70 = por %p68, %p69
      %p71 = scmp.ne.s32.totalorder %s59, %s60
      %p72 = scmp.eq.s32.totalorder %s34, 2
      %p73 = por %p71, %p72
      %p75 = scmp.ne.s32.totalorder %s60, %s74
      %p76 = scmp.eq.s32.totalorder %s34, 0
      %p77 = por %p75, %p76
      %s79 = sadd.s32 %s78, 1
      %p82 = scmp.eq.s32.totalorder %s28, 2
      %p83 = scmp.ne.s32.totalorder %s78, %s80
      %p84 = scmp.eq.s32.totalorder %s28, 0
      %p85 = por %p83, %p84
      %p86 = scmp.ne.s32.totalorder %s78, %s80
      %p87 = scmp.eq.s32.totalorder %s33, 2
      %p88 = por %p86, %p87
      %p89 = scmp.ne.s32.totalorder %s80, %s81
      %p90 = scmp.eq.s32.totalorder %s33, 0
      %p91 = por %p89, %p90
      %p92 = scmp.ne.s32.totalorder %s80, %s81
      %p93 = scmp.eq.s32.totalorder %s34, 2
      %p94 = por %p92, %p93
      %p96 = scmp.ne.s32.totalorder %s81, %s95
      %p97 = scmp.eq.s32.totalorder %s34, 0
      %p98 = por %p96, %p97
      %s100 = sadd.s32 %s99, 1
      %p103 = scmp.eq.s32.totalorder %s28, 2
      %p104 = scmp.ne.s32.totalorder %s99, %s101
      %p105 = scmp.eq.s32.totalorder %s28, 0
      %p106 = por %p104, %p105
      %p107 = scmp.ne.s32.totalorder %s99, %s101
      %p108 = scmp.eq.s32.totalorder %s33, 2
      %p109 = por %p107, %p108
      %p110 = scmp.ne.s32.totalorder %s101, %s102
      %p111 = scmp.eq.s32.totalorder %s33, 0
      %p112 = por %p110, %p111
      %p113 = scmp.ne.s32.totalorder %s101, %s102
      %p114 = scmp.eq.s32.totalorder %s34, 2
      %p115 = por %p113, %p114
      %p117 = scmp.ne.s32.totalorder %s102, %s116
      %p118 = scmp.eq.s32.totalorder %s34, 0
      %p119 = por %p117, %p118
      %s121 = sadd.s32 %s120, 1
      %p124 = scmp.eq.s32.totalorder %s28, 2
      %p125 = scmp.ne.s32.totalorder %s120, %s122
      %p126 = scmp.eq.s32.totalorder %s28, 0
      %p127 = por %p125, %p126
      %p128 = scmp.ne.s32.totalorder %s120, %s122
      %p129 = scmp.eq.s32.totalorder %s33, 2
      %p130 = por %p128, %p129
      %p131 = scmp.ne.s32.totalorder %s122, %s123
      %p132 = scmp.eq.s32.totalorder %s33, 0
      %p133 = por %p131, %p132
      %p134 = scmp.ne.s32.totalorder %s122, %s123
      %p135 = scmp.eq.s32.totalorder %s34, 2
      %p136 = por %p134, %p135
      %p138 = scmp.ne.s32.totalorder %s123, %s137
      %p139 = scmp.eq.s32.totalorder %s34, 0
      %p140 = por %p138, %p139
      %s142 = sadd.s32 %s141, 1
      %p145 = scmp.eq.s32.totalorder %s28, 2
      %p146 = scmp.ne.s32.totalorder %s141, %s143
      %p147 = scmp.eq.s32.totalorder %s28, 0
      %p148 = por %p146, %p147
      %p149 = scmp.ne.s32.totalorder %s141, %s143
      %p150 = scmp.eq.s32.totalorder %s33, 2
      %p151 = por %p149, %p150
      %p152 = scmp.ne.s32.totalorder %s143, %s144
      %p153 = scmp.eq.s32.totalorder %s33, 0
      %p154 = por %p152, %p153
      %p155 = scmp.ne.s32.totalorder %s143, %s144
      %p156 = scmp.eq.s32.totalorder %s34, 2
      %p157 = por %p155, %p156
      %p159 = scmp.ne.s32.totalorder %s144, %s158
      %p160 = scmp.eq.s32.totalorder %s34, 0
      %p161 = por %p159, %p160
      %s163 = sadd.s32 %s162, 1
      %p166 = scmp.eq.s32.totalorder %s28, 2
      %p167 = scmp.ne.s32.totalorder %s162, %s164
      %p168 = scmp.eq.s32.totalorder %s28, 0
      %p169 = por %p167, %p168
      %p170 = scmp.ne.s32.totalorder %s162, %s164
      %p171 = scmp.eq.s32.totalorder %s33, 2
      %p172 = por %p170, %p171
      %p173 = scmp.ne.s32.totalorder %s164, %s165
      %p174 = scmp.eq.s32.totalorder %s33, 0
      %p175 = por %p173, %p174
      %p176 = scmp.ne.s32.totalorder %s164, %s165
      %p177 = scmp.eq.s32.totalorder %s34, 2
      %p178 = por %p176, %p177
      %p180 = scmp.ne.s32.totalorder %s165, %s179
      %p181 = scmp.eq.s32.totalorder %s34, 0
      %p182 = por %p180, %p181
      %s184 = sadd.s32 %s183, 1
      %p187 = scmp.eq.s32.totalorder %s28, 2
      %p188 = scmp.ne.s32.totalorder %s183, %s185
      %p189 = scmp.eq.s32.totalorder %s28, 0
      %p190 = por %p188, %p189
      %p191 = scmp.ne.s32.totalorder %s183, %s185
      %p192 = scmp.eq.s32.totalorder %s33, 2
      %p193 = por %p191, %p192
      %p194 = scmp.ne.s32.totalorder %s185, %s186
      %p195 = scmp.eq.s32.totalorder %s33, 0
      %p196 = por %p194, %p195
      %p197 = scmp.ne.s32.totalorder %s185, %s186
      %p198 = scmp.eq.s32.totalorder %s34, 2
      %p199 = por %p197, %p198
      %p201 = scmp.ne.s32.totalorder %s186, %s200
      %p202 = scmp.eq.s32.totalorder %s34, 0
      %p203 = por %p201, %p202
      %s205 = sadd.s32 %s204, 1
      %p208 = scmp.eq.s32.totalorder %s28, 2
      %p209 = scmp.ne.s32.totalorder %s204, %s206
      %p210 = scmp.eq.s32.totalorder %s28, 0
      %p211 = por %p209, %p210
      %p212 = scmp.ne.s32.totalorder %s204, %s206
      %p213 = scmp.eq.s32.totalorder %s33, 2
      %p214 = por %p212, %p213
      %p215 = scmp.ne.s32.totalorder %s206, %s207
      %p216 = scmp.eq.s32.totalorder %s33, 0
      %p217 = por %p215, %p216
      %p218 = scmp.ne.s32.totalorder %s206, %s207
      %p219 = scmp.eq.s32.totalorder %s34, 2
      %p220 = por %p218, %p219
      %p222 = scmp.ne.s32.totalorder %s207, %s221
      %p223 = scmp.eq.s32.totalorder %s34, 0
      %p224 = por %p222, %p223
      %s226 = sadd.s32 %s225, 1
      %p229 = scmp.eq.s32.totalorder %s28, 2
      %p230 = scmp.ne.s32.totalorder %s225, %s227
      %p231 = scmp.eq.s32.totalorder %s28, 0
      %p232 = por %p230, %p231
      %p233 = scmp.ne.s32.totalorder %s225, %s227
      %p234 = scmp.eq.s32.totalorder %s33, 2
      %p235 = por %p233, %p234
      %p236 = scmp.ne.s32.totalorder %s227, %s228
      %p237 = scmp.eq.s32.totalorder %s33, 0
      %p238 = por %p236, %p237
      %p239 = scmp.ne.s32.totalorder %s227, %s228
      %p240 = scmp.eq.s32.totalorder %s34, 2
      %p241 = por %p239, %p240
      %p243 = scmp.ne.s32.totalorder %s228, %s242
      %p244 = scmp.eq.s32.totalorder %s34, 0
      %p245 = por %p243, %p244
      %s246 = ssub.s32 %s28, %s35
      %p247 = scmp.eq.s32.totalorder %s246, 0
      %s249 = sadd.s32 %s248, 1
      %s250 = scalar_select %p247, %s248, %s249
      %p253 = pneg %p247
      %p254 = scmp.eq.s32.totalorder %s28, 2
      %p255 = por %p253, %p254
      %p256 = scmp.ne.s32.totalorder %s248, %s251
      %p257 = scmp.eq.s32.totalorder %s28, 0
      %p258 = por %p256, %p257
      %p259 = scmp.ne.s32.totalorder %s248, %s251
      %p260 = scmp.eq.s32.totalorder %s33, 2
      %p261 = por %p259, %p260
      %p262 = scmp.ne.s32.totalorder %s251, %s252
      %p263 = scmp.eq.s32.totalorder %s33, 0
      %p264 = por %p262, %p263
      %p265 = scmp.ne.s32.totalorder %s251, %s252
      %p266 = scmp.eq.s32.totalorder %s34, 2
      %p267 = por %p265, %p266
      %p269 = scmp.ne.s32.totalorder %s252, %s268
      %p270 = scmp.eq.s32.totalorder %s34, 0
      %p271 = por %p269, %p270
      %s272 = ssub.s32 %s28, %s35
      %p273 = scmp.eq.s32.totalorder %s272, 0
      %s275 = sadd.s32 %s274, 1
      %s276 = scalar_select %p273, %s274, %s275
      %p279 = pneg %p273
      %p280 = scmp.eq.s32.totalorder %s28, 2
      %p281 = por %p279, %p280
      %p282 = scmp.ne.s32.totalorder %s274, %s277
      %p283 = scmp.eq.s32.totalorder %s28, 0
      %p284 = por %p282, %p283
      %p285 = scmp.ne.s32.totalorder %s274, %s277
      %p286 = scmp.eq.s32.totalorder %s33, 2
      %p287 = por %p285, %p286
      %p288 = scmp.ne.s32.totalorder %s277, %s278
      %p289 = scmp.eq.s32.totalorder %s33, 0
      %p290 = por %p288, %p289
      %p291 = scmp.ne.s32.totalorder %s277, %s278
      %p292 = scmp.eq.s32.totalorder %s34, 2
      %p293 = por %p291, %p292
      %p295 = scmp.ne.s32.totalorder %s278, %s294
      %p296 = scmp.eq.s32.totalorder %s34, 0
      %p297 = por %p295, %p296
      %s299 = sadd.s32 %s298, 1
      %p302 = scmp.eq.s32.totalorder %s28, 2
      %p303 = scmp.ne.s32.totalorder %s298, %s300
      %p304 = scmp.eq.s32.totalorder %s28, 0
      %p305 = por %p303, %p304
      %p306 = scmp.ne.s32.totalorder %s298, %s300
      %p307 = scmp.eq.s32.totalorder %s33, 2
      %p308 = por %p306, %p307
      %p309 = scmp.ne.s32.totalorder %s300, %s301
      %p310 = scmp.eq.s32.totalorder %s33, 0
      %p311 = por %p309, %p310
      %p312 = scmp.ne.s32.totalorder %s300, %s301
      %p313 = scmp.eq.s32.totalorder %s34, 2
      %p314 = por %p312, %p313
      %p316 = scmp.ne.s32.totalorder %s301, %s315
      %p317 = scmp.eq.s32.totalorder %s34, 0
      %p318 = por %p316, %p317
      %s320 = sadd.s32 %s319, 1
      %p323 = scmp.eq.s32.totalorder %s28, 2
      %p324 = scmp.ne.s32.totalorder %s319, %s321
      %p325 = scmp.eq.s32.totalorder %s28, 0
      %p326 = por %p324, %p325
      %p327 = scmp.ne.s32.totalorder %s319, %s321
      %p328 = scmp.eq.s32.totalorder %s33, 2
      %p329 = por %p327, %p328
      %p330 = scmp.ne.s32.totalorder %s321, %s322
      %p331 = scmp.eq.s32.totalorder %s33, 0
      %p332 = por %p330, %p331
      %p333 = scmp.ne.s32.totalorder %s321, %s322
      %p334 = scmp.eq.s32.totalorder %s34, 2
      %p335 = por %p333, %p334
      %p337 = scmp.ne.s32.totalorder %s322, %s336
      %p338 = scmp.eq.s32.totalorder %s34, 0
      %p339 = por %p337, %p338
      %p340 = scmp.le.s32.totalorder 1, %s28
      %p341 = scmp.lt.s32.totalorder %s28, 4
      %p342 = pnand %p340, %p341
      %p343 = pneg %p342
      // Predicated region
      $region9: #{tpu_custom_call.1} parent=5 // pred_check
        _
      $region10: #{tpu_custom_call.1} parent=5 // pred_check_branch
        %345 = sbr.rel (%p342) target = $region12
      $region11: #{tpu_custom_call.1} parent=5 // pred_region
        %s346 = ssub.s32 %s28, 1
        // Predicated region
        $region13: #{tpu_custom_call.1} parent=11 // pred_check
          %p347 = pneg %p49
        $region14: #{tpu_custom_call.1} parent=11 // pred_check_branch
          %349 = sbr.rel (%p347) target = $region16
        $region15: #{tpu_custom_call.1} parent=11 // pred_region
          %351 = vsyncadd [#allocation10], 0
          %s353 = sshll.u32 %s0, 4
          %s354 = int_to_ptr.hbm [resolvable:$true] %s353
          %s355 = sshll.u32 [#allocation9], 4
          %s356 = int_to_ptr.vmem [resolvable:$true] %s355
          %358 = dma.hbm_to_vmem [thread:$0]  %s354, 512, %s356, [#allocation10]
        $region16: #{tpu_custom_call.1} parent=11 // pred_fallthru
          _
        // Predicated region
        $region17: #{tpu_custom_call.1} parent=11 // pred_check
          %p359 = pneg %p70
        $region18: #{tpu_custom_call.1} parent=11 // pred_check_branch
          %361 = sbr.rel (%p359) target = $region20
        $region19: #{tpu_custom_call.1} parent=11 // pred_region
          %363 = vsyncadd [#allocation14], 0
          %s365 = sshll.u32 %s1, 4
          %s366 = int_to_ptr.hbm [resolvable:$true] %s365
          %s367 = sshll.u32 [#allocation13], 4
          %s368 = int_to_ptr.vmem [resolvable:$true] %s367
          %370 = dma.hbm_to_vmem [thread:$0]  %s366, 512, %s368, [#allocation14]
        $region20: #{tpu_custom_call.1} parent=11 // pred_fallthru
          _
        // Predicated region
        $region21: #{tpu_custom_call.1} parent=11 // pred_check
          %p371 = pneg %p91
        $region22: #{tpu_custom_call.1} parent=11 // pred_check_branch
          %373 = sbr.rel (%p371) target = $region24
        $region23: #{tpu_custom_call.1} parent=11 // pred_region
          %375 = vsyncadd [#allocation14], 0
          %s377 = sshll.u32 %s2, 4
          %s378 = int_to_ptr.hbm [resolvable:$true] %s377
          %s379 = sshll.u32 [#allocation15], 4
          %s380 = int_to_ptr.vmem [resolvable:$true] %s379
          %382 = dma.hbm_to_vmem [thread:$0]  %s378, 512, %s380, [#allocation14]
        $region24: #{tpu_custom_call.1} parent=11 // pred_fallthru
          _
        // Predicated region
        $region25: #{tpu_custom_call.1} parent=11 // pred_check
          %p383 = pneg %p112
        $region26: #{tpu_custom_call.1} parent=11 // pred_check_branch
          %385 = sbr.rel (%p383) target = $region28
        $region27: #{tpu_custom_call.1} parent=11 // pred_region
          %387 = vsyncadd [#allocation17], 0
          %s388 = sshll.u32 %s3, 4
          %s389 = int_to_ptr.hbm [resolvable:$true] %s388
          %s390 = sshll.u32 [#allocation16], 4
          %s391 = int_to_ptr.vmem [resolvable:$true] %s390
          %396 = dma.hbm_to_vmem [thread:$0]  %s389, 32768, %s391, [#allocation17], 512, 512, 32
        $region28: #{tpu_custom_call.1} parent=11 // pred_fallthru
          _
        // Predicated region
        $region29: #{tpu_custom_call.1} parent=11 // pred_check
          %p397 = pneg %p133
        $region30: #{tpu_custom_call.1} parent=11 // pred_check_branch
          %399 = sbr.rel (%p397) target = $region32
        $region31: #{tpu_custom_call.1} parent=11 // pred_region
          %401 = vsyncadd [#allocation17], 0
          %s402 = sshll.u32 %s4, 4
          %s403 = int_to_ptr.hbm [resolvable:$true] %s402
          %s404 = sshll.u32 [#allocation18], 4
          %s405 = int_to_ptr.vmem [resolvable:$true] %s404
          %410 = dma.hbm_to_vmem [thread:$0]  %s403, 32768, %s405, [#allocation17], 512, 512, 32
        $region32: #{tpu_custom_call.1} parent=11 // pred_fallthru
          _
        // Predicated region
        $region33: #{tpu_custom_call.1} parent=11 // pred_check
          %p411 = pneg %p154
        $region34: #{tpu_custom_call.1} parent=11 // pred_check_branch
          %413 = sbr.rel (%p411) target = $region36
        $region35: #{tpu_custom_call.1} parent=11 // pred_region
          %415 = vsyncadd [#allocation20], 0
          %s417 = sshll.u32 %s5, 4
          %s418 = int_to_ptr.hbm [resolvable:$true] %s417
          %s419 = sshll.u32 [#allocation19], 4
          %s420 = int_to_ptr.vmem [resolvable:$true] %s419
          %422 = dma.hbm_to_vmem [thread:$0]  %s418, 64, %s420, [#allocation20]
        $region36: #{tpu_custom_call.1} parent=11 // pred_fallthru
          _
        // Predicated region
        $region37: #{tpu_custom_call.1} parent=11 // pred_check
          %p423 = pneg %p175
        $region38: #{tpu_custom_call.1} parent=11 // pred_check_branch
          %425 = sbr.rel (%p423) target = $region40
        $region39: #{tpu_custom_call.1} parent=11 // pred_region
          %427 = vsyncadd [#allocation20], 0
          %s428 = sshll.u32 %s6, 4
          %s429 = int_to_ptr.hbm [resolvable:$true] %s428
          %s430 = sshll.u32 [#allocation21], 4
          %s431 = int_to_ptr.vmem [resolvable:$true] %s430
          %436 = dma.hbm_to_vmem [thread:$0]  %s429, 16384, %s431, [#allocation20], 512, 512, 32
        $region40: #{tpu_custom_call.1} parent=11 // pred_fallthru
          _
        // Predicated region
        $region41: #{tpu_custom_call.1} parent=11 // pred_check
          %p437 = pneg %p196
        $region42: #{tpu_custom_call.1} parent=11 // pred_check_branch
          %439 = sbr.rel (%p437) target = $region44
        $region43: #{tpu_custom_call.1} parent=11 // pred_region
          %441 = vsyncadd [#allocation23], 0
          %s443 = sshll.u32 %s7, 4
          %s444 = int_to_ptr.hbm [resolvable:$true] %s443
          %s445 = sshll.u32 [#allocation22], 4
          %s446 = int_to_ptr.vmem [resolvable:$true] %s445
          %448 = dma.hbm_to_vmem [thread:$0]  %s444, 64, %s446, [#allocation23]
        $region44: #{tpu_custom_call.1} parent=11 // pred_fallthru
          _
        // Predicated region
        $region45: #{tpu_custom_call.1} parent=11 // pred_check
          %p449 = pneg %p217
        $region46: #{tpu_custom_call.1} parent=11 // pred_check_branch
          %451 = sbr.rel (%p449) target = $region48
        $region47: #{tpu_custom_call.1} parent=11 // pred_region
          %453 = vsyncadd [#allocation23], 0
          %s454 = sshll.u32 %s8, 4
          %s455 = int_to_ptr.hbm [resolvable:$true] %s454
          %s456 = sshll.u32 [#allocation24], 4
          %s457 = int_to_ptr.vmem [resolvable:$true] %s456
          %462 = dma.hbm_to_vmem [thread:$0]  %s455, 16384, %s457, [#allocation23], 512, 512, 32
        $region48: #{tpu_custom_call.1} parent=11 // pred_fallthru
          _
        // Predicated region
        $region49: #{tpu_custom_call.1} parent=11 // pred_check
          %p463 = pneg %p238
        $region50: #{tpu_custom_call.1} parent=11 // pred_check_branch
          %465 = sbr.rel (%p463) target = $region52
        $region51: #{tpu_custom_call.1} parent=11 // pred_region
          %467 = vsyncadd [#allocation26], 0
          %s469 = sshll.u32 %s9, 4
          %s470 = int_to_ptr.hbm [resolvable:$true] %s469
          %s471 = sshll.u32 [#allocation25], 4
          %s472 = int_to_ptr.vmem [resolvable:$true] %s471
          %474 = dma.hbm_to_vmem [thread:$0]  %s470, 64, %s472, [#allocation26]
        $region52: #{tpu_custom_call.1} parent=11 // pred_fallthru
          _
      $region12: #{tpu_custom_call.1} parent=5 // pred_fallthru
        _
      %p475 = scmp.lt.s32.totalorder %s28, 3
      // Predicated region
      $region53: #{tpu_custom_call.1} parent=5 // pred_check
        %p476 = pneg %p475
      $region54: #{tpu_custom_call.1} parent=5 // pred_check_branch
        %478 = sbr.rel (%p476) target = $region56
      $region55: #{tpu_custom_call.1} parent=5 // pred_region
        // Predicated region
        $region57: #{tpu_custom_call.1} parent=55 // pred_check
          %p479 = pneg %p258
        $region58: #{tpu_custom_call.1} parent=55 // pred_check_branch
          %481 = sbr.rel (%p479) target = $region60
        $region59: #{tpu_custom_call.1} parent=55 // pred_region
          %s482 = sand.u32 %s28, 1
          %s483 = scalar_lea.sflag [#allocation10], %s482
          %s484 = sand.u32 %s248, 1
          %s485 = smul.addr %s484, 1280
          %s486 = scalar_lea.vmem [#allocation27], %s485
          %s487 = smul.u32 5, %s28
          %489 = vsyncadd %s483, 0
          %s490 = smul.addr %s487, 4
          %s491 = scalar_lea.hbm %s10, %s490
          %s492 = sshll.u32 %s491, 4
          %s493 = int_to_ptr.hbm [resolvable:$true] %s492
          %s494 = sshll.u32 %s486, 4
          %s495 = int_to_ptr.vmem [resolvable:$true] %s494
          %500 = dma.hbm_to_vmem [thread:$0]  %s493, 20480, %s495, %s483, 960, 320, 20
        $region60: #{tpu_custom_call.1} parent=55 // pred_fallthru
          _
        // Predicated region
        $region61: #{tpu_custom_call.1} parent=55 // pred_check
          %p501 = pneg %p284
        $region62: #{tpu_custom_call.1} parent=55 // pred_check_branch
          %503 = sbr.rel (%p501) target = $region64
        $region63: #{tpu_custom_call.1} parent=55 // pred_region
          %s504 = sand.u32 %s28, 1
          %s505 = scalar_lea.sflag [#allocation10], %s504
          %s506 = sand.u32 %s274, 1
          %s507 = smul.addr %s506, 1280
          %s508 = scalar_lea.vmem [#allocation28], %s507
          %s509 = smul.u32 5, %s28
          %511 = vsyncadd %s505, 0
          %s512 = smul.addr %s509, 4
          %s513 = scalar_lea.hbm %s11, %s512
          %s514 = sshll.u32 %s513, 4
          %s515 = int_to_ptr.hbm [resolvable:$true] %s514
          %s516 = sshll.u32 %s508, 4
          %s517 = int_to_ptr.vmem [resolvable:$true] %s516
          %522 = dma.hbm_to_vmem [thread:$0]  %s515, 20480, %s517, %s505, 960, 320, 20
        $region64: #{tpu_custom_call.1} parent=55 // pred_fallthru
          _
      $region56: #{tpu_custom_call.1} parent=5 // pred_fallthru
        _
      %p523 = scmp.le.s32.totalorder 1, %s28
      %p524 = scmp.lt.s32.totalorder %s28, 4
      %p525 = pnand %p523, %p524
      %p526 = pneg %p525
      // Predicated region
      $region65: #{tpu_custom_call.1} parent=5 // pred_check
        _
      $region66: #{tpu_custom_call.1} parent=5 // pred_check_branch
        %528 = sbr.rel (%p525) target = $region68
      $region67: #{tpu_custom_call.1} parent=5 // pred_region
        %s529 = ssub.s32 %s28, 1
        // Predicated region
        $region69: #{tpu_custom_call.1} parent=67 // pred_check
          %p530 = pneg %p49
        $region70: #{tpu_custom_call.1} parent=67 // pred_check_branch
          %532 = sbr.rel (%p530) target = $region72
        $region71: #{tpu_custom_call.1} parent=67 // pred_region
          %534 = dma.done [#allocation10], 512
        $region72: #{tpu_custom_call.1} parent=67 // pred_fallthru
          _
        // Predicated region
        $region73: #{tpu_custom_call.1} parent=67 // pred_check
          %p535 = pneg %p70
        $region74: #{tpu_custom_call.1} parent=67 // pred_check_branch
          %537 = sbr.rel (%p535) target = $region76
        $region75: #{tpu_custom_call.1} parent=67 // pred_region
          %539 = dma.done [#allocation14], 512
        $region76: #{tpu_custom_call.1} parent=67 // pred_fallthru
          _
        // Predicated region
        $region77: #{tpu_custom_call.1} parent=67 // pred_check
          %p540 = pneg %p91
        $region78: #{tpu_custom_call.1} parent=67 // pred_check_branch
          %542 = sbr.rel (%p540) target = $region80
        $region79: #{tpu_custom_call.1} parent=67 // pred_region
          %544 = dma.done [#allocation14], 512
        $region80: #{tpu_custom_call.1} parent=67 // pred_fallthru
          _
        // Predicated region
        $region81: #{tpu_custom_call.1} parent=67 // pred_check
          %p545 = pneg %p112
        $region82: #{tpu_custom_call.1} parent=67 // pred_check_branch
          %547 = sbr.rel (%p545) target = $region84
        $region83: #{tpu_custom_call.1} parent=67 // pred_region
          %549 = dma.done [#allocation17], 32768
        $region84: #{tpu_custom_call.1} parent=67 // pred_fallthru
          _
        // Predicated region
        $region85: #{tpu_custom_call.1} parent=67 // pred_check
          %p550 = pneg %p133
        $region86: #{tpu_custom_call.1} parent=67 // pred_check_branch
          %552 = sbr.rel (%p550) target = $region88
        $region87: #{tpu_custom_call.1} parent=67 // pred_region
          %554 = dma.done [#allocation17], 32768
        $region88: #{tpu_custom_call.1} parent=67 // pred_fallthru
          _
        // Predicated region
        $region89: #{tpu_custom_call.1} parent=67 // pred_check
          %p555 = pneg %p154
        $region90: #{tpu_custom_call.1} parent=67 // pred_check_branch
          %557 = sbr.rel (%p555) target = $region92
        $region91: #{tpu_custom_call.1} parent=67 // pred_region
          %559 = dma.done [#allocation20], 64
        $region92: #{tpu_custom_call.1} parent=67 // pred_fallthru
          _
        // Predicated region
        $region93: #{tpu_custom_call.1} parent=67 // pred_check
          %p560 = pneg %p175
        $region94: #{tpu_custom_call.1} parent=67 // pred_check_branch
          %562 = sbr.rel (%p560) target = $region96
        $region95: #{tpu_custom_call.1} parent=67 // pred_region
          %564 = dma.done [#allocation20], 16384
        $region96: #{tpu_custom_call.1} parent=67 // pred_fallthru
          _
        // Predicated region
        $region97: #{tpu_custom_call.1} parent=67 // pred_check
          %p565 = pneg %p196
        $region98: #{tpu_custom_call.1} parent=67 // pred_check_branch
          %567 = sbr.rel (%p565) target = $region100
        $region99: #{tpu_custom_call.1} parent=67 // pred_region
          %569 = dma.done [#allocation23], 64
        $region100: #{tpu_custom_call.1} parent=67 // pred_fallthru
          _
        // Predicated region
        $region101: #{tpu_custom_call.1} parent=67 // pred_check
          %p570 = pneg %p217
        $region102: #{tpu_custom_call.1} parent=67 // pred_check_branch
          %572 = sbr.rel (%p570) target = $region104
        $region103: #{tpu_custom_call.1} parent=67 // pred_region
          %574 = dma.done [#allocation23], 16384
        $region104: #{tpu_custom_call.1} parent=67 // pred_fallthru
          _
        // Predicated region
        $region105: #{tpu_custom_call.1} parent=67 // pred_check
          %p575 = pneg %p238
        $region106: #{tpu_custom_call.1} parent=67 // pred_check_branch
          %577 = sbr.rel (%p575) target = $region108
        $region107: #{tpu_custom_call.1} parent=67 // pred_region
          %579 = dma.done [#allocation26], 64
        $region108: #{tpu_custom_call.1} parent=67 // pred_fallthru
          _
        %s580 = sand.u32 %s33, 1
        %s581 = scalar_lea.sflag [#allocation10], %s580
        %s582 = sand.u32 %s251, 1
        %s583 = smul.addr %s582, 1280
        %s584 = scalar_lea.vmem [#allocation27], %s583
        // Predicated region
        $region109: #{tpu_custom_call.1} parent=67 // pred_check
          %p585 = pneg %p264
        $region110: #{tpu_custom_call.1} parent=67 // pred_check_branch
          %587 = sbr.rel (%p585) target = $region112
        $region111: #{tpu_custom_call.1} parent=67 // pred_region
          %589 = dma.done %s581, 20480
        $region112: #{tpu_custom_call.1} parent=67 // pred_fallthru
          _
        %s590 = sand.u32 %s33, 1
        %s591 = scalar_lea.sflag [#allocation10], %s590
        %s592 = sand.u32 %s277, 1
        %s593 = smul.addr %s592, 1280
        %s594 = scalar_lea.vmem [#allocation28], %s593
        // Predicated region
        $region113: #{tpu_custom_call.1} parent=67 // pred_check
          %p595 = pneg %p290
        $region114: #{tpu_custom_call.1} parent=67 // pred_check_branch
          %597 = sbr.rel (%p595) target = $region116
        $region115: #{tpu_custom_call.1} parent=67 // pred_region
          %599 = dma.done %s591, 20480
        $region116: #{tpu_custom_call.1} parent=67 // pred_fallthru
          _
        %p600 = pneg %p49
        %p601 = pneg %p46
        %p602 = pneg %p70
        %p603 = pneg %p67
        %p604 = pneg %p91
        %p605 = pneg %p88
        %p606 = pneg %p112
        %p607 = pneg %p109
        %p608 = pneg %p133
        %p609 = pneg %p130
        %p610 = pneg %p154
        %p611 = pneg %p151
        %p612 = pneg %p175
        %p613 = pneg %p172
        %p614 = pneg %p196
        %p615 = pneg %p193
        %p616 = pneg %p217
        %p617 = pneg %p214
        %p618 = pneg %p238
        %p619 = pneg %p235
        %s620 = sand.u32 %s33, 1
        %s621 = scalar_lea.sflag [#allocation10], %s620
        %s622 = sand.u32 %s251, 1
        %s623 = smul.addr %s622, 1280
        %s624 = scalar_lea.vmem [#allocation27], %s623
        %p625 = pneg %p264
        %p626 = pneg %p261
        %s627 = sand.u32 %s33, 1
        %s628 = scalar_lea.sflag [#allocation10], %s627
        %s629 = sand.u32 %s277, 1
        %s630 = smul.addr %s629, 1280
        %s631 = scalar_lea.vmem [#allocation28], %s630
        %p632 = pneg %p290
        %p633 = pneg %p287
        %p634 = pneg %p311
        %p635 = pneg %p308
        %p636 = pneg %p332
        %p637 = pneg %p329
        %s638 = smul.u32 5, %s33
        %s639 = smul.u32 5, %s33
        %p640 = scmp.eq.s32.totalorder %s33, 0
        // Predicated region
        $region117: #{tpu_custom_call.1} parent=67 // pred_check
          %p641 = pneg %p640
        $region118: #{tpu_custom_call.1} parent=67 // pred_check_branch
          %643 = sbr.rel (%p641) target = $region120
        $region119: #{tpu_custom_call.1} parent=67 // pred_region
          %v644 = vld [vmem:[#allocation9] sm:$0xff]
          %v645 = vld [vmem:[#allocation9 + $0x8] sm:$0xff]
          %v646 = vld [vmem:[#allocation9 + $0x10] sm:$0xff]
          %v647 = vld [vmem:[#allocation9 + $0x18] sm:$0xff]
          %v648 = vld [vmem:[#allocation13] sm:$0xff]
          %v649 = vld [vmem:[#allocation13 + $0x8] sm:$0xff]
          %v650 = vld [vmem:[#allocation13 + $0x10] sm:$0xff]
          %v651 = vld [vmem:[#allocation13 + $0x18] sm:$0xff]
          %v652 = vadd.f32 %v644, %v648
          %v653 = vadd.f32 %v645, %v649
          %v654 = vadd.f32 %v646, %v650
          %v655 = vadd.f32 %v647, %v651
          %v656 = vld [vmem:[#allocation16] sm:$0xff]
          %v657 = vld [vmem:[#allocation16 + $0x8] sm:$0xff]
          %v658 = vld [vmem:[#allocation16 + $0x10] sm:$0xff]
          %v659 = vld [vmem:[#allocation16 + $0x18] sm:$0xff]
          %v660 = vld [vmem:[#allocation16 + $0x20] sm:$0xff]
          %v661 = vld [vmem:[#allocation16 + $0x28] sm:$0xff]
          %v662 = vld [vmem:[#allocation16 + $0x30] sm:$0xff]
          %v663 = vld [vmem:[#allocation16 + $0x38] sm:$0xff]
          %v664 = vld [vmem:[#allocation16 + $0x40] sm:$0xff]
          %v665 = vld [vmem:[#allocation16 + $0x48] sm:$0xff]
          %v666 = vld [vmem:[#allocation16 + $0x50] sm:$0xff]
          %v667 = vld [vmem:[#allocation16 + $0x58] sm:$0xff]
          %v668 = vld [vmem:[#allocation16 + $0x60] sm:$0xff]
          %v669 = vld [vmem:[#allocation16 + $0x68] sm:$0xff]
          %v670 = vld [vmem:[#allocation16 + $0x70] sm:$0xff]
          %v671 = vld [vmem:[#allocation16 + $0x78] sm:$0xff]
          %v672 = vld [vmem:[#allocation16 + $0x80] sm:$0xff]
          %v673 = vld [vmem:[#allocation16 + $0x88] sm:$0xff]
          %v674 = vld [vmem:[#allocation16 + $0x90] sm:$0xff]
          %v675 = vld [vmem:[#allocation16 + $0x98] sm:$0xff]
          %v676 = vld [vmem:[#allocation16 + $0xa0] sm:$0xff]
          %v677 = vld [vmem:[#allocation16 + $0xa8] sm:$0xff]
          %v678 = vld [vmem:[#allocation16 + $0xb0] sm:$0xff]
          %v679 = vld [vmem:[#allocation16 + $0xb8] sm:$0xff]
          %v680 = vld [vmem:[#allocation16 + $0xc0] sm:$0xff]
          %v681 = vld [vmem:[#allocation16 + $0xc8] sm:$0xff]
          %v682 = vld [vmem:[#allocation16 + $0xd0] sm:$0xff]
          %v683 = vld [vmem:[#allocation16 + $0xd8] sm:$0xff]
          %v684 = vld [vmem:[#allocation16 + $0xe0] sm:$0xff]
          %v685 = vld [vmem:[#allocation16 + $0xe8] sm:$0xff]
          %v686 = vld [vmem:[#allocation16 + $0xf0] sm:$0xff]
          %v687 = vld [vmem:[#allocation16 + $0xf8] sm:$0xff]
          %v688 = vld [vmem:[#allocation16 + $0x100] sm:$0xff]
          %v689 = vld [vmem:[#allocation16 + $0x108] sm:$0xff]
          %v690 = vld [vmem:[#allocation16 + $0x110] sm:$0xff]
          %v691 = vld [vmem:[#allocation16 + $0x118] sm:$0xff]
          %v692 = vld [vmem:[#allocation16 + $0x120] sm:$0xff]
          %v693 = vld [vmem:[#allocation16 + $0x128] sm:$0xff]
          %v694 = vld [vmem:[#allocation16 + $0x130] sm:$0xff]
          %v695 = vld [vmem:[#allocation16 + $0x138] sm:$0xff]
          %v696 = vld [vmem:[#allocation16 + $0x140] sm:$0xff]
          %v697 = vld [vmem:[#allocation16 + $0x148] sm:$0xff]
          %v698 = vld [vmem:[#allocation16 + $0x150] sm:$0xff]
          %v699 = vld [vmem:[#allocation16 + $0x158] sm:$0xff]
          %v700 = vld [vmem:[#allocation16 + $0x160] sm:$0xff]
          %v701 = vld [vmem:[#allocation16 + $0x168] sm:$0xff]
          %v702 = vld [vmem:[#allocation16 + $0x170] sm:$0xff]
          %v703 = vld [vmem:[#allocation16 + $0x178] sm:$0xff]
          %v704 = vld [vmem:[#allocation16 + $0x180] sm:$0xff]
          %v705 = vld [vmem:[#allocation16 + $0x188] sm:$0xff]
          %v706 = vld [vmem:[#allocation16 + $0x190] sm:$0xff]
          %v707 = vld [vmem:[#allocation16 + $0x198] sm:$0xff]
          %v708 = vld [vmem:[#allocation16 + $0x1a0] sm:$0xff]
          %v709 = vld [vmem:[#allocation16 + $0x1a8] sm:$0xff]
          %v710 = vld [vmem:[#allocation16 + $0x1b0] sm:$0xff]
          %v711 = vld [vmem:[#allocation16 + $0x1b8] sm:$0xff]
          %v712 = vld [vmem:[#allocation16 + $0x1c0] sm:$0xff]
          %v713 = vld [vmem:[#allocation16 + $0x1c8] sm:$0xff]
          %v714 = vld [vmem:[#allocation16 + $0x1d0] sm:$0xff]
          %v715 = vld [vmem:[#allocation16 + $0x1d8] sm:$0xff]
          %v716 = vld [vmem:[#allocation16 + $0x1e0] sm:$0xff]
          %v717 = vld [vmem:[#allocation16 + $0x1e8] sm:$0xff]
          %v718 = vld [vmem:[#allocation16 + $0x1f0] sm:$0xff]
          %v719 = vld [vmem:[#allocation16 + $0x1f8] sm:$0xff]
          %v720 = vld [vmem:[#allocation16 + $0x200] sm:$0xff]
          %v721 = vld [vmem:[#allocation16 + $0x208] sm:$0xff]
          %v722 = vld [vmem:[#allocation16 + $0x210] sm:$0xff]
          %v723 = vld [vmem:[#allocation16 + $0x218] sm:$0xff]
          %v724 = vld [vmem:[#allocation16 + $0x220] sm:$0xff]
          %v725 = vld [vmem:[#allocation16 + $0x228] sm:$0xff]
          %v726 = vld [vmem:[#allocation16 + $0x230] sm:$0xff]
          %v727 = vld [vmem:[#allocation16 + $0x238] sm:$0xff]
          %v728 = vld [vmem:[#allocation16 + $0x240] sm:$0xff]
          %v729 = vld [vmem:[#allocation16 + $0x248] sm:$0xff]
          %v730 = vld [vmem:[#allocation16 + $0x250] sm:$0xff]
          %v731 = vld [vmem:[#allocation16 + $0x258] sm:$0xff]
          %v732 = vld [vmem:[#allocation16 + $0x260] sm:$0xff]
          %v733 = vld [vmem:[#allocation16 + $0x268] sm:$0xff]
          %v734 = vld [vmem:[#allocation16 + $0x270] sm:$0xff]
          %v735 = vld [vmem:[#allocation16 + $0x278] sm:$0xff]
          %v736 = vld [vmem:[#allocation16 + $0x280] sm:$0xff]
          %v737 = vld [vmem:[#allocation16 + $0x288] sm:$0xff]
          %v738 = vld [vmem:[#allocation16 + $0x290] sm:$0xff]
          %v739 = vld [vmem:[#allocation16 + $0x298] sm:$0xff]
          %v740 = vld [vmem:[#allocation16 + $0x2a0] sm:$0xff]
          %v741 = vld [vmem:[#allocation16 + $0x2a8] sm:$0xff]
          %v742 = vld [vmem:[#allocation16 + $0x2b0] sm:$0xff]
          %v743 = vld [vmem:[#allocation16 + $0x2b8] sm:$0xff]
          %v744 = vld [vmem:[#allocation16 + $0x2c0] sm:$0xff]
          %v745 = vld [vmem:[#allocation16 + $0x2c8] sm:$0xff]
          %v746 = vld [vmem:[#allocation16 + $0x2d0] sm:$0xff]
          %v747 = vld [vmem:[#allocation16 + $0x2d8] sm:$0xff]
          %v748 = vld [vmem:[#allocation16 + $0x2e0] sm:$0xff]
          %v749 = vld [vmem:[#allocation16 + $0x2e8] sm:$0xff]
          %v750 = vld [vmem:[#allocation16 + $0x2f0] sm:$0xff]
          %v751 = vld [vmem:[#allocation16 + $0x2f8] sm:$0xff]
          %v752 = vld [vmem:[#allocation16 + $0x300] sm:$0xff]
          %v753 = vld [vmem:[#allocation16 + $0x308] sm:$0xff]
          %v754 = vld [vmem:[#allocation16 + $0x310] sm:$0xff]
          %v755 = vld [vmem:[#allocation16 + $0x318] sm:$0xff]
          %v756 = vld [vmem:[#allocation16 + $0x320] sm:$0xff]
          %v757 = vld [vmem:[#allocation16 + $0x328] sm:$0xff]
          %v758 = vld [vmem:[#allocation16 + $0x330] sm:$0xff]
          %v759 = vld [vmem:[#allocation16 + $0x338] sm:$0xff]
          %v760 = vld [vmem:[#allocation16 + $0x340] sm:$0xff]
          %v761 = vld [vmem:[#allocation16 + $0x348] sm:$0xff]
          %v762 = vld [vmem:[#allocation16 + $0x350] sm:$0xff]
          %v763 = vld [vmem:[#allocation16 + $0x358] sm:$0xff]
          %v764 = vld [vmem:[#allocation16 + $0x360] sm:$0xff]
          %v765 = vld [vmem:[#allocation16 + $0x368] sm:$0xff]
          %v766 = vld [vmem:[#allocation16 + $0x370] sm:$0xff]
          %v767 = vld [vmem:[#allocation16 + $0x378] sm:$0xff]
          %v768 = vld [vmem:[#allocation16 + $0x380] sm:$0xff]
          %v769 = vld [vmem:[#allocation16 + $0x388] sm:$0xff]
          %v770 = vld [vmem:[#allocation16 + $0x390] sm:$0xff]
          %v771 = vld [vmem:[#allocation16 + $0x398] sm:$0xff]
          %v772 = vld [vmem:[#allocation16 + $0x3a0] sm:$0xff]
          %v773 = vld [vmem:[#allocation16 + $0x3a8] sm:$0xff]
          %v774 = vld [vmem:[#allocation16 + $0x3b0] sm:$0xff]
          %v775 = vld [vmem:[#allocation16 + $0x3b8] sm:$0xff]
          %v776 = vld [vmem:[#allocation16 + $0x3c0] sm:$0xff]
          %v777 = vld [vmem:[#allocation16 + $0x3c8] sm:$0xff]
          %v778 = vld [vmem:[#allocation16 + $0x3d0] sm:$0xff]
          %v779 = vld [vmem:[#allocation16 + $0x3d8] sm:$0xff]
          %v780 = vld [vmem:[#allocation16 + $0x3e0] sm:$0xff]
          %v781 = vld [vmem:[#allocation16 + $0x3e8] sm:$0xff]
          %v782 = vld [vmem:[#allocation16 + $0x3f0] sm:$0xff]
          %v783 = vld [vmem:[#allocation16 + $0x3f8] sm:$0xff]
          %v784 = vld [vmem:[#allocation16 + $0x400] sm:$0xff]
          %v785 = vld [vmem:[#allocation16 + $0x408] sm:$0xff]
          %v786 = vld [vmem:[#allocation16 + $0x410] sm:$0xff]
          %v787 = vld [vmem:[#allocation16 + $0x418] sm:$0xff]
          %v788 = vld [vmem:[#allocation16 + $0x420] sm:$0xff]
          %v789 = vld [vmem:[#allocation16 + $0x428] sm:$0xff]
          %v790 = vld [vmem:[#allocation16 + $0x430] sm:$0xff]
          %v791 = vld [vmem:[#allocation16 + $0x438] sm:$0xff]
          %v792 = vld [vmem:[#allocation16 + $0x440] sm:$0xff]
          %v793 = vld [vmem:[#allocation16 + $0x448] sm:$0xff]
          %v794 = vld [vmem:[#allocation16 + $0x450] sm:$0xff]
          %v795 = vld [vmem:[#allocation16 + $0x458] sm:$0xff]
          %v796 = vld [vmem:[#allocation16 + $0x460] sm:$0xff]
          %v797 = vld [vmem:[#allocation16 + $0x468] sm:$0xff]
          %v798 = vld [vmem:[#allocation16 + $0x470] sm:$0xff]
          %v799 = vld [vmem:[#allocation16 + $0x478] sm:$0xff]
          %v800 = vld [vmem:[#allocation16 + $0x480] sm:$0xff]
          %v801 = vld [vmem:[#allocation16 + $0x488] sm:$0xff]
          %v802 = vld [vmem:[#allocation16 + $0x490] sm:$0xff]
          %v803 = vld [vmem:[#allocation16 + $0x498] sm:$0xff]
          %v804 = vld [vmem:[#allocation16 + $0x4a0] sm:$0xff]
          %v805 = vld [vmem:[#allocation16 + $0x4a8] sm:$0xff]
          %v806 = vld [vmem:[#allocation16 + $0x4b0] sm:$0xff]
          %v807 = vld [vmem:[#allocation16 + $0x4b8] sm:$0xff]
          %v808 = vld [vmem:[#allocation16 + $0x4c0] sm:$0xff]
          %v809 = vld [vmem:[#allocation16 + $0x4c8] sm:$0xff]
          %v810 = vld [vmem:[#allocation16 + $0x4d0] sm:$0xff]
          %v811 = vld [vmem:[#allocation16 + $0x4d8] sm:$0xff]
          %v812 = vld [vmem:[#allocation16 + $0x4e0] sm:$0xff]
          %v813 = vld [vmem:[#allocation16 + $0x4e8] sm:$0xff]
          %v814 = vld [vmem:[#allocation16 + $0x4f0] sm:$0xff]
          %v815 = vld [vmem:[#allocation16 + $0x4f8] sm:$0xff]
          %v816 = vld [vmem:[#allocation16 + $0x500] sm:$0xff]
          %v817 = vld [vmem:[#allocation16 + $0x508] sm:$0xff]
          %v818 = vld [vmem:[#allocation16 + $0x510] sm:$0xff]
          %v819 = vld [vmem:[#allocation16 + $0x518] sm:$0xff]
          %v820 = vld [vmem:[#allocation16 + $0x520] sm:$0xff]
          %v821 = vld [vmem:[#allocation16 + $0x528] sm:$0xff]
          %v822 = vld [vmem:[#allocation16 + $0x530] sm:$0xff]
          %v823 = vld [vmem:[#allocation16 + $0x538] sm:$0xff]
          %v824 = vld [vmem:[#allocation16 + $0x540] sm:$0xff]
          %v825 = vld [vmem:[#allocation16 + $0x548] sm:$0xff]
          %v826 = vld [vmem:[#allocation16 + $0x550] sm:$0xff]
          %v827 = vld [vmem:[#allocation16 + $0x558] sm:$0xff]
          %v828 = vld [vmem:[#allocation16 + $0x560] sm:$0xff]
          %v829 = vld [vmem:[#allocation16 + $0x568] sm:$0xff]
          %v830 = vld [vmem:[#allocation16 + $0x570] sm:$0xff]
          %v831 = vld [vmem:[#allocation16 + $0x578] sm:$0xff]
          %v832 = vld [vmem:[#allocation16 + $0x580] sm:$0xff]
          %v833 = vld [vmem:[#allocation16 + $0x588] sm:$0xff]
          %v834 = vld [vmem:[#allocation16 + $0x590] sm:$0xff]
          %v835 = vld [vmem:[#allocation16 + $0x598] sm:$0xff]
          %v836 = vld [vmem:[#allocation16 + $0x5a0] sm:$0xff]
          %v837 = vld [vmem:[#allocation16 + $0x5a8] sm:$0xff]
          %v838 = vld [vmem:[#allocation16 + $0x5b0] sm:$0xff]
          %v839 = vld [vmem:[#allocation16 + $0x5b8] sm:$0xff]
          %v840 = vld [vmem:[#allocation16 + $0x5c0] sm:$0xff]
          %v841 = vld [vmem:[#allocation16 + $0x5c8] sm:$0xff]
          %v842 = vld [vmem:[#allocation16 + $0x5d0] sm:$0xff]
          %v843 = vld [vmem:[#allocation16 + $0x5d8] sm:$0xff]
          %v844 = vld [vmem:[#allocation16 + $0x5e0] sm:$0xff]
          %v845 = vld [vmem:[#allocation16 + $0x5e8] sm:$0xff]
          %v846 = vld [vmem:[#allocation16 + $0x5f0] sm:$0xff]
          %v847 = vld [vmem:[#allocation16 + $0x5f8] sm:$0xff]
          %v848 = vld [vmem:[#allocation16 + $0x600] sm:$0xff]
          %v849 = vld [vmem:[#allocation16 + $0x608] sm:$0xff]
          %v850 = vld [vmem:[#allocation16 + $0x610] sm:$0xff]
          %v851 = vld [vmem:[#allocation16 + $0x618] sm:$0xff]
          %v852 = vld [vmem:[#allocation16 + $0x620] sm:$0xff]
          %v853 = vld [vmem:[#allocation16 + $0x628] sm:$0xff]
          %v854 = vld [vmem:[#allocation16 + $0x630] sm:$0xff]
          %v855 = vld [vmem:[#allocation16 + $0x638] sm:$0xff]
          %v856 = vld [vmem:[#allocation16 + $0x640] sm:$0xff]
          %v857 = vld [vmem:[#allocation16 + $0x648] sm:$0xff]
          %v858 = vld [vmem:[#allocation16 + $0x650] sm:$0xff]
          %v859 = vld [vmem:[#allocation16 + $0x658] sm:$0xff]
          %v860 = vld [vmem:[#allocation16 + $0x660] sm:$0xff]
          %v861 = vld [vmem:[#allocation16 + $0x668] sm:$0xff]
          %v862 = vld [vmem:[#allocation16 + $0x670] sm:$0xff]
          %v863 = vld [vmem:[#allocation16 + $0x678] sm:$0xff]
          %v864 = vld [vmem:[#allocation16 + $0x680] sm:$0xff]
          %v865 = vld [vmem:[#allocation16 + $0x688] sm:$0xff]
          %v866 = vld [vmem:[#allocation16 + $0x690] sm:$0xff]
          %v867 = vld [vmem:[#allocation16 + $0x698] sm:$0xff]
          %v868 = vld [vmem:[#allocation16 + $0x6a0] sm:$0xff]
          %v869 = vld [vmem:[#allocation16 + $0x6a8] sm:$0xff]
          %v870 = vld [vmem:[#allocation16 + $0x6b0] sm:$0xff]
          %v871 = vld [vmem:[#allocation16 + $0x6b8] sm:$0xff]
          %v872 = vld [vmem:[#allocation16 + $0x6c0] sm:$0xff]
          %v873 = vld [vmem:[#allocation16 + $0x6c8] sm:$0xff]
          %v874 = vld [vmem:[#allocation16 + $0x6d0] sm:$0xff]
          %v875 = vld [vmem:[#allocation16 + $0x6d8] sm:$0xff]
          %v876 = vld [vmem:[#allocation16 + $0x6e0] sm:$0xff]
          %v877 = vld [vmem:[#allocation16 + $0x6e8] sm:$0xff]
          %v878 = vld [vmem:[#allocation16 + $0x6f0] sm:$0xff]
          %v879 = vld [vmem:[#allocation16 + $0x6f8] sm:$0xff]
          %v880 = vld [vmem:[#allocation16 + $0x700] sm:$0xff]
          %v881 = vld [vmem:[#allocation16 + $0x708] sm:$0xff]
          %v882 = vld [vmem:[#allocation16 + $0x710] sm:$0xff]
          %v883 = vld [vmem:[#allocation16 + $0x718] sm:$0xff]
          %v884 = vld [vmem:[#allocation16 + $0x720] sm:$0xff]
          %v885 = vld [vmem:[#allocation16 + $0x728] sm:$0xff]
          %v886 = vld [vmem:[#allocation16 + $0x730] sm:$0xff]
          %v887 = vld [vmem:[#allocation16 + $0x738] sm:$0xff]
          %v888 = vld [vmem:[#allocation16 + $0x740] sm:$0xff]
          %v889 = vld [vmem:[#allocation16 + $0x748] sm:$0xff]
          %v890 = vld [vmem:[#allocation16 + $0x750] sm:$0xff]
          %v891 = vld [vmem:[#allocation16 + $0x758] sm:$0xff]
          %v892 = vld [vmem:[#allocation16 + $0x760] sm:$0xff]
          %v893 = vld [vmem:[#allocation16 + $0x768] sm:$0xff]
          %v894 = vld [vmem:[#allocation16 + $0x770] sm:$0xff]
          %v895 = vld [vmem:[#allocation16 + $0x778] sm:$0xff]
          %v896 = vld [vmem:[#allocation16 + $0x780] sm:$0xff]
          %v897 = vld [vmem:[#allocation16 + $0x788] sm:$0xff]
          %v898 = vld [vmem:[#allocation16 + $0x790] sm:$0xff]
          %v899 = vld [vmem:[#allocation16 + $0x798] sm:$0xff]
          %v900 = vld [vmem:[#allocation16 + $0x7a0] sm:$0xff]
          %v901 = vld [vmem:[#allocation16 + $0x7a8] sm:$0xff]
          %v902 = vld [vmem:[#allocation16 + $0x7b0] sm:$0xff]
          %v903 = vld [vmem:[#allocation16 + $0x7b8] sm:$0xff]
          %v904 = vld [vmem:[#allocation16 + $0x7c0] sm:$0xff]
          %v905 = vld [vmem:[#allocation16 + $0x7c8] sm:$0xff]
          %v906 = vld [vmem:[#allocation16 + $0x7d0] sm:$0xff]
          %v907 = vld [vmem:[#allocation16 + $0x7d8] sm:$0xff]
          %v908 = vld [vmem:[#allocation16 + $0x7e0] sm:$0xff]
          %v909 = vld [vmem:[#allocation16 + $0x7e8] sm:$0xff]
          %v910 = vld [vmem:[#allocation16 + $0x7f0] sm:$0xff]
          %v911 = vld [vmem:[#allocation16 + $0x7f8] sm:$0xff]
          %v912 = vld [vmem:[#allocation18] sm:$0xff]
          %v913 = vld [vmem:[#allocation18 + $0x8] sm:$0xff]
          %v914 = vld [vmem:[#allocation18 + $0x10] sm:$0xff]
          %v915 = vld [vmem:[#allocation18 + $0x18] sm:$0xff]
          %v916 = vld [vmem:[#allocation18 + $0x20] sm:$0xff]
          %v917 = vld [vmem:[#allocation18 + $0x28] sm:$0xff]
          %v918 = vld [vmem:[#allocation18 + $0x30] sm:$0xff]
          %v919 = vld [vmem:[#allocation18 + $0x38] sm:$0xff]
          %v920 = vld [vmem:[#allocation18 + $0x40] sm:$0xff]
          %v921 = vld [vmem:[#allocation18 + $0x48] sm:$0xff]
          %v922 = vld [vmem:[#allocation18 + $0x50] sm:$0xff]
          %v923 = vld [vmem:[#allocation18 + $0x58] sm:$0xff]
          %v924 = vld [vmem:[#allocation18 + $0x60] sm:$0xff]
          %v925 = vld [vmem:[#allocation18 + $0x68] sm:$0xff]
          %v926 = vld [vmem:[#allocation18 + $0x70] sm:$0xff]
          %v927 = vld [vmem:[#allocation18 + $0x78] sm:$0xff]
          %v928 = vld [vmem:[#allocation18 + $0x80] sm:$0xff]
          %v929 = vld [vmem:[#allocation18 + $0x88] sm:$0xff]
          %v930 = vld [vmem:[#allocation18 + $0x90] sm:$0xff]
          %v931 = vld [vmem:[#allocation18 + $0x98] sm:$0xff]
          %v932 = vld [vmem:[#allocation18 + $0xa0] sm:$0xff]
          %v933 = vld [vmem:[#allocation18 + $0xa8] sm:$0xff]
          %v934 = vld [vmem:[#allocation18 + $0xb0] sm:$0xff]
          %v935 = vld [vmem:[#allocation18 + $0xb8] sm:$0xff]
          %v936 = vld [vmem:[#allocation18 + $0xc0] sm:$0xff]
          %v937 = vld [vmem:[#allocation18 + $0xc8] sm:$0xff]
          %v938 = vld [vmem:[#allocation18 + $0xd0] sm:$0xff]
          %v939 = vld [vmem:[#allocation18 + $0xd8] sm:$0xff]
          %v940 = vld [vmem:[#allocation18 + $0xe0] sm:$0xff]
          %v941 = vld [vmem:[#allocation18 + $0xe8] sm:$0xff]
          %v942 = vld [vmem:[#allocation18 + $0xf0] sm:$0xff]
          %v943 = vld [vmem:[#allocation18 + $0xf8] sm:$0xff]
          %v944 = vld [vmem:[#allocation18 + $0x100] sm:$0xff]
          %v945 = vld [vmem:[#allocation18 + $0x108] sm:$0xff]
          %v946 = vld [vmem:[#allocation18 + $0x110] sm:$0xff]
          %v947 = vld [vmem:[#allocation18 + $0x118] sm:$0xff]
          %v948 = vld [vmem:[#allocation18 + $0x120] sm:$0xff]
          %v949 = vld [vmem:[#allocation18 + $0x128] sm:$0xff]
          %v950 = vld [vmem:[#allocation18 + $0x130] sm:$0xff]
          %v951 = vld [vmem:[#allocation18 + $0x138] sm:$0xff]
          %v952 = vld [vmem:[#allocation18 + $0x140] sm:$0xff]
          %v953 = vld [vmem:[#allocation18 + $0x148] sm:$0xff]
          %v954 = vld [vmem:[#allocation18 + $0x150] sm:$0xff]
          %v955 = vld [vmem:[#allocation18 + $0x158] sm:$0xff]
          %v956 = vld [vmem:[#allocation18 + $0x160] sm:$0xff]
          %v957 = vld [vmem:[#allocation18 + $0x168] sm:$0xff]
          %v958 = vld [vmem:[#allocation18 + $0x170] sm:$0xff]
          %v959 = vld [vmem:[#allocation18 + $0x178] sm:$0xff]
          %v960 = vld [vmem:[#allocation18 + $0x180] sm:$0xff]
          %v961 = vld [vmem:[#allocation18 + $0x188] sm:$0xff]
          %v962 = vld [vmem:[#allocation18 + $0x190] sm:$0xff]
          %v963 = vld [vmem:[#allocation18 + $0x198] sm:$0xff]
          %v964 = vld [vmem:[#allocation18 + $0x1a0] sm:$0xff]
          %v965 = vld [vmem:[#allocation18 + $0x1a8] sm:$0xff]
          %v966 = vld [vmem:[#allocation18 + $0x1b0] sm:$0xff]
          %v967 = vld [vmem:[#allocation18 + $0x1b8] sm:$0xff]
          %v968 = vld [vmem:[#allocation18 + $0x1c0] sm:$0xff]
          %v969 = vld [vmem:[#allocation18 + $0x1c8] sm:$0xff]
          %v970 = vld [vmem:[#allocation18 + $0x1d0] sm:$0xff]
          %v971 = vld [vmem:[#allocation18 + $0x1d8] sm:$0xff]
          %v972 = vld [vmem:[#allocation18 + $0x1e0] sm:$0xff]
          %v973 = vld [vmem:[#allocation18 + $0x1e8] sm:$0xff]
          %v974 = vld [vmem:[#allocation18 + $0x1f0] sm:$0xff]
          %v975 = vld [vmem:[#allocation18 + $0x1f8] sm:$0xff]
          %v976 = vld [vmem:[#allocation18 + $0x200] sm:$0xff]
          %v977 = vld [vmem:[#allocation18 + $0x208] sm:$0xff]
          %v978 = vld [vmem:[#allocation18 + $0x210] sm:$0xff]
          %v979 = vld [vmem:[#allocation18 + $0x218] sm:$0xff]
          %v980 = vld [vmem:[#allocation18 + $0x220] sm:$0xff]
          %v981 = vld [vmem:[#allocation18 + $0x228] sm:$0xff]
          %v982 = vld [vmem:[#allocation18 + $0x230] sm:$0xff]
          %v983 = vld [vmem:[#allocation18 + $0x238] sm:$0xff]
          %v984 = vld [vmem:[#allocation18 + $0x240] sm:$0xff]
          %v985 = vld [vmem:[#allocation18 + $0x248] sm:$0xff]
          %v986 = vld [vmem:[#allocation18 + $0x250] sm:$0xff]
          %v987 = vld [vmem:[#allocation18 + $0x258] sm:$0xff]
          %v988 = vld [vmem:[#allocation18 + $0x260] sm:$0xff]
          %v989 = vld [vmem:[#allocation18 + $0x268] sm:$0xff]
          %v990 = vld [vmem:[#allocation18 + $0x270] sm:$0xff]
          %v991 = vld [vmem:[#allocation18 + $0x278] sm:$0xff]
          %v992 = vld [vmem:[#allocation18 + $0x280] sm:$0xff]
          %v993 = vld [vmem:[#allocation18 + $0x288] sm:$0xff]
          %v994 = vld [vmem:[#allocation18 + $0x290] sm:$0xff]
          %v995 = vld [vmem:[#allocation18 + $0x298] sm:$0xff]
          %v996 = vld [vmem:[#allocation18 + $0x2a0] sm:$0xff]
          %v997 = vld [vmem:[#allocation18 + $0x2a8] sm:$0xff]
          %v998 = vld [vmem:[#allocation18 + $0x2b0] sm:$0xff]
          %v999 = vld [vmem:[#allocation18 + $0x2b8] sm:$0xff]
          %v1000 = vld [vmem:[#allocation18 + $0x2c0] sm:$0xff]
          %v1001 = vld [vmem:[#allocation18 + $0x2c8] sm:$0xff]
          %v1002 = vld [vmem:[#allocation18 + $0x2d0] sm:$0xff]
          %v1003 = vld [vmem:[#allocation18 + $0x2d8] sm:$0xff]
          %v1004 = vld [vmem:[#allocation18 + $0x2e0] sm:$0xff]
          %v1005 = vld [vmem:[#allocation18 + $0x2e8] sm:$0xff]
          %v1006 = vld [vmem:[#allocation18 + $0x2f0] sm:$0xff]
          %v1007 = vld [vmem:[#allocation18 + $0x2f8] sm:$0xff]
          %v1008 = vld [vmem:[#allocation18 + $0x300] sm:$0xff]
          %v1009 = vld [vmem:[#allocation18 + $0x308] sm:$0xff]
          %v1010 = vld [vmem:[#allocation18 + $0x310] sm:$0xff]
          %v1011 = vld [vmem:[#allocation18 + $0x318] sm:$0xff]
          %v1012 = vld [vmem:[#allocation18 + $0x320] sm:$0xff]
          %v1013 = vld [vmem:[#allocation18 + $0x328] sm:$0xff]
          %v1014 = vld [vmem:[#allocation18 + $0x330] sm:$0xff]
          %v1015 = vld [vmem:[#allocation18 + $0x338] sm:$0xff]
          %v1016 = vld [vmem:[#allocation18 + $0x340] sm:$0xff]
          %v1017 = vld [vmem:[#allocation18 + $0x348] sm:$0xff]
          %v1018 = vld [vmem:[#allocation18 + $0x350] sm:$0xff]
          %v1019 = vld [vmem:[#allocation18 + $0x358] sm:$0xff]
          %v1020 = vld [vmem:[#allocation18 + $0x360] sm:$0xff]
          %v1021 = vld [vmem:[#allocation18 + $0x368] sm:$0xff]
          %v1022 = vld [vmem:[#allocation18 + $0x370] sm:$0xff]
          %v1023 = vld [vmem:[#allocation18 + $0x378] sm:$0xff]
          %v1024 = vld [vmem:[#allocation18 + $0x380] sm:$0xff]
          %v1025 = vld [vmem:[#allocation18 + $0x388] sm:$0xff]
          %v1026 = vld [vmem:[#allocation18 + $0x390] sm:$0xff]
          %v1027 = vld [vmem:[#allocation18 + $0x398] sm:$0xff]
          %v1028 = vld [vmem:[#allocation18 + $0x3a0] sm:$0xff]
          %v1029 = vld [vmem:[#allocation18 + $0x3a8] sm:$0xff]
          %v1030 = vld [vmem:[#allocation18 + $0x3b0] sm:$0xff]
          %v1031 = vld [vmem:[#allocation18 + $0x3b8] sm:$0xff]
          %v1032 = vld [vmem:[#allocation18 + $0x3c0] sm:$0xff]
          %v1033 = vld [vmem:[#allocation18 + $0x3c8] sm:$0xff]
          %v1034 = vld [vmem:[#allocation18 + $0x3d0] sm:$0xff]
          %v1035 = vld [vmem:[#allocation18 + $0x3d8] sm:$0xff]
          %v1036 = vld [vmem:[#allocation18 + $0x3e0] sm:$0xff]
          %v1037 = vld [vmem:[#allocation18 + $0x3e8] sm:$0xff]
          %v1038 = vld [vmem:[#allocation18 + $0x3f0] sm:$0xff]
          %v1039 = vld [vmem:[#allocation18 + $0x3f8] sm:$0xff]
          %v1040 = vld [vmem:[#allocation18 + $0x400] sm:$0xff]
          %v1041 = vld [vmem:[#allocation18 + $0x408] sm:$0xff]
          %v1042 = vld [vmem:[#allocation18 + $0x410] sm:$0xff]
          %v1043 = vld [vmem:[#allocation18 + $0x418] sm:$0xff]
          %v1044 = vld [vmem:[#allocation18 + $0x420] sm:$0xff]
          %v1045 = vld [vmem:[#allocation18 + $0x428] sm:$0xff]
          %v1046 = vld [vmem:[#allocation18 + $0x430] sm:$0xff]
          %v1047 = vld [vmem:[#allocation18 + $0x438] sm:$0xff]
          %v1048 = vld [vmem:[#allocation18 + $0x440] sm:$0xff]
          %v1049 = vld [vmem:[#allocation18 + $0x448] sm:$0xff]
          %v1050 = vld [vmem:[#allocation18 + $0x450] sm:$0xff]
          %v1051 = vld [vmem:[#allocation18 + $0x458] sm:$0xff]
          %v1052 = vld [vmem:[#allocation18 + $0x460] sm:$0xff]
          %v1053 = vld [vmem:[#allocation18 + $0x468] sm:$0xff]
          %v1054 = vld [vmem:[#allocation18 + $0x470] sm:$0xff]
          %v1055 = vld [vmem:[#allocation18 + $0x478] sm:$0xff]
          %v1056 = vld [vmem:[#allocation18 + $0x480] sm:$0xff]
          %v1057 = vld [vmem:[#allocation18 + $0x488] sm:$0xff]
          %v1058 = vld [vmem:[#allocation18 + $0x490] sm:$0xff]
          %v1059 = vld [vmem:[#allocation18 + $0x498] sm:$0xff]
          %v1060 = vld [vmem:[#allocation18 + $0x4a0] sm:$0xff]
          %v1061 = vld [vmem:[#allocation18 + $0x4a8] sm:$0xff]
          %v1062 = vld [vmem:[#allocation18 + $0x4b0] sm:$0xff]
          %v1063 = vld [vmem:[#allocation18 + $0x4b8] sm:$0xff]
          %v1064 = vld [vmem:[#allocation18 + $0x4c0] sm:$0xff]
          %v1065 = vld [vmem:[#allocation18 + $0x4c8] sm:$0xff]
          %v1066 = vld [vmem:[#allocation18 + $0x4d0] sm:$0xff]
          %v1067 = vld [vmem:[#allocation18 + $0x4d8] sm:$0xff]
          %v1068 = vld [vmem:[#allocation18 + $0x4e0] sm:$0xff]
          %v1069 = vld [vmem:[#allocation18 + $0x4e8] sm:$0xff]
          %v1070 = vld [vmem:[#allocation18 + $0x4f0] sm:$0xff]
          %v1071 = vld [vmem:[#allocation18 + $0x4f8] sm:$0xff]
          %v1072 = vld [vmem:[#allocation18 + $0x500] sm:$0xff]
          %v1073 = vld [vmem:[#allocation18 + $0x508] sm:$0xff]
          %v1074 = vld [vmem:[#allocation18 + $0x510] sm:$0xff]
          %v1075 = vld [vmem:[#allocation18 + $0x518] sm:$0xff]
          %v1076 = vld [vmem:[#allocation18 + $0x520] sm:$0xff]
          %v1077 = vld [vmem:[#allocation18 + $0x528] sm:$0xff]
          %v1078 = vld [vmem:[#allocation18 + $0x530] sm:$0xff]
          %v1079 = vld [vmem:[#allocation18 + $0x538] sm:$0xff]
          %v1080 = vld [vmem:[#allocation18 + $0x540] sm:$0xff]
          %v1081 = vld [vmem:[#allocation18 + $0x548] sm:$0xff]
          %v1082 = vld [vmem:[#allocation18 + $0x550] sm:$0xff]
          %v1083 = vld [vmem:[#allocation18 + $0x558] sm:$0xff]
          %v1084 = vld [vmem:[#allocation18 + $0x560] sm:$0xff]
          %v1085 = vld [vmem:[#allocation18 + $0x568] sm:$0xff]
          %v1086 = vld [vmem:[#allocation18 + $0x570] sm:$0xff]
          %v1087 = vld [vmem:[#allocation18 + $0x578] sm:$0xff]
          %v1088 = vld [vmem:[#allocation18 + $0x580] sm:$0xff]
          %v1089 = vld [vmem:[#allocation18 + $0x588] sm:$0xff]
          %v1090 = vld [vmem:[#allocation18 + $0x590] sm:$0xff]
          %v1091 = vld [vmem:[#allocation18 + $0x598] sm:$0xff]
          %v1092 = vld [vmem:[#allocation18 + $0x5a0] sm:$0xff]
          %v1093 = vld [vmem:[#allocation18 + $0x5a8] sm:$0xff]
          %v1094 = vld [vmem:[#allocation18 + $0x5b0] sm:$0xff]
          %v1095 = vld [vmem:[#allocation18 + $0x5b8] sm:$0xff]
          %v1096 = vld [vmem:[#allocation18 + $0x5c0] sm:$0xff]
          %v1097 = vld [vmem:[#allocation18 + $0x5c8] sm:$0xff]
          %v1098 = vld [vmem:[#allocation18 + $0x5d0] sm:$0xff]
          %v1099 = vld [vmem:[#allocation18 + $0x5d8] sm:$0xff]
          %v1100 = vld [vmem:[#allocation18 + $0x5e0] sm:$0xff]
          %v1101 = vld [vmem:[#allocation18 + $0x5e8] sm:$0xff]
          %v1102 = vld [vmem:[#allocation18 + $0x5f0] sm:$0xff]
          %v1103 = vld [vmem:[#allocation18 + $0x5f8] sm:$0xff]
          %v1104 = vld [vmem:[#allocation18 + $0x600] sm:$0xff]
          %v1105 = vld [vmem:[#allocation18 + $0x608] sm:$0xff]
          %v1106 = vld [vmem:[#allocation18 + $0x610] sm:$0xff]
          %v1107 = vld [vmem:[#allocation18 + $0x618] sm:$0xff]
          %v1108 = vld [vmem:[#allocation18 + $0x620] sm:$0xff]
          %v1109 = vld [vmem:[#allocation18 + $0x628] sm:$0xff]
          %v1110 = vld [vmem:[#allocation18 + $0x630] sm:$0xff]
          %v1111 = vld [vmem:[#allocation18 + $0x638] sm:$0xff]
          %v1112 = vld [vmem:[#allocation18 + $0x640] sm:$0xff]
          %v1113 = vld [vmem:[#allocation18 + $0x648] sm:$0xff]
          %v1114 = vld [vmem:[#allocation18 + $0x650] sm:$0xff]
          %v1115 = vld [vmem:[#allocation18 + $0x658] sm:$0xff]
          %v1116 = vld [vmem:[#allocation18 + $0x660] sm:$0xff]
          %v1117 = vld [vmem:[#allocation18 + $0x668] sm:$0xff]
          %v1118 = vld [vmem:[#allocation18 + $0x670] sm:$0xff]
          %v1119 = vld [vmem:[#allocation18 + $0x678] sm:$0xff]
          %v1120 = vld [vmem:[#allocation18 + $0x680] sm:$0xff]
          %v1121 = vld [vmem:[#allocation18 + $0x688] sm:$0xff]
          %v1122 = vld [vmem:[#allocation18 + $0x690] sm:$0xff]
          %v1123 = vld [vmem:[#allocation18 + $0x698] sm:$0xff]
          %v1124 = vld [vmem:[#allocation18 + $0x6a0] sm:$0xff]
          %v1125 = vld [vmem:[#allocation18 + $0x6a8] sm:$0xff]
          %v1126 = vld [vmem:[#allocation18 + $0x6b0] sm:$0xff]
          %v1127 = vld [vmem:[#allocation18 + $0x6b8] sm:$0xff]
          %v1128 = vld [vmem:[#allocation18 + $0x6c0] sm:$0xff]
          %v1129 = vld [vmem:[#allocation18 + $0x6c8] sm:$0xff]
          %v1130 = vld [vmem:[#allocation18 + $0x6d0] sm:$0xff]
          %v1131 = vld [vmem:[#allocation18 + $0x6d8] sm:$0xff]
          %v1132 = vld [vmem:[#allocation18 + $0x6e0] sm:$0xff]
          %v1133 = vld [vmem:[#allocation18 + $0x6e8] sm:$0xff]
          %v1134 = vld [vmem:[#allocation18 + $0x6f0] sm:$0xff]
          %v1135 = vld [vmem:[#allocation18 + $0x6f8] sm:$0xff]
          %v1136 = vld [vmem:[#allocation18 + $0x700] sm:$0xff]
          %v1137 = vld [vmem:[#allocation18 + $0x708] sm:$0xff]
          %v1138 = vld [vmem:[#allocation18 + $0x710] sm:$0xff]
          %v1139 = vld [vmem:[#allocation18 + $0x718] sm:$0xff]
          %v1140 = vld [vmem:[#allocation18 + $0x720] sm:$0xff]
          %v1141 = vld [vmem:[#allocation18 + $0x728] sm:$0xff]
          %v1142 = vld [vmem:[#allocation18 + $0x730] sm:$0xff]
          %v1143 = vld [vmem:[#allocation18 + $0x738] sm:$0xff]
          %v1144 = vld [vmem:[#allocation18 + $0x740] sm:$0xff]
          %v1145 = vld [vmem:[#allocation18 + $0x748] sm:$0xff]
          %v1146 = vld [vmem:[#allocation18 + $0x750] sm:$0xff]
          %v1147 = vld [vmem:[#allocation18 + $0x758] sm:$0xff]
          %v1148 = vld [vmem:[#allocation18 + $0x760] sm:$0xff]
          %v1149 = vld [vmem:[#allocation18 + $0x768] sm:$0xff]
          %v1150 = vld [vmem:[#allocation18 + $0x770] sm:$0xff]
          %v1151 = vld [vmem:[#allocation18 + $0x778] sm:$0xff]
          %v1152 = vld [vmem:[#allocation18 + $0x780] sm:$0xff]
          %v1153 = vld [vmem:[#allocation18 + $0x788] sm:$0xff]
          %v1154 = vld [vmem:[#allocation18 + $0x790] sm:$0xff]
          %v1155 = vld [vmem:[#allocation18 + $0x798] sm:$0xff]
          %v1156 = vld [vmem:[#allocation18 + $0x7a0] sm:$0xff]
          %v1157 = vld [vmem:[#allocation18 + $0x7a8] sm:$0xff]
          %v1158 = vld [vmem:[#allocation18 + $0x7b0] sm:$0xff]
          %v1159 = vld [vmem:[#allocation18 + $0x7b8] sm:$0xff]
          %v1160 = vld [vmem:[#allocation18 + $0x7c0] sm:$0xff]
          %v1161 = vld [vmem:[#allocation18 + $0x7c8] sm:$0xff]
          %v1162 = vld [vmem:[#allocation18 + $0x7d0] sm:$0xff]
          %v1163 = vld [vmem:[#allocation18 + $0x7d8] sm:$0xff]
          %v1164 = vld [vmem:[#allocation18 + $0x7e0] sm:$0xff]
          %v1165 = vld [vmem:[#allocation18 + $0x7e8] sm:$0xff]
          %v1166 = vld [vmem:[#allocation18 + $0x7f0] sm:$0xff]
          %v1167 = vld [vmem:[#allocation18 + $0x7f8] sm:$0xff]
          %1168 = vmatpush.msra.mxu0 %v972
          %1169 = vmatpush.msra.mxu0 %v968
          %1170 = vmatpush.msra.mxu0 %v964
          %1171 = vmatpush.msra.mxu0 %v960
          %1172 = vmatpush.msra.mxu0 %v956
          %1173 = vmatpush.msra.mxu0 %v952
          %1174 = vmatpush.msra.mxu0 %v948
          %1175 = vmatpush.msra.mxu0 %v944
          %1176 = vmatpush.msra.mxu0 %v940
          %1177 = vmatpush.msra.mxu0 %v936
          %1178 = vmatpush.msra.mxu0 %v932
          %1179 = vmatpush.msra.mxu0 %v928
          %1180 = vmatpush.msra.mxu0 %v924
          %1181 = vmatpush.msra.mxu0 %v920
          %1182 = vmatpush.msra.mxu0 %v916
          %1183 = vmatpush.msra.mxu0 %v912
          %1184 = vmatmul.f32.gmra.mxu0 %v648
          %v1185 = vpop.f32.mrf.mxu0
          %v1186 = vadd.f32 0.0, %v1185
          %1187 = vdwg.mxu0
          %1188 = vmatpush.msra.mxu0 %v1036
          %1189 = vmatpush.msra.mxu0 %v1032
          %1190 = vmatpush.msra.mxu0 %v1028
          %1191 = vmatpush.msra.mxu0 %v1024
          %1192 = vmatpush.msra.mxu0 %v1020
          %1193 = vmatpush.msra.mxu0 %v1016
          %1194 = vmatpush.msra.mxu0 %v1012
          %1195 = vmatpush.msra.mxu0 %v1008
          %1196 = vmatpush.msra.mxu0 %v1004
          %1197 = vmatpush.msra.mxu0 %v1000
          %1198 = vmatpush.msra.mxu0 %v996
          %1199 = vmatpush.msra.mxu0 %v992
          %1200 = vmatpush.msra.mxu0 %v988
          %1201 = vmatpush.msra.mxu0 %v984
          %1202 = vmatpush.msra.mxu0 %v980
          %1203 = vmatpush.msra.mxu0 %v976
          %1204 = vmatmul.f32.gmra.mxu0 %v649
          %v1205 = vpop.f32.mrf.mxu0
          %v1206 = vadd.f32 %v1186, %v1205
          %1207 = vdwg.mxu0
          %1208 = vmatpush.msra.mxu0 %v1100
          %1209 = vmatpush.msra.mxu0 %v1096
          %1210 = vmatpush.msra.mxu0 %v1092
          %1211 = vmatpush.msra.mxu0 %v1088
          %1212 = vmatpush.msra.mxu0 %v1084
          %1213 = vmatpush.msra.mxu0 %v1080
          %1214 = vmatpush.msra.mxu0 %v1076
          %1215 = vmatpush.msra.mxu0 %v1072
          %1216 = vmatpush.msra.mxu0 %v1068
          %1217 = vmatpush.msra.mxu0 %v1064
          %1218 = vmatpush.msra.mxu0 %v1060
          %1219 = vmatpush.msra.mxu0 %v1056
          %1220 = vmatpush.msra.mxu0 %v1052
          %1221 = vmatpush.msra.mxu0 %v1048
          %1222 = vmatpush.msra.mxu0 %v1044
          %1223 = vmatpush.msra.mxu0 %v1040
          %1224 = vmatmul.f32.gmra.mxu0 %v650
          %v1225 = vpop.f32.mrf.mxu0
          %v1226 = vadd.f32 %v1206, %v1225
          %1227 = vdwg.mxu0
          %1228 = vmatpush.msra.mxu0 %v1164
          %1229 = vmatpush.msra.mxu0 %v1160
          %1230 = vmatpush.msra.mxu0 %v1156
          %1231 = vmatpush.msra.mxu0 %v1152
          %1232 = vmatpush.msra.mxu0 %v1148
          %1233 = vmatpush.msra.mxu0 %v1144
          %1234 = vmatpush.msra.mxu0 %v1140
          %1235 = vmatpush.msra.mxu0 %v1136
          %1236 = vmatpush.msra.mxu0 %v1132
          %1237 = vmatpush.msra.mxu0 %v1128
          %1238 = vmatpush.msra.mxu0 %v1124
          %1239 = vmatpush.msra.mxu0 %v1120
          %1240 = vmatpush.msra.mxu0 %v1116
          %1241 = vmatpush.msra.mxu0 %v1112
          %1242 = vmatpush.msra.mxu0 %v1108
          %1243 = vmatpush.msra.mxu0 %v1104
          %1244 = vmatmul.f32.gmra.mxu0 %v651
          %v1245 = vpop.f32.mrf.mxu0
          %v1246 = vadd.f32 %v1226, %v1245
          %1247 = vdwg.mxu0
          %1248 = vmatpush.msra.mxu0 %v973
          %1249 = vmatpush.msra.mxu0 %v969
          %1250 = vmatpush.msra.mxu0 %v965
          %1251 = vmatpush.msra.mxu0 %v961
          %1252 = vmatpush.msra.mxu0 %v957
          %1253 = vmatpush.msra.mxu0 %v953
          %1254 = vmatpush.msra.mxu0 %v949
          %1255 = vmatpush.msra.mxu0 %v945
          %1256 = vmatpush.msra.mxu0 %v941
          %1257 = vmatpush.msra.mxu0 %v937
          %1258 = vmatpush.msra.mxu0 %v933
          %1259 = vmatpush.msra.mxu0 %v929
          %1260 = vmatpush.msra.mxu0 %v925
          %1261 = vmatpush.msra.mxu0 %v921
          %1262 = vmatpush.msra.mxu0 %v917
          %1263 = vmatpush.msra.mxu0 %v913
          %1264 = vmatmul.f32.gmra.mxu0 %v648
          %v1265 = vpop.f32.mrf.mxu0
          %v1266 = vadd.f32 0.0, %v1265
          %1267 = vdwg.mxu0
          %1268 = vmatpush.msra.mxu0 %v1037
          %1269 = vmatpush.msra.mxu0 %v1033
          %1270 = vmatpush.msra.mxu0 %v1029
          %1271 = vmatpush.msra.mxu0 %v1025
          %1272 = vmatpush.msra.mxu0 %v1021
          %1273 = vmatpush.msra.mxu0 %v1017
          %1274 = vmatpush.msra.mxu0 %v1013
          %1275 = vmatpush.msra.mxu0 %v1009
          %1276 = vmatpush.msra.mxu0 %v1005
          %1277 = vmatpush.msra.mxu0 %v1001
          %1278 = vmatpush.msra.mxu0 %v997
          %1279 = vmatpush.msra.mxu0 %v993
          %1280 = vmatpush.msra.mxu0 %v989
          %1281 = vmatpush.msra.mxu0 %v985
          %1282 = vmatpush.msra.mxu0 %v981
          %1283 = vmatpush.msra.mxu0 %v977
          %1284 = vmatmul.f32.gmra.mxu0 %v649
          %v1285 = vpop.f32.mrf.mxu0
          %v1286 = vadd.f32 %v1266, %v1285
          %1287 = vdwg.mxu0
          %1288 = vmatpush.msra.mxu0 %v1101
          %1289 = vmatpush.msra.mxu0 %v1097
          %1290 = vmatpush.msra.mxu0 %v1093
          %1291 = vmatpush.msra.mxu0 %v1089
          %1292 = vmatpush.msra.mxu0 %v1085
          %1293 = vmatpush.msra.mxu0 %v1081
          %1294 = vmatpush.msra.mxu0 %v1077
          %1295 = vmatpush.msra.mxu0 %v1073
          %1296 = vmatpush.msra.mxu0 %v1069
          %1297 = vmatpush.msra.mxu0 %v1065
          %1298 = vmatpush.msra.mxu0 %v1061
          %1299 = vmatpush.msra.mxu0 %v1057
          %1300 = vmatpush.msra.mxu0 %v1053
          %1301 = vmatpush.msra.mxu0 %v1049
          %1302 = vmatpush.msra.mxu0 %v1045
          %1303 = vmatpush.msra.mxu0 %v1041
          %1304 = vmatmul.f32.gmra.mxu0 %v650
          %v1305 = vpop.f32.mrf.mxu0
          %v1306 = vadd.f32 %v1286, %v1305
          %1307 = vdwg.mxu0
          %1308 = vmatpush.msra.mxu0 %v1165
          %1309 = vmatpush.msra.mxu0 %v1161
          %1310 = vmatpush.msra.mxu0 %v1157
          %1311 = vmatpush.msra.mxu0 %v1153
          %1312 = vmatpush.msra.mxu0 %v1149
          %1313 = vmatpush.msra.mxu0 %v1145
          %1314 = vmatpush.msra.mxu0 %v1141
          %1315 = vmatpush.msra.mxu0 %v1137
          %1316 = vmatpush.msra.mxu0 %v1133
          %1317 = vmatpush.msra.mxu0 %v1129
          %1318 = vmatpush.msra.mxu0 %v1125
          %1319 = vmatpush.msra.mxu0 %v1121
          %1320 = vmatpush.msra.mxu0 %v1117
          %1321 = vmatpush.msra.mxu0 %v1113
          %1322 = vmatpush.msra.mxu0 %v1109
          %1323 = vmatpush.msra.mxu0 %v1105
          %1324 = vmatmul.f32.gmra.mxu0 %v651
          %v1325 = vpop.f32.mrf.mxu0
          %v1326 = vadd.f32 %v1306, %v1325
          %1327 = vdwg.mxu0
          %1328 = vmatpush.msra.mxu0 %v974
          %1329 = vmatpush.msra.mxu0 %v970
          %1330 = vmatpush.msra.mxu0 %v966
          %1331 = vmatpush.msra.mxu0 %v962
          %1332 = vmatpush.msra.mxu0 %v958
          %1333 = vmatpush.msra.mxu0 %v954
          %1334 = vmatpush.msra.mxu0 %v950
          %1335 = vmatpush.msra.mxu0 %v946
          %1336 = vmatpush.msra.mxu0 %v942
          %1337 = vmatpush.msra.mxu0 %v938
          %1338 = vmatpush.msra.mxu0 %v934
          %1339 = vmatpush.msra.mxu0 %v930
          %1340 = vmatpush.msra.mxu0 %v926
          %1341 = vmatpush.msra.mxu0 %v922
          %1342 = vmatpush.msra.mxu0 %v918
          %1343 = vmatpush.msra.mxu0 %v914
          %1344 = vmatmul.f32.gmra.mxu0 %v648
          %v1345 = vpop.f32.mrf.mxu0
          %v1346 = vadd.f32 0.0, %v1345
          %1347 = vdwg.mxu0
          %1348 = vmatpush.msra.mxu0 %v1038
          %1349 = vmatpush.msra.mxu0 %v1034
          %1350 = vmatpush.msra.mxu0 %v1030
          %1351 = vmatpush.msra.mxu0 %v1026
          %1352 = vmatpush.msra.mxu0 %v1022
          %1353 = vmatpush.msra.mxu0 %v1018
          %1354 = vmatpush.msra.mxu0 %v1014
          %1355 = vmatpush.msra.mxu0 %v1010
          %1356 = vmatpush.msra.mxu0 %v1006
          %1357 = vmatpush.msra.mxu0 %v1002
          %1358 = vmatpush.msra.mxu0 %v998
          %1359 = vmatpush.msra.mxu0 %v994
          %1360 = vmatpush.msra.mxu0 %v990
          %1361 = vmatpush.msra.mxu0 %v986
          %1362 = vmatpush.msra.mxu0 %v982
          %1363 = vmatpush.msra.mxu0 %v978
          %1364 = vmatmul.f32.gmra.mxu0 %v649
          %v1365 = vpop.f32.mrf.mxu0
          %v1366 = vadd.f32 %v1346, %v1365
          %1367 = vdwg.mxu0
          %1368 = vmatpush.msra.mxu0 %v1102
          %1369 = vmatpush.msra.mxu0 %v1098
          %1370 = vmatpush.msra.mxu0 %v1094
          %1371 = vmatpush.msra.mxu0 %v1090
          %1372 = vmatpush.msra.mxu0 %v1086
          %1373 = vmatpush.msra.mxu0 %v1082
          %1374 = vmatpush.msra.mxu0 %v1078
          %1375 = vmatpush.msra.mxu0 %v1074
          %1376 = vmatpush.msra.mxu0 %v1070
          %1377 = vmatpush.msra.mxu0 %v1066
          %1378 = vmatpush.msra.mxu0 %v1062
          %1379 = vmatpush.msra.mxu0 %v1058
          %1380 = vmatpush.msra.mxu0 %v1054
          %1381 = vmatpush.msra.mxu0 %v1050
          %1382 = vmatpush.msra.mxu0 %v1046
          %1383 = vmatpush.msra.mxu0 %v1042
          %1384 = vmatmul.f32.gmra.mxu0 %v650
          %v1385 = vpop.f32.mrf.mxu0
          %v1386 = vadd.f32 %v1366, %v1385
          %1387 = vdwg.mxu0
          %1388 = vmatpush.msra.mxu0 %v1166
          %1389 = vmatpush.msra.mxu0 %v1162
          %1390 = vmatpush.msra.mxu0 %v1158
          %1391 = vmatpush.msra.mxu0 %v1154
          %1392 = vmatpush.msra.mxu0 %v1150
          %1393 = vmatpush.msra.mxu0 %v1146
          %1394 = vmatpush.msra.mxu0 %v1142
          %1395 = vmatpush.msra.mxu0 %v1138
          %1396 = vmatpush.msra.mxu0 %v1134
          %1397 = vmatpush.msra.mxu0 %v1130
          %1398 = vmatpush.msra.mxu0 %v1126
          %1399 = vmatpush.msra.mxu0 %v1122
          %1400 = vmatpush.msra.mxu0 %v1118
          %1401 = vmatpush.msra.mxu0 %v1114
          %1402 = vmatpush.msra.mxu0 %v1110
          %1403 = vmatpush.msra.mxu0 %v1106
          %1404 = vmatmul.f32.gmra.mxu0 %v651
          %v1405 = vpop.f32.mrf.mxu0
          %v1406 = vadd.f32 %v1386, %v1405
          %1407 = vdwg.mxu0
          %1408 = vmatpush.msra.mxu0 %v975
          %1409 = vmatpush.msra.mxu0 %v971
          %1410 = vmatpush.msra.mxu0 %v967
          %1411 = vmatpush.msra.mxu0 %v963
          %1412 = vmatpush.msra.mxu0 %v959
          %1413 = vmatpush.msra.mxu0 %v955
          %1414 = vmatpush.msra.mxu0 %v951
          %1415 = vmatpush.msra.mxu0 %v947
          %1416 = vmatpush.msra.mxu0 %v943
          %1417 = vmatpush.msra.mxu0 %v939
          %1418 = vmatpush.msra.mxu0 %v935
          %1419 = vmatpush.msra.mxu0 %v931
          %1420 = vmatpush.msra.mxu0 %v927
          %1421 = vmatpush.msra.mxu0 %v923
          %1422 = vmatpush.msra.mxu0 %v919
          %1423 = vmatpush.msra.mxu0 %v915
          %1424 = vmatmul.f32.gmra.mxu0 %v648
          %v1425 = vpop.f32.mrf.mxu0
          %v1426 = vadd.f32 0.0, %v1425
          %1427 = vdwg.mxu0
          %1428 = vmatpush.msra.mxu0 %v1039
          %1429 = vmatpush.msra.mxu0 %v1035
          %1430 = vmatpush.msra.mxu0 %v1031
          %1431 = vmatpush.msra.mxu0 %v1027
          %1432 = vmatpush.msra.mxu0 %v1023
          %1433 = vmatpush.msra.mxu0 %v1019
          %1434 = vmatpush.msra.mxu0 %v1015
          %1435 = vmatpush.msra.mxu0 %v1011
          %1436 = vmatpush.msra.mxu0 %v1007
          %1437 = vmatpush.msra.mxu0 %v1003
          %1438 = vmatpush.msra.mxu0 %v999
          %1439 = vmatpush.msra.mxu0 %v995
          %1440 = vmatpush.msra.mxu0 %v991
          %1441 = vmatpush.msra.mxu0 %v987
          %1442 = vmatpush.msra.mxu0 %v983
          %1443 = vmatpush.msra.mxu0 %v979
          %1444 = vmatmul.f32.gmra.mxu0 %v649
          %v1445 = vpop.f32.mrf.mxu0
          %v1446 = vadd.f32 %v1426, %v1445
          %1447 = vdwg.mxu0
          %1448 = vmatpush.msra.mxu0 %v1103
          %1449 = vmatpush.msra.mxu0 %v1099
          %1450 = vmatpush.msra.mxu0 %v1095
          %1451 = vmatpush.msra.mxu0 %v1091
          %1452 = vmatpush.msra.mxu0 %v1087
          %1453 = vmatpush.msra.mxu0 %v1083
          %1454 = vmatpush.msra.mxu0 %v1079
          %1455 = vmatpush.msra.mxu0 %v1075
          %1456 = vmatpush.msra.mxu0 %v1071
          %1457 = vmatpush.msra.mxu0 %v1067
          %1458 = vmatpush.msra.mxu0 %v1063
          %1459 = vmatpush.msra.mxu0 %v1059
          %1460 = vmatpush.msra.mxu0 %v1055
          %1461 = vmatpush.msra.mxu0 %v1051
          %1462 = vmatpush.msra.mxu0 %v1047
          %1463 = vmatpush.msra.mxu0 %v1043
          %1464 = vmatmul.f32.gmra.mxu0 %v650
          %v1465 = vpop.f32.mrf.mxu0
          %v1466 = vadd.f32 %v1446, %v1465
          %1467 = vdwg.mxu0
          %1468 = vmatpush.msra.mxu0 %v1167
          %1469 = vmatpush.msra.mxu0 %v1163
          %1470 = vmatpush.msra.mxu0 %v1159
          %1471 = vmatpush.msra.mxu0 %v1155
          %1472 = vmatpush.msra.mxu0 %v1151
          %1473 = vmatpush.msra.mxu0 %v1147
          %1474 = vmatpush.msra.mxu0 %v1143
          %1475 = vmatpush.msra.mxu0 %v1139
          %1476 = vmatpush.msra.mxu0 %v1135
          %1477 = vmatpush.msra.mxu0 %v1131
          %1478 = vmatpush.msra.mxu0 %v1127
          %1479 = vmatpush.msra.mxu0 %v1123
          %1480 = vmatpush.msra.mxu0 %v1119
          %1481 = vmatpush.msra.mxu0 %v1115
          %1482 = vmatpush.msra.mxu0 %v1111
          %1483 = vmatpush.msra.mxu0 %v1107
          %1484 = vmatmul.f32.gmra.mxu0 %v651
          %v1485 = vpop.f32.mrf.mxu0
          %v1486 = vadd.f32 %v1466, %v1485
          %1487 = vdwg.mxu0
          %1488 = vmatpush.msra.mxu0 %v716
          %1489 = vmatpush.msra.mxu0 %v712
          %1490 = vmatpush.msra.mxu0 %v708
          %1491 = vmatpush.msra.mxu0 %v704
          %1492 = vmatpush.msra.mxu0 %v700
          %1493 = vmatpush.msra.mxu0 %v696
          %1494 = vmatpush.msra.mxu0 %v692
          %1495 = vmatpush.msra.mxu0 %v688
          %1496 = vmatpush.msra.mxu0 %v684
          %1497 = vmatpush.msra.mxu0 %v680
          %1498 = vmatpush.msra.mxu0 %v676
          %1499 = vmatpush.msra.mxu0 %v672
          %1500 = vmatpush.msra.mxu0 %v668
          %1501 = vmatpush.msra.mxu0 %v664
          %1502 = vmatpush.msra.mxu0 %v660
          %1503 = vmatpush.msra.mxu0 %v656
          %1504 = vmatmul.f32.gmra.mxu0 %v644
          %v1505 = vpop.f32.mrf.mxu0
          %v1506 = vadd.f32 %v1246, %v1505
          %1507 = vdwg.mxu0
          %1508 = vmatpush.msra.mxu0 %v780
          %1509 = vmatpush.msra.mxu0 %v776
          %1510 = vmatpush.msra.mxu0 %v772
          %1511 = vmatpush.msra.mxu0 %v768
          %1512 = vmatpush.msra.mxu0 %v764
          %1513 = vmatpush.msra.mxu0 %v760
          %1514 = vmatpush.msra.mxu0 %v756
          %1515 = vmatpush.msra.mxu0 %v752
          %1516 = vmatpush.msra.mxu0 %v748
          %1517 = vmatpush.msra.mxu0 %v744
          %1518 = vmatpush.msra.mxu0 %v740
          %1519 = vmatpush.msra.mxu0 %v736
          %1520 = vmatpush.msra.mxu0 %v732
          %1521 = vmatpush.msra.mxu0 %v728
          %1522 = vmatpush.msra.mxu0 %v724
          %1523 = vmatpush.msra.mxu0 %v720
          %1524 = vmatmul.f32.gmra.mxu0 %v645
          %v1525 = vpop.f32.mrf.mxu0
          %v1526 = vadd.f32 %v1506, %v1525
          %1527 = vdwg.mxu0
          %1528 = vmatpush.msra.mxu0 %v844
          %1529 = vmatpush.msra.mxu0 %v840
          %1530 = vmatpush.msra.mxu0 %v836
          %1531 = vmatpush.msra.mxu0 %v832
          %1532 = vmatpush.msra.mxu0 %v828
          %1533 = vmatpush.msra.mxu0 %v824
          %1534 = vmatpush.msra.mxu0 %v820
          %1535 = vmatpush.msra.mxu0 %v816
          %1536 = vmatpush.msra.mxu0 %v812
          %1537 = vmatpush.msra.mxu0 %v808
          %1538 = vmatpush.msra.mxu0 %v804
          %1539 = vmatpush.msra.mxu0 %v800
          %1540 = vmatpush.msra.mxu0 %v796
          %1541 = vmatpush.msra.mxu0 %v792
          %1542 = vmatpush.msra.mxu0 %v788
          %1543 = vmatpush.msra.mxu0 %v784
          %1544 = vmatmul.f32.gmra.mxu0 %v646
          %v1545 = vpop.f32.mrf.mxu0
          %v1546 = vadd.f32 %v1526, %v1545
          %1547 = vdwg.mxu0
          %1548 = vmatpush.msra.mxu0 %v908
          %1549 = vmatpush.msra.mxu0 %v904
          %1550 = vmatpush.msra.mxu0 %v900
          %1551 = vmatpush.msra.mxu0 %v896
          %1552 = vmatpush.msra.mxu0 %v892
          %1553 = vmatpush.msra.mxu0 %v888
          %1554 = vmatpush.msra.mxu0 %v884
          %1555 = vmatpush.msra.mxu0 %v880
          %1556 = vmatpush.msra.mxu0 %v876
          %1557 = vmatpush.msra.mxu0 %v872
          %1558 = vmatpush.msra.mxu0 %v868
          %1559 = vmatpush.msra.mxu0 %v864
          %1560 = vmatpush.msra.mxu0 %v860
          %1561 = vmatpush.msra.mxu0 %v856
          %1562 = vmatpush.msra.mxu0 %v852
          %1563 = vmatpush.msra.mxu0 %v848
          %1564 = vmatmul.f32.gmra.mxu0 %v647
          %v1565 = vpop.f32.mrf.mxu0
          %v1566 = vadd.f32 %v1546, %v1565
          %1567 = vdwg.mxu0
          %1568 = vmatpush.msra.mxu0 %v717
          %1569 = vmatpush.msra.mxu0 %v713
          %1570 = vmatpush.msra.mxu0 %v709
          %1571 = vmatpush.msra.mxu0 %v705
          %1572 = vmatpush.msra.mxu0 %v701
          %1573 = vmatpush.msra.mxu0 %v697
          %1574 = vmatpush.msra.mxu0 %v693
          %1575 = vmatpush.msra.mxu0 %v689
          %1576 = vmatpush.msra.mxu0 %v685
          %1577 = vmatpush.msra.mxu0 %v681
          %1578 = vmatpush.msra.mxu0 %v677
          %1579 = vmatpush.msra.mxu0 %v673
          %1580 = vmatpush.msra.mxu0 %v669
          %1581 = vmatpush.msra.mxu0 %v665
          %1582 = vmatpush.msra.mxu0 %v661
          %1583 = vmatpush.msra.mxu0 %v657
          %1584 = vmatmul.f32.gmra.mxu0 %v644
          %v1585 = vpop.f32.mrf.mxu0
          %v1586 = vadd.f32 %v1326, %v1585
          %1587 = vdwg.mxu0
          %1588 = vmatpush.msra.mxu0 %v781
          %1589 = vmatpush.msra.mxu0 %v777
          %1590 = vmatpush.msra.mxu0 %v773
          %1591 = vmatpush.msra.mxu0 %v769
          %1592 = vmatpush.msra.mxu0 %v765
          %1593 = vmatpush.msra.mxu0 %v761
          %1594 = vmatpush.msra.mxu0 %v757
          %1595 = vmatpush.msra.mxu0 %v753
          %1596 = vmatpush.msra.mxu0 %v749
          %1597 = vmatpush.msra.mxu0 %v745
          %1598 = vmatpush.msra.mxu0 %v741
          %1599 = vmatpush.msra.mxu0 %v737
          %1600 = vmatpush.msra.mxu0 %v733
          %1601 = vmatpush.msra.mxu0 %v729
          %1602 = vmatpush.msra.mxu0 %v725
          %1603 = vmatpush.msra.mxu0 %v721
          %1604 = vmatmul.f32.gmra.mxu0 %v645
          %v1605 = vpop.f32.mrf.mxu0
          %v1606 = vadd.f32 %v1586, %v1605
          %1607 = vdwg.mxu0
          %1608 = vmatpush.msra.mxu0 %v845
          %1609 = vmatpush.msra.mxu0 %v841
          %1610 = vmatpush.msra.mxu0 %v837
          %1611 = vmatpush.msra.mxu0 %v833
          %1612 = vmatpush.msra.mxu0 %v829
          %1613 = vmatpush.msra.mxu0 %v825
          %1614 = vmatpush.msra.mxu0 %v821
          %1615 = vmatpush.msra.mxu0 %v817
          %1616 = vmatpush.msra.mxu0 %v813
          %1617 = vmatpush.msra.mxu0 %v809
          %1618 = vmatpush.msra.mxu0 %v805
          %1619 = vmatpush.msra.mxu0 %v801
          %1620 = vmatpush.msra.mxu0 %v797
          %1621 = vmatpush.msra.mxu0 %v793
          %1622 = vmatpush.msra.mxu0 %v789
          %1623 = vmatpush.msra.mxu0 %v785
          %1624 = vmatmul.f32.gmra.mxu0 %v646
          %v1625 = vpop.f32.mrf.mxu0
          %v1626 = vadd.f32 %v1606, %v1625
          %1627 = vdwg.mxu0
          %1628 = vmatpush.msra.mxu0 %v909
          %1629 = vmatpush.msra.mxu0 %v905
          %1630 = vmatpush.msra.mxu0 %v901
          %1631 = vmatpush.msra.mxu0 %v897
          %1632 = vmatpush.msra.mxu0 %v893
          %1633 = vmatpush.msra.mxu0 %v889
          %1634 = vmatpush.msra.mxu0 %v885
          %1635 = vmatpush.msra.mxu0 %v881
          %1636 = vmatpush.msra.mxu0 %v877
          %1637 = vmatpush.msra.mxu0 %v873
          %1638 = vmatpush.msra.mxu0 %v869
          %1639 = vmatpush.msra.mxu0 %v865
          %1640 = vmatpush.msra.mxu0 %v861
          %1641 = vmatpush.msra.mxu0 %v857
          %1642 = vmatpush.msra.mxu0 %v853
          %1643 = vmatpush.msra.mxu0 %v849
          %1644 = vmatmul.f32.gmra.mxu0 %v647
          %v1645 = vpop.f32.mrf.mxu0
          %v1646 = vadd.f32 %v1626, %v1645
          %1647 = vdwg.mxu0
          %1648 = vmatpush.msra.mxu0 %v718
          %1649 = vmatpush.msra.mxu0 %v714
          %1650 = vmatpush.msra.mxu0 %v710
          %1651 = vmatpush.msra.mxu0 %v706
          %1652 = vmatpush.msra.mxu0 %v702
          %1653 = vmatpush.msra.mxu0 %v698
          %1654 = vmatpush.msra.mxu0 %v694
          %1655 = vmatpush.msra.mxu0 %v690
          %1656 = vmatpush.msra.mxu0 %v686
          %1657 = vmatpush.msra.mxu0 %v682
          %1658 = vmatpush.msra.mxu0 %v678
          %1659 = vmatpush.msra.mxu0 %v674
          %1660 = vmatpush.msra.mxu0 %v670
          %1661 = vmatpush.msra.mxu0 %v666
          %1662 = vmatpush.msra.mxu0 %v662
          %1663 = vmatpush.msra.mxu0 %v658
          %1664 = vmatmul.f32.gmra.mxu0 %v644
          %v1665 = vpop.f32.mrf.mxu0
          %v1666 = vadd.f32 %v1406, %v1665
          %1667 = vdwg.mxu0
          %1668 = vmatpush.msra.mxu0 %v782
          %1669 = vmatpush.msra.mxu0 %v778
          %1670 = vmatpush.msra.mxu0 %v774
          %1671 = vmatpush.msra.mxu0 %v770
          %1672 = vmatpush.msra.mxu0 %v766
          %1673 = vmatpush.msra.mxu0 %v762
          %1674 = vmatpush.msra.mxu0 %v758
          %1675 = vmatpush.msra.mxu0 %v754
          %1676 = vmatpush.msra.mxu0 %v750
          %1677 = vmatpush.msra.mxu0 %v746
          %1678 = vmatpush.msra.mxu0 %v742
          %1679 = vmatpush.msra.mxu0 %v738
          %1680 = vmatpush.msra.mxu0 %v734
          %1681 = vmatpush.msra.mxu0 %v730
          %1682 = vmatpush.msra.mxu0 %v726
          %1683 = vmatpush.msra.mxu0 %v722
          %1684 = vmatmul.f32.gmra.mxu0 %v645
          %v1685 = vpop.f32.mrf.mxu0
          %v1686 = vadd.f32 %v1666, %v1685
          %1687 = vdwg.mxu0
          %1688 = vmatpush.msra.mxu0 %v846
          %1689 = vmatpush.msra.mxu0 %v842
          %1690 = vmatpush.msra.mxu0 %v838
          %1691 = vmatpush.msra.mxu0 %v834
          %1692 = vmatpush.msra.mxu0 %v830
          %1693 = vmatpush.msra.mxu0 %v826
          %1694 = vmatpush.msra.mxu0 %v822
          %1695 = vmatpush.msra.mxu0 %v818
          %1696 = vmatpush.msra.mxu0 %v814
          %1697 = vmatpush.msra.mxu0 %v810
          %1698 = vmatpush.msra.mxu0 %v806
          %1699 = vmatpush.msra.mxu0 %v802
          %1700 = vmatpush.msra.mxu0 %v798
          %1701 = vmatpush.msra.mxu0 %v794
          %1702 = vmatpush.msra.mxu0 %v790
          %1703 = vmatpush.msra.mxu0 %v786
          %1704 = vmatmul.f32.gmra.mxu0 %v646
          %v1705 = vpop.f32.mrf.mxu0
          %v1706 = vadd.f32 %v1686, %v1705
          %1707 = vdwg.mxu0
          %1708 = vmatpush.msra.mxu0 %v910
          %1709 = vmatpush.msra.mxu0 %v906
          %1710 = vmatpush.msra.mxu0 %v902
          %1711 = vmatpush.msra.mxu0 %v898
          %1712 = vmatpush.msra.mxu0 %v894
          %1713 = vmatpush.msra.mxu0 %v890
          %1714 = vmatpush.msra.mxu0 %v886
          %1715 = vmatpush.msra.mxu0 %v882
          %1716 = vmatpush.msra.mxu0 %v878
          %1717 = vmatpush.msra.mxu0 %v874
          %1718 = vmatpush.msra.mxu0 %v870
          %1719 = vmatpush.msra.mxu0 %v866
          %1720 = vmatpush.msra.mxu0 %v862
          %1721 = vmatpush.msra.mxu0 %v858
          %1722 = vmatpush.msra.mxu0 %v854
          %1723 = vmatpush.msra.mxu0 %v850
          %1724 = vmatmul.f32.gmra.mxu0 %v647
          %v1725 = vpop.f32.mrf.mxu0
          %v1726 = vadd.f32 %v1706, %v1725
          %1727 = vdwg.mxu0
          %1728 = vmatpush.msra.mxu0 %v719
          %1729 = vmatpush.msra.mxu0 %v715
          %1730 = vmatpush.msra.mxu0 %v711
          %1731 = vmatpush.msra.mxu0 %v707
          %1732 = vmatpush.msra.mxu0 %v703
          %1733 = vmatpush.msra.mxu0 %v699
          %1734 = vmatpush.msra.mxu0 %v695
          %1735 = vmatpush.msra.mxu0 %v691
          %1736 = vmatpush.msra.mxu0 %v687
          %1737 = vmatpush.msra.mxu0 %v683
          %1738 = vmatpush.msra.mxu0 %v679
          %1739 = vmatpush.msra.mxu0 %v675
          %1740 = vmatpush.msra.mxu0 %v671
          %1741 = vmatpush.msra.mxu0 %v667
          %1742 = vmatpush.msra.mxu0 %v663
          %1743 = vmatpush.msra.mxu0 %v659
          %1744 = vmatmul.f32.gmra.mxu0 %v644
          %v1745 = vpop.f32.mrf.mxu0
          %v1746 = vadd.f32 %v1486, %v1745
          %1747 = vdwg.mxu0
          %1748 = vmatpush.msra.mxu0 %v783
          %1749 = vmatpush.msra.mxu0 %v779
          %1750 = vmatpush.msra.mxu0 %v775
          %1751 = vmatpush.msra.mxu0 %v771
          %1752 = vmatpush.msra.mxu0 %v767
          %1753 = vmatpush.msra.mxu0 %v763
          %1754 = vmatpush.msra.mxu0 %v759
          %1755 = vmatpush.msra.mxu0 %v755
          %1756 = vmatpush.msra.mxu0 %v751
          %1757 = vmatpush.msra.mxu0 %v747
          %1758 = vmatpush.msra.mxu0 %v743
          %1759 = vmatpush.msra.mxu0 %v739
          %1760 = vmatpush.msra.mxu0 %v735
          %1761 = vmatpush.msra.mxu0 %v731
          %1762 = vmatpush.msra.mxu0 %v727
          %1763 = vmatpush.msra.mxu0 %v723
          %1764 = vmatmul.f32.gmra.mxu0 %v645
          %v1765 = vpop.f32.mrf.mxu0
          %v1766 = vadd.f32 %v1746, %v1765
          %1767 = vdwg.mxu0
          %1768 = vmatpush.msra.mxu0 %v847
          %1769 = vmatpush.msra.mxu0 %v843
          %1770 = vmatpush.msra.mxu0 %v839
          %1771 = vmatpush.msra.mxu0 %v835
          %1772 = vmatpush.msra.mxu0 %v831
          %1773 = vmatpush.msra.mxu0 %v827
          %1774 = vmatpush.msra.mxu0 %v823
          %1775 = vmatpush.msra.mxu0 %v819
          %1776 = vmatpush.msra.mxu0 %v815
          %1777 = vmatpush.msra.mxu0 %v811
          %1778 = vmatpush.msra.mxu0 %v807
          %1779 = vmatpush.msra.mxu0 %v803
          %1780 = vmatpush.msra.mxu0 %v799
          %1781 = vmatpush.msra.mxu0 %v795
          %1782 = vmatpush.msra.mxu0 %v791
          %1783 = vmatpush.msra.mxu0 %v787
          %1784 = vmatmul.f32.gmra.mxu0 %v646
          %v1785 = vpop.f32.mrf.mxu0
          %v1786 = vadd.f32 %v1766, %v1785
          %1787 = vdwg.mxu0
          %1788 = vmatpush.msra.mxu0 %v911
          %1789 = vmatpush.msra.mxu0 %v907
          %1790 = vmatpush.msra.mxu0 %v903
          %1791 = vmatpush.msra.mxu0 %v899
          %1792 = vmatpush.msra.mxu0 %v895
          %1793 = vmatpush.msra.mxu0 %v891
          %1794 = vmatpush.msra.mxu0 %v887
          %1795 = vmatpush.msra.mxu0 %v883
          %1796 = vmatpush.msra.mxu0 %v879
          %1797 = vmatpush.msra.mxu0 %v875
          %1798 = vmatpush.msra.mxu0 %v871
          %1799 = vmatpush.msra.mxu0 %v867
          %1800 = vmatpush.msra.mxu0 %v863
          %1801 = vmatpush.msra.mxu0 %v859
          %1802 = vmatpush.msra.mxu0 %v855
          %1803 = vmatpush.msra.mxu0 %v851
          %1804 = vmatmul.f32.gmra.mxu0 %v647
          %v1805 = vpop.f32.mrf.mxu0
          %v1806 = vadd.f32 %v1786, %v1805
          %1807 = vdwg.mxu0
          %v1808 = vld [vmem:[#allocation19] sm:$0xf]
          %v1810 = vperm.slane %v1808, 0
          %v1811 = vperm.slane %v1808, 1
          %v1812 = vperm.slane %v1808, 2
          %v1813 = vperm.slane %v1808, 3
          %v1818 = vadd.f32 %v1566, %v1810
          %v1819 = vadd.f32 %v1646, %v1811
          %v1820 = vadd.f32 %v1726, %v1812
          %v1821 = vadd.f32 %v1806, %v1813
          %v1822 = vmax.f32 %v1818, 0.0
          %v1823 = vmax.f32 %v1819, 0.0
          %v1824 = vmax.f32 %v1820, 0.0
          %v1825 = vmax.f32 %v1821, 0.0
          %v1826 = vld [vmem:[#allocation21] sm:$0xff]
          %v1827 = vld [vmem:[#allocation21 + $0x8] sm:$0xff]
          %v1828 = vld [vmem:[#allocation21 + $0x10] sm:$0xff]
          %v1829 = vld [vmem:[#allocation21 + $0x18] sm:$0xff]
          %v1830 = vld [vmem:[#allocation21 + $0x20] sm:$0xff]
          %v1831 = vld [vmem:[#allocation21 + $0x28] sm:$0xff]
          %v1832 = vld [vmem:[#allocation21 + $0x30] sm:$0xff]
          %v1833 = vld [vmem:[#allocation21 + $0x38] sm:$0xff]
          %v1834 = vld [vmem:[#allocation21 + $0x40] sm:$0xff]
          %v1835 = vld [vmem:[#allocation21 + $0x48] sm:$0xff]
          %v1836 = vld [vmem:[#allocation21 + $0x50] sm:$0xff]
          %v1837 = vld [vmem:[#allocation21 + $0x58] sm:$0xff]
          %v1838 = vld [vmem:[#allocation21 + $0x60] sm:$0xff]
          %v1839 = vld [vmem:[#allocation21 + $0x68] sm:$0xff]
          %v1840 = vld [vmem:[#allocation21 + $0x70] sm:$0xff]
          %v1841 = vld [vmem:[#allocation21 + $0x78] sm:$0xff]
          %v1842 = vld [vmem:[#allocation21 + $0x80] sm:$0xff]
          %v1843 = vld [vmem:[#allocation21 + $0x88] sm:$0xff]
          %v1844 = vld [vmem:[#allocation21 + $0x90] sm:$0xff]
          %v1845 = vld [vmem:[#allocation21 + $0x98] sm:$0xff]
          %v1846 = vld [vmem:[#allocation21 + $0xa0] sm:$0xff]
          %v1847 = vld [vmem:[#allocation21 + $0xa8] sm:$0xff]
          %v1848 = vld [vmem:[#allocation21 + $0xb0] sm:$0xff]
          %v1849 = vld [vmem:[#allocation21 + $0xb8] sm:$0xff]
          %v1850 = vld [vmem:[#allocation21 + $0xc0] sm:$0xff]
          %v1851 = vld [vmem:[#allocation21 + $0xc8] sm:$0xff]
          %v1852 = vld [vmem:[#allocation21 + $0xd0] sm:$0xff]
          %v1853 = vld [vmem:[#allocation21 + $0xd8] sm:$0xff]
          %v1854 = vld [vmem:[#allocation21 + $0xe0] sm:$0xff]
          %v1855 = vld [vmem:[#allocation21 + $0xe8] sm:$0xff]
          %v1856 = vld [vmem:[#allocation21 + $0xf0] sm:$0xff]
          %v1857 = vld [vmem:[#allocation21 + $0xf8] sm:$0xff]
          %v1858 = vld [vmem:[#allocation21 + $0x100] sm:$0xff]
          %v1859 = vld [vmem:[#allocation21 + $0x108] sm:$0xff]
          %v1860 = vld [vmem:[#allocation21 + $0x110] sm:$0xff]
          %v1861 = vld [vmem:[#allocation21 + $0x118] sm:$0xff]
          %v1862 = vld [vmem:[#allocation21 + $0x120] sm:$0xff]
          %v1863 = vld [vmem:[#allocation21 + $0x128] sm:$0xff]
          %v1864 = vld [vmem:[#allocation21 + $0x130] sm:$0xff]
          %v1865 = vld [vmem:[#allocation21 + $0x138] sm:$0xff]
          %v1866 = vld [vmem:[#allocation21 + $0x140] sm:$0xff]
          %v1867 = vld [vmem:[#allocation21 + $0x148] sm:$0xff]
          %v1868 = vld [vmem:[#allocation21 + $0x150] sm:$0xff]
          %v1869 = vld [vmem:[#allocation21 + $0x158] sm:$0xff]
          %v1870 = vld [vmem:[#allocation21 + $0x160] sm:$0xff]
          %v1871 = vld [vmem:[#allocation21 + $0x168] sm:$0xff]
          %v1872 = vld [vmem:[#allocation21 + $0x170] sm:$0xff]
          %v1873 = vld [vmem:[#allocation21 + $0x178] sm:$0xff]
          %v1874 = vld [vmem:[#allocation21 + $0x180] sm:$0xff]
          %v1875 = vld [vmem:[#allocation21 + $0x188] sm:$0xff]
          %v1876 = vld [vmem:[#allocation21 + $0x190] sm:$0xff]
          %v1877 = vld [vmem:[#allocation21 + $0x198] sm:$0xff]
          %v1878 = vld [vmem:[#allocation21 + $0x1a0] sm:$0xff]
          %v1879 = vld [vmem:[#allocation21 + $0x1a8] sm:$0xff]
          %v1880 = vld [vmem:[#allocation21 + $0x1b0] sm:$0xff]
          %v1881 = vld [vmem:[#allocation21 + $0x1b8] sm:$0xff]
          %v1882 = vld [vmem:[#allocation21 + $0x1c0] sm:$0xff]
          %v1883 = vld [vmem:[#allocation21 + $0x1c8] sm:$0xff]
          %v1884 = vld [vmem:[#allocation21 + $0x1d0] sm:$0xff]
          %v1885 = vld [vmem:[#allocation21 + $0x1d8] sm:$0xff]
          %v1886 = vld [vmem:[#allocation21 + $0x1e0] sm:$0xff]
          %v1887 = vld [vmem:[#allocation21 + $0x1e8] sm:$0xff]
          %v1888 = vld [vmem:[#allocation21 + $0x1f0] sm:$0xff]
          %v1889 = vld [vmem:[#allocation21 + $0x1f8] sm:$0xff]
          %v1890 = vld [vmem:[#allocation21 + $0x200] sm:$0xff]
          %v1891 = vld [vmem:[#allocation21 + $0x208] sm:$0xff]
          %v1892 = vld [vmem:[#allocation21 + $0x210] sm:$0xff]
          %v1893 = vld [vmem:[#allocation21 + $0x218] sm:$0xff]
          %v1894 = vld [vmem:[#allocation21 + $0x220] sm:$0xff]
          %v1895 = vld [vmem:[#allocation21 + $0x228] sm:$0xff]
          %v1896 = vld [vmem:[#allocation21 + $0x230] sm:$0xff]
          %v1897 = vld [vmem:[#allocation21 + $0x238] sm:$0xff]
          %v1898 = vld [vmem:[#allocation21 + $0x240] sm:$0xff]
          %v1899 = vld [vmem:[#allocation21 + $0x248] sm:$0xff]
          %v1900 = vld [vmem:[#allocation21 + $0x250] sm:$0xff]
          %v1901 = vld [vmem:[#allocation21 + $0x258] sm:$0xff]
          %v1902 = vld [vmem:[#allocation21 + $0x260] sm:$0xff]
          %v1903 = vld [vmem:[#allocation21 + $0x268] sm:$0xff]
          %v1904 = vld [vmem:[#allocation21 + $0x270] sm:$0xff]
          %v1905 = vld [vmem:[#allocation21 + $0x278] sm:$0xff]
          %v1906 = vld [vmem:[#allocation21 + $0x280] sm:$0xff]
          %v1907 = vld [vmem:[#allocation21 + $0x288] sm:$0xff]
          %v1908 = vld [vmem:[#allocation21 + $0x290] sm:$0xff]
          %v1909 = vld [vmem:[#allocation21 + $0x298] sm:$0xff]
          %v1910 = vld [vmem:[#allocation21 + $0x2a0] sm:$0xff]
          %v1911 = vld [vmem:[#allocation21 + $0x2a8] sm:$0xff]
          %v1912 = vld [vmem:[#allocation21 + $0x2b0] sm:$0xff]
          %v1913 = vld [vmem:[#allocation21 + $0x2b8] sm:$0xff]
          %v1914 = vld [vmem:[#allocation21 + $0x2c0] sm:$0xff]
          %v1915 = vld [vmem:[#allocation21 + $0x2c8] sm:$0xff]
          %v1916 = vld [vmem:[#allocation21 + $0x2d0] sm:$0xff]
          %v1917 = vld [vmem:[#allocation21 + $0x2d8] sm:$0xff]
          %v1918 = vld [vmem:[#allocation21 + $0x2e0] sm:$0xff]
          %v1919 = vld [vmem:[#allocation21 + $0x2e8] sm:$0xff]
          %v1920 = vld [vmem:[#allocation21 + $0x2f0] sm:$0xff]
          %v1921 = vld [vmem:[#allocation21 + $0x2f8] sm:$0xff]
          %v1922 = vld [vmem:[#allocation21 + $0x300] sm:$0xff]
          %v1923 = vld [vmem:[#allocation21 + $0x308] sm:$0xff]
          %v1924 = vld [vmem:[#allocation21 + $0x310] sm:$0xff]
          %v1925 = vld [vmem:[#allocation21 + $0x318] sm:$0xff]
          %v1926 = vld [vmem:[#allocation21 + $0x320] sm:$0xff]
          %v1927 = vld [vmem:[#allocation21 + $0x328] sm:$0xff]
          %v1928 = vld [vmem:[#allocation21 + $0x330] sm:$0xff]
          %v1929 = vld [vmem:[#allocation21 + $0x338] sm:$0xff]
          %v1930 = vld [vmem:[#allocation21 + $0x340] sm:$0xff]
          %v1931 = vld [vmem:[#allocation21 + $0x348] sm:$0xff]
          %v1932 = vld [vmem:[#allocation21 + $0x350] sm:$0xff]
          %v1933 = vld [vmem:[#allocation21 + $0x358] sm:$0xff]
          %v1934 = vld [vmem:[#allocation21 + $0x360] sm:$0xff]
          %v1935 = vld [vmem:[#allocation21 + $0x368] sm:$0xff]
          %v1936 = vld [vmem:[#allocation21 + $0x370] sm:$0xff]
          %v1937 = vld [vmem:[#allocation21 + $0x378] sm:$0xff]
          %v1938 = vld [vmem:[#allocation21 + $0x380] sm:$0xff]
          %v1939 = vld [vmem:[#allocation21 + $0x388] sm:$0xff]
          %v1940 = vld [vmem:[#allocation21 + $0x390] sm:$0xff]
          %v1941 = vld [vmem:[#allocation21 + $0x398] sm:$0xff]
          %v1942 = vld [vmem:[#allocation21 + $0x3a0] sm:$0xff]
          %v1943 = vld [vmem:[#allocation21 + $0x3a8] sm:$0xff]
          %v1944 = vld [vmem:[#allocation21 + $0x3b0] sm:$0xff]
          %v1945 = vld [vmem:[#allocation21 + $0x3b8] sm:$0xff]
          %v1946 = vld [vmem:[#allocation21 + $0x3c0] sm:$0xff]
          %v1947 = vld [vmem:[#allocation21 + $0x3c8] sm:$0xff]
          %v1948 = vld [vmem:[#allocation21 + $0x3d0] sm:$0xff]
          %v1949 = vld [vmem:[#allocation21 + $0x3d8] sm:$0xff]
          %v1950 = vld [vmem:[#allocation21 + $0x3e0] sm:$0xff]
          %v1951 = vld [vmem:[#allocation21 + $0x3e8] sm:$0xff]
          %v1952 = vld [vmem:[#allocation21 + $0x3f0] sm:$0xff]
          %v1953 = vld [vmem:[#allocation21 + $0x3f8] sm:$0xff]
          %v1954 = vld [vmem:[#allocation22] sm:$0xf]
          %v1956 = vperm.slane %v1954, 0
          %v1957 = vperm.slane %v1954, 1
          %v1958 = vperm.slane %v1954, 2
          %v1959 = vperm.slane %v1954, 3
          %1964 = vmatpush.msra.mxu0 %v1886
          %1965 = vmatpush.msra.mxu0 %v1882
          %1966 = vmatpush.msra.mxu0 %v1878
          %1967 = vmatpush.msra.mxu0 %v1874
          %1968 = vmatpush.msra.mxu0 %v1870
          %1969 = vmatpush.msra.mxu0 %v1866
          %1970 = vmatpush.msra.mxu0 %v1862
          %1971 = vmatpush.msra.mxu0 %v1858
          %1972 = vmatpush.msra.mxu0 %v1854
          %1973 = vmatpush.msra.mxu0 %v1850
          %1974 = vmatpush.msra.mxu0 %v1846
          %1975 = vmatpush.msra.mxu0 %v1842
          %1976 = vmatpush.msra.mxu0 %v1838
          %1977 = vmatpush.msra.mxu0 %v1834
          %1978 = vmatpush.msra.mxu0 %v1830
          %1979 = vmatpush.msra.mxu0 %v1826
          %1980 = vmatmul.f32.gmra.mxu0 %v1822
          %v1981 = vpop.f32.mrf.mxu0
          %v1982 = vadd.f32 %v1956, %v1981
          %1983 = vdwg.mxu0
          %1984 = vmatpush.msra.mxu0 %v1950
          %1985 = vmatpush.msra.mxu0 %v1946
          %1986 = vmatpush.msra.mxu0 %v1942
          %1987 = vmatpush.msra.mxu0 %v1938
          %1988 = vmatpush.msra.mxu0 %v1934
          %1989 = vmatpush.msra.mxu0 %v1930
          %1990 = vmatpush.msra.mxu0 %v1926
          %1991 = vmatpush.msra.mxu0 %v1922
          %1992 = vmatpush.msra.mxu0 %v1918
          %1993 = vmatpush.msra.mxu0 %v1914
          %1994 = vmatpush.msra.mxu0 %v1910
          %1995 = vmatpush.msra.mxu0 %v1906
          %1996 = vmatpush.msra.mxu0 %v1902
          %1997 = vmatpush.msra.mxu0 %v1898
          %1998 = vmatpush.msra.mxu0 %v1894
          %1999 = vmatpush.msra.mxu0 %v1890
          %2000 = vmatmul.f32.gmra.mxu0 %v1823
          %v2001 = vpop.f32.mrf.mxu0
          %v2002 = vadd.f32 %v1982, %v2001
          %2003 = vdwg.mxu0
          %2004 = vmatpush.msra.mxu0 %v1887
          %2005 = vmatpush.msra.mxu0 %v1883
          %2006 = vmatpush.msra.mxu0 %v1879
          %2007 = vmatpush.msra.mxu0 %v1875
          %2008 = vmatpush.msra.mxu0 %v1871
          %2009 = vmatpush.msra.mxu0 %v1867
          %2010 = vmatpush.msra.mxu0 %v1863
          %2011 = vmatpush.msra.mxu0 %v1859
          %2012 = vmatpush.msra.mxu0 %v1855
          %2013 = vmatpush.msra.mxu0 %v1851
          %2014 = vmatpush.msra.mxu0 %v1847
          %2015 = vmatpush.msra.mxu0 %v1843
          %2016 = vmatpush.msra.mxu0 %v1839
          %2017 = vmatpush.msra.mxu0 %v1835
          %2018 = vmatpush.msra.mxu0 %v1831
          %2019 = vmatpush.msra.mxu0 %v1827
          %2020 = vmatmul.f32.gmra.mxu0 %v1822
          %v2021 = vpop.f32.mrf.mxu0
          %v2022 = vadd.f32 %v1957, %v2021
          %2023 = vdwg.mxu0
          %2024 = vmatpush.msra.mxu0 %v1951
          %2025 = vmatpush.msra.mxu0 %v1947
          %2026 = vmatpush.msra.mxu0 %v1943
          %2027 = vmatpush.msra.mxu0 %v1939
          %2028 = vmatpush.msra.mxu0 %v1935
          %2029 = vmatpush.msra.mxu0 %v1931
          %2030 = vmatpush.msra.mxu0 %v1927
          %2031 = vmatpush.msra.mxu0 %v1923
          %2032 = vmatpush.msra.mxu0 %v1919
          %2033 = vmatpush.msra.mxu0 %v1915
          %2034 = vmatpush.msra.mxu0 %v1911
          %2035 = vmatpush.msra.mxu0 %v1907
          %2036 = vmatpush.msra.mxu0 %v1903
          %2037 = vmatpush.msra.mxu0 %v1899
          %2038 = vmatpush.msra.mxu0 %v1895
          %2039 = vmatpush.msra.mxu0 %v1891
          %2040 = vmatmul.f32.gmra.mxu0 %v1823
          %v2041 = vpop.f32.mrf.mxu0
          %v2042 = vadd.f32 %v2022, %v2041
          %2043 = vdwg.mxu0
          %2044 = vmatpush.msra.mxu0 %v1888
          %2045 = vmatpush.msra.mxu0 %v1884
          %2046 = vmatpush.msra.mxu0 %v1880
          %2047 = vmatpush.msra.mxu0 %v1876
          %2048 = vmatpush.msra.mxu0 %v1872
          %2049 = vmatpush.msra.mxu0 %v1868
          %2050 = vmatpush.msra.mxu0 %v1864
          %2051 = vmatpush.msra.mxu0 %v1860
          %2052 = vmatpush.msra.mxu0 %v1856
          %2053 = vmatpush.msra.mxu0 %v1852
          %2054 = vmatpush.msra.mxu0 %v1848
          %2055 = vmatpush.msra.mxu0 %v1844
          %2056 = vmatpush.msra.mxu0 %v1840
          %2057 = vmatpush.msra.mxu0 %v1836
          %2058 = vmatpush.msra.mxu0 %v1832
          %2059 = vmatpush.msra.mxu0 %v1828
          %2060 = vmatmul.f32.gmra.mxu0 %v1822
          %v2061 = vpop.f32.mrf.mxu0
          %v2062 = vadd.f32 %v1958, %v2061
          %2063 = vdwg.mxu0
          %2064 = vmatpush.msra.mxu0 %v1952
          %2065 = vmatpush.msra.mxu0 %v1948
          %2066 = vmatpush.msra.mxu0 %v1944
          %2067 = vmatpush.msra.mxu0 %v1940
          %2068 = vmatpush.msra.mxu0 %v1936
          %2069 = vmatpush.msra.mxu0 %v1932
          %2070 = vmatpush.msra.mxu0 %v1928
          %2071 = vmatpush.msra.mxu0 %v1924
          %2072 = vmatpush.msra.mxu0 %v1920
          %2073 = vmatpush.msra.mxu0 %v1916
          %2074 = vmatpush.msra.mxu0 %v1912
          %2075 = vmatpush.msra.mxu0 %v1908
          %2076 = vmatpush.msra.mxu0 %v1904
          %2077 = vmatpush.msra.mxu0 %v1900
          %2078 = vmatpush.msra.mxu0 %v1896
          %2079 = vmatpush.msra.mxu0 %v1892
          %2080 = vmatmul.f32.gmra.mxu0 %v1823
          %v2081 = vpop.f32.mrf.mxu0
          %v2082 = vadd.f32 %v2062, %v2081
          %2083 = vdwg.mxu0
          %2084 = vmatpush.msra.mxu0 %v1889
          %2085 = vmatpush.msra.mxu0 %v1885
          %2086 = vmatpush.msra.mxu0 %v1881
          %2087 = vmatpush.msra.mxu0 %v1877
          %2088 = vmatpush.msra.mxu0 %v1873
          %2089 = vmatpush.msra.mxu0 %v1869
          %2090 = vmatpush.msra.mxu0 %v1865
          %2091 = vmatpush.msra.mxu0 %v1861
          %2092 = vmatpush.msra.mxu0 %v1857
          %2093 = vmatpush.msra.mxu0 %v1853
          %2094 = vmatpush.msra.mxu0 %v1849
          %2095 = vmatpush.msra.mxu0 %v1845
          %2096 = vmatpush.msra.mxu0 %v1841
          %2097 = vmatpush.msra.mxu0 %v1837
          %2098 = vmatpush.msra.mxu0 %v1833
          %2099 = vmatpush.msra.mxu0 %v1829
          %2100 = vmatmul.f32.gmra.mxu0 %v1822
          %v2101 = vpop.f32.mrf.mxu0
          %v2102 = vadd.f32 %v1959, %v2101
          %2103 = vdwg.mxu0
          %2104 = vmatpush.msra.mxu0 %v1953
          %2105 = vmatpush.msra.mxu0 %v1949
          %2106 = vmatpush.msra.mxu0 %v1945
          %2107 = vmatpush.msra.mxu0 %v1941
          %2108 = vmatpush.msra.mxu0 %v1937
          %2109 = vmatpush.msra.mxu0 %v1933
          %2110 = vmatpush.msra.mxu0 %v1929
          %2111 = vmatpush.msra.mxu0 %v1925
          %2112 = vmatpush.msra.mxu0 %v1921
          %2113 = vmatpush.msra.mxu0 %v1917
          %2114 = vmatpush.msra.mxu0 %v1913
          %2115 = vmatpush.msra.mxu0 %v1909
          %2116 = vmatpush.msra.mxu0 %v1905
          %2117 = vmatpush.msra.mxu0 %v1901
          %2118 = vmatpush.msra.mxu0 %v1897
          %2119 = vmatpush.msra.mxu0 %v1893
          %2120 = vmatmul.f32.gmra.mxu0 %v1823
          %v2121 = vpop.f32.mrf.mxu0
          %v2122 = vadd.f32 %v2102, %v2121
          %2123 = vdwg.mxu0
          %v2124 = vadd.f32 %v2002, %v652
          %v2125 = vadd.f32 %v2042, %v653
          %v2126 = vadd.f32 %v2082, %v654
          %v2127 = vadd.f32 %v2122, %v655
          %v2128 = vld [vmem:[#allocation24] sm:$0xff]
          %v2129 = vld [vmem:[#allocation24 + $0x8] sm:$0xff]
          %v2130 = vld [vmem:[#allocation24 + $0x10] sm:$0xff]
          %v2131 = vld [vmem:[#allocation24 + $0x18] sm:$0xff]
          %v2132 = vld [vmem:[#allocation24 + $0x20] sm:$0xff]
          %v2133 = vld [vmem:[#allocation24 + $0x28] sm:$0xff]
          %v2134 = vld [vmem:[#allocation24 + $0x30] sm:$0xff]
          %v2135 = vld [vmem:[#allocation24 + $0x38] sm:$0xff]
          %v2136 = vld [vmem:[#allocation24 + $0x40] sm:$0xff]
          %v2137 = vld [vmem:[#allocation24 + $0x48] sm:$0xff]
          %v2138 = vld [vmem:[#allocation24 + $0x50] sm:$0xff]
          %v2139 = vld [vmem:[#allocation24 + $0x58] sm:$0xff]
          %v2140 = vld [vmem:[#allocation24 + $0x60] sm:$0xff]
          %v2141 = vld [vmem:[#allocation24 + $0x68] sm:$0xff]
          %v2142 = vld [vmem:[#allocation24 + $0x70] sm:$0xff]
          %v2143 = vld [vmem:[#allocation24 + $0x78] sm:$0xff]
          %v2144 = vld [vmem:[#allocation24 + $0x80] sm:$0xff]
          %v2145 = vld [vmem:[#allocation24 + $0x88] sm:$0xff]
          %v2146 = vld [vmem:[#allocation24 + $0x90] sm:$0xff]
          %v2147 = vld [vmem:[#allocation24 + $0x98] sm:$0xff]
          %v2148 = vld [vmem:[#allocation24 + $0xa0] sm:$0xff]
          %v2149 = vld [vmem:[#allocation24 + $0xa8] sm:$0xff]
          %v2150 = vld [vmem:[#allocation24 + $0xb0] sm:$0xff]
          %v2151 = vld [vmem:[#allocation24 + $0xb8] sm:$0xff]
          %v2152 = vld [vmem:[#allocation24 + $0xc0] sm:$0xff]
          %v2153 = vld [vmem:[#allocation24 + $0xc8] sm:$0xff]
          %v2154 = vld [vmem:[#allocation24 + $0xd0] sm:$0xff]
          %v2155 = vld [vmem:[#allocation24 + $0xd8] sm:$0xff]
          %v2156 = vld [vmem:[#allocation24 + $0xe0] sm:$0xff]
          %v2157 = vld [vmem:[#allocation24 + $0xe8] sm:$0xff]
          %v2158 = vld [vmem:[#allocation24 + $0xf0] sm:$0xff]
          %v2159 = vld [vmem:[#allocation24 + $0xf8] sm:$0xff]
          %v2160 = vld [vmem:[#allocation24 + $0x100] sm:$0xff]
          %v2161 = vld [vmem:[#allocation24 + $0x108] sm:$0xff]
          %v2162 = vld [vmem:[#allocation24 + $0x110] sm:$0xff]
          %v2163 = vld [vmem:[#allocation24 + $0x118] sm:$0xff]
          %v2164 = vld [vmem:[#allocation24 + $0x120] sm:$0xff]
          %v2165 = vld [vmem:[#allocation24 + $0x128] sm:$0xff]
          %v2166 = vld [vmem:[#allocation24 + $0x130] sm:$0xff]
          %v2167 = vld [vmem:[#allocation24 + $0x138] sm:$0xff]
          %v2168 = vld [vmem:[#allocation24 + $0x140] sm:$0xff]
          %v2169 = vld [vmem:[#allocation24 + $0x148] sm:$0xff]
          %v2170 = vld [vmem:[#allocation24 + $0x150] sm:$0xff]
          %v2171 = vld [vmem:[#allocation24 + $0x158] sm:$0xff]
          %v2172 = vld [vmem:[#allocation24 + $0x160] sm:$0xff]
          %v2173 = vld [vmem:[#allocation24 + $0x168] sm:$0xff]
          %v2174 = vld [vmem:[#allocation24 + $0x170] sm:$0xff]
          %v2175 = vld [vmem:[#allocation24 + $0x178] sm:$0xff]
          %v2176 = vld [vmem:[#allocation24 + $0x180] sm:$0xff]
          %v2177 = vld [vmem:[#allocation24 + $0x188] sm:$0xff]
          %v2178 = vld [vmem:[#allocation24 + $0x190] sm:$0xff]
          %v2179 = vld [vmem:[#allocation24 + $0x198] sm:$0xff]
          %v2180 = vld [vmem:[#allocation24 + $0x1a0] sm:$0xff]
          %v2181 = vld [vmem:[#allocation24 + $0x1a8] sm:$0xff]
          %v2182 = vld [vmem:[#allocation24 + $0x1b0] sm:$0xff]
          %v2183 = vld [vmem:[#allocation24 + $0x1b8] sm:$0xff]
          %v2184 = vld [vmem:[#allocation24 + $0x1c0] sm:$0xff]
          %v2185 = vld [vmem:[#allocation24 + $0x1c8] sm:$0xff]
          %v2186 = vld [vmem:[#allocation24 + $0x1d0] sm:$0xff]
          %v2187 = vld [vmem:[#allocation24 + $0x1d8] sm:$0xff]
          %v2188 = vld [vmem:[#allocation24 + $0x1e0] sm:$0xff]
          %v2189 = vld [vmem:[#allocation24 + $0x1e8] sm:$0xff]
          %v2190 = vld [vmem:[#allocation24 + $0x1f0] sm:$0xff]
          %v2191 = vld [vmem:[#allocation24 + $0x1f8] sm:$0xff]
          %v2192 = vld [vmem:[#allocation24 + $0x200] sm:$0xff]
          %v2193 = vld [vmem:[#allocation24 + $0x208] sm:$0xff]
          %v2194 = vld [vmem:[#allocation24 + $0x210] sm:$0xff]
          %v2195 = vld [vmem:[#allocation24 + $0x218] sm:$0xff]
          %v2196 = vld [vmem:[#allocation24 + $0x220] sm:$0xff]
          %v2197 = vld [vmem:[#allocation24 + $0x228] sm:$0xff]
          %v2198 = vld [vmem:[#allocation24 + $0x230] sm:$0xff]
          %v2199 = vld [vmem:[#allocation24 + $0x238] sm:$0xff]
          %v2200 = vld [vmem:[#allocation24 + $0x240] sm:$0xff]
          %v2201 = vld [vmem:[#allocation24 + $0x248] sm:$0xff]
          %v2202 = vld [vmem:[#allocation24 + $0x250] sm:$0xff]
          %v2203 = vld [vmem:[#allocation24 + $0x258] sm:$0xff]
          %v2204 = vld [vmem:[#allocation24 + $0x260] sm:$0xff]
          %v2205 = vld [vmem:[#allocation24 + $0x268] sm:$0xff]
          %v2206 = vld [vmem:[#allocation24 + $0x270] sm:$0xff]
          %v2207 = vld [vmem:[#allocation24 + $0x278] sm:$0xff]
          %v2208 = vld [vmem:[#allocation24 + $0x280] sm:$0xff]
          %v2209 = vld [vmem:[#allocation24 + $0x288] sm:$0xff]
          %v2210 = vld [vmem:[#allocation24 + $0x290] sm:$0xff]
          %v2211 = vld [vmem:[#allocation24 + $0x298] sm:$0xff]
          %v2212 = vld [vmem:[#allocation24 + $0x2a0] sm:$0xff]
          %v2213 = vld [vmem:[#allocation24 + $0x2a8] sm:$0xff]
          %v2214 = vld [vmem:[#allocation24 + $0x2b0] sm:$0xff]
          %v2215 = vld [vmem:[#allocation24 + $0x2b8] sm:$0xff]
          %v2216 = vld [vmem:[#allocation24 + $0x2c0] sm:$0xff]
          %v2217 = vld [vmem:[#allocation24 + $0x2c8] sm:$0xff]
          %v2218 = vld [vmem:[#allocation24 + $0x2d0] sm:$0xff]
          %v2219 = vld [vmem:[#allocation24 + $0x2d8] sm:$0xff]
          %v2220 = vld [vmem:[#allocation24 + $0x2e0] sm:$0xff]
          %v2221 = vld [vmem:[#allocation24 + $0x2e8] sm:$0xff]
          %v2222 = vld [vmem:[#allocation24 + $0x2f0] sm:$0xff]
          %v2223 = vld [vmem:[#allocation24 + $0x2f8] sm:$0xff]
          %v2224 = vld [vmem:[#allocation24 + $0x300] sm:$0xff]
          %v2225 = vld [vmem:[#allocation24 + $0x308] sm:$0xff]
          %v2226 = vld [vmem:[#allocation24 + $0x310] sm:$0xff]
          %v2227 = vld [vmem:[#allocation24 + $0x318] sm:$0xff]
          %v2228 = vld [vmem:[#allocation24 + $0x320] sm:$0xff]
          %v2229 = vld [vmem:[#allocation24 + $0x328] sm:$0xff]
          %v2230 = vld [vmem:[#allocation24 + $0x330] sm:$0xff]
          %v2231 = vld [vmem:[#allocation24 + $0x338] sm:$0xff]
          %v2232 = vld [vmem:[#allocation24 + $0x340] sm:$0xff]
          %v2233 = vld [vmem:[#allocation24 + $0x348] sm:$0xff]
          %v2234 = vld [vmem:[#allocation24 + $0x350] sm:$0xff]
          %v2235 = vld [vmem:[#allocation24 + $0x358] sm:$0xff]
          %v2236 = vld [vmem:[#allocation24 + $0x360] sm:$0xff]
          %v2237 = vld [vmem:[#allocation24 + $0x368] sm:$0xff]
          %v2238 = vld [vmem:[#allocation24 + $0x370] sm:$0xff]
          %v2239 = vld [vmem:[#allocation24 + $0x378] sm:$0xff]
          %v2240 = vld [vmem:[#allocation24 + $0x380] sm:$0xff]
          %v2241 = vld [vmem:[#allocation24 + $0x388] sm:$0xff]
          %v2242 = vld [vmem:[#allocation24 + $0x390] sm:$0xff]
          %v2243 = vld [vmem:[#allocation24 + $0x398] sm:$0xff]
          %v2244 = vld [vmem:[#allocation24 + $0x3a0] sm:$0xff]
          %v2245 = vld [vmem:[#allocation24 + $0x3a8] sm:$0xff]
          %v2246 = vld [vmem:[#allocation24 + $0x3b0] sm:$0xff]
          %v2247 = vld [vmem:[#allocation24 + $0x3b8] sm:$0xff]
          %v2248 = vld [vmem:[#allocation24 + $0x3c0] sm:$0xff]
          %v2249 = vld [vmem:[#allocation24 + $0x3c8] sm:$0xff]
          %v2250 = vld [vmem:[#allocation24 + $0x3d0] sm:$0xff]
          %v2251 = vld [vmem:[#allocation24 + $0x3d8] sm:$0xff]
          %v2252 = vld [vmem:[#allocation24 + $0x3e0] sm:$0xff]
          %v2253 = vld [vmem:[#allocation24 + $0x3e8] sm:$0xff]
          %v2254 = vld [vmem:[#allocation24 + $0x3f0] sm:$0xff]
          %v2255 = vld [vmem:[#allocation24 + $0x3f8] sm:$0xff]
          %v2256 = vld [vmem:[#allocation25] sm:$0xf]
          %v2258 = vperm.slane %v2256, 0
          %v2259 = vperm.slane %v2256, 1
          %v2260 = vperm.slane %v2256, 2
          %v2261 = vperm.slane %v2256, 3
          %2266 = vmatpush.msra.mxu0 %v2188
          %2267 = vmatpush.msra.mxu0 %v2184
          %2268 = vmatpush.msra.mxu0 %v2180
          %2269 = vmatpush.msra.mxu0 %v2176
          %2270 = vmatpush.msra.mxu0 %v2172
          %2271 = vmatpush.msra.mxu0 %v2168
          %2272 = vmatpush.msra.mxu0 %v2164
          %2273 = vmatpush.msra.mxu0 %v2160
          %2274 = vmatpush.msra.mxu0 %v2156
          %2275 = vmatpush.msra.mxu0 %v2152
          %2276 = vmatpush.msra.mxu0 %v2148
          %2277 = vmatpush.msra.mxu0 %v2144
          %2278 = vmatpush.msra.mxu0 %v2140
          %2279 = vmatpush.msra.mxu0 %v2136
          %2280 = vmatpush.msra.mxu0 %v2132
          %2281 = vmatpush.msra.mxu0 %v2128
          %2282 = vmatmul.f32.gmra.mxu0 %v1824
          %v2283 = vpop.f32.mrf.mxu0
          %v2284 = vadd.f32 %v2258, %v2283
          %2285 = vdwg.mxu0
          %2286 = vmatpush.msra.mxu0 %v2252
          %2287 = vmatpush.msra.mxu0 %v2248
          %2288 = vmatpush.msra.mxu0 %v2244
          %2289 = vmatpush.msra.mxu0 %v2240
          %2290 = vmatpush.msra.mxu0 %v2236
          %2291 = vmatpush.msra.mxu0 %v2232
          %2292 = vmatpush.msra.mxu0 %v2228
          %2293 = vmatpush.msra.mxu0 %v2224
          %2294 = vmatpush.msra.mxu0 %v2220
          %2295 = vmatpush.msra.mxu0 %v2216
          %2296 = vmatpush.msra.mxu0 %v2212
          %2297 = vmatpush.msra.mxu0 %v2208
          %2298 = vmatpush.msra.mxu0 %v2204
          %2299 = vmatpush.msra.mxu0 %v2200
          %2300 = vmatpush.msra.mxu0 %v2196
          %2301 = vmatpush.msra.mxu0 %v2192
          %2302 = vmatmul.f32.gmra.mxu0 %v1825
          %v2303 = vpop.f32.mrf.mxu0
          %v2304 = vadd.f32 %v2284, %v2303
          %2305 = vdwg.mxu0
          %2306 = vmatpush.msra.mxu0 %v2189
          %2307 = vmatpush.msra.mxu0 %v2185
          %2308 = vmatpush.msra.mxu0 %v2181
          %2309 = vmatpush.msra.mxu0 %v2177
          %2310 = vmatpush.msra.mxu0 %v2173
          %2311 = vmatpush.msra.mxu0 %v2169
          %2312 = vmatpush.msra.mxu0 %v2165
          %2313 = vmatpush.msra.mxu0 %v2161
          %2314 = vmatpush.msra.mxu0 %v2157
          %2315 = vmatpush.msra.mxu0 %v2153
          %2316 = vmatpush.msra.mxu0 %v2149
          %2317 = vmatpush.msra.mxu0 %v2145
          %2318 = vmatpush.msra.mxu0 %v2141
          %2319 = vmatpush.msra.mxu0 %v2137
          %2320 = vmatpush.msra.mxu0 %v2133
          %2321 = vmatpush.msra.mxu0 %v2129
          %2322 = vmatmul.f32.gmra.mxu0 %v1824
          %v2323 = vpop.f32.mrf.mxu0
          %v2324 = vadd.f32 %v2259, %v2323
          %2325 = vdwg.mxu0
          %2326 = vmatpush.msra.mxu0 %v2253
          %2327 = vmatpush.msra.mxu0 %v2249
          %2328 = vmatpush.msra.mxu0 %v2245
          %2329 = vmatpush.msra.mxu0 %v2241
          %2330 = vmatpush.msra.mxu0 %v2237
          %2331 = vmatpush.msra.mxu0 %v2233
          %2332 = vmatpush.msra.mxu0 %v2229
          %2333 = vmatpush.msra.mxu0 %v2225
          %2334 = vmatpush.msra.mxu0 %v2221
          %2335 = vmatpush.msra.mxu0 %v2217
          %2336 = vmatpush.msra.mxu0 %v2213
          %2337 = vmatpush.msra.mxu0 %v2209
          %2338 = vmatpush.msra.mxu0 %v2205
          %2339 = vmatpush.msra.mxu0 %v2201
          %2340 = vmatpush.msra.mxu0 %v2197
          %2341 = vmatpush.msra.mxu0 %v2193
          %2342 = vmatmul.f32.gmra.mxu0 %v1825
          %v2343 = vpop.f32.mrf.mxu0
          %v2344 = vadd.f32 %v2324, %v2343
          %2345 = vdwg.mxu0
          %2346 = vmatpush.msra.mxu0 %v2190
          %2347 = vmatpush.msra.mxu0 %v2186
          %2348 = vmatpush.msra.mxu0 %v2182
          %2349 = vmatpush.msra.mxu0 %v2178
          %2350 = vmatpush.msra.mxu0 %v2174
          %2351 = vmatpush.msra.mxu0 %v2170
          %2352 = vmatpush.msra.mxu0 %v2166
          %2353 = vmatpush.msra.mxu0 %v2162
          %2354 = vmatpush.msra.mxu0 %v2158
          %2355 = vmatpush.msra.mxu0 %v2154
          %2356 = vmatpush.msra.mxu0 %v2150
          %2357 = vmatpush.msra.mxu0 %v2146
          %2358 = vmatpush.msra.mxu0 %v2142
          %2359 = vmatpush.msra.mxu0 %v2138
          %2360 = vmatpush.msra.mxu0 %v2134
          %2361 = vmatpush.msra.mxu0 %v2130
          %2362 = vmatmul.f32.gmra.mxu0 %v1824
          %v2363 = vpop.f32.mrf.mxu0
          %v2364 = vadd.f32 %v2260, %v2363
          %2365 = vdwg.mxu0
          %2366 = vmatpush.msra.mxu0 %v2254
          %2367 = vmatpush.msra.mxu0 %v2250
          %2368 = vmatpush.msra.mxu0 %v2246
          %2369 = vmatpush.msra.mxu0 %v2242
          %2370 = vmatpush.msra.mxu0 %v2238
          %2371 = vmatpush.msra.mxu0 %v2234
          %2372 = vmatpush.msra.mxu0 %v2230
          %2373 = vmatpush.msra.mxu0 %v2226
          %2374 = vmatpush.msra.mxu0 %v2222
          %2375 = vmatpush.msra.mxu0 %v2218
          %2376 = vmatpush.msra.mxu0 %v2214
          %2377 = vmatpush.msra.mxu0 %v2210
          %2378 = vmatpush.msra.mxu0 %v2206
          %2379 = vmatpush.msra.mxu0 %v2202
          %2380 = vmatpush.msra.mxu0 %v2198
          %2381 = vmatpush.msra.mxu0 %v2194
          %2382 = vmatmul.f32.gmra.mxu0 %v1825
          %v2383 = vpop.f32.mrf.mxu0
          %v2384 = vadd.f32 %v2364, %v2383
          %2385 = vdwg.mxu0
          %2386 = vmatpush.msra.mxu0 %v2191
          %2387 = vmatpush.msra.mxu0 %v2187
          %2388 = vmatpush.msra.mxu0 %v2183
          %2389 = vmatpush.msra.mxu0 %v2179
          %2390 = vmatpush.msra.mxu0 %v2175
          %2391 = vmatpush.msra.mxu0 %v2171
          %2392 = vmatpush.msra.mxu0 %v2167
          %2393 = vmatpush.msra.mxu0 %v2163
          %2394 = vmatpush.msra.mxu0 %v2159
          %2395 = vmatpush.msra.mxu0 %v2155
          %2396 = vmatpush.msra.mxu0 %v2151
          %2397 = vmatpush.msra.mxu0 %v2147
          %2398 = vmatpush.msra.mxu0 %v2143
          %2399 = vmatpush.msra.mxu0 %v2139
          %2400 = vmatpush.msra.mxu0 %v2135
          %2401 = vmatpush.msra.mxu0 %v2131
          %2402 = vmatmul.f32.gmra.mxu0 %v1824
          %v2403 = vpop.f32.mrf.mxu0
          %v2404 = vadd.f32 %v2261, %v2403
          %2405 = vdwg.mxu0
          %2406 = vmatpush.msra.mxu0 %v2255
          %2407 = vmatpush.msra.mxu0 %v2251
          %2408 = vmatpush.msra.mxu0 %v2247
          %2409 = vmatpush.msra.mxu0 %v2243
          %2410 = vmatpush.msra.mxu0 %v2239
          %2411 = vmatpush.msra.mxu0 %v2235
          %2412 = vmatpush.msra.mxu0 %v2231
          %2413 = vmatpush.msra.mxu0 %v2227
          %2414 = vmatpush.msra.mxu0 %v2223
          %2415 = vmatpush.msra.mxu0 %v2219
          %2416 = vmatpush.msra.mxu0 %v2215
          %2417 = vmatpush.msra.mxu0 %v2211
          %2418 = vmatpush.msra.mxu0 %v2207
          %2419 = vmatpush.msra.mxu0 %v2203
          %2420 = vmatpush.msra.mxu0 %v2199
          %2421 = vmatpush.msra.mxu0 %v2195
          %2422 = vmatmul.f32.gmra.mxu0 %v1825
          %v2423 = vpop.f32.mrf.mxu0
          %v2424 = vadd.f32 %v2404, %v2423
          %2425 = vdwg.mxu0
          %v2426 = vadd.f32 %v2304, %v652
          %v2427 = vadd.f32 %v2344, %v653
          %v2428 = vadd.f32 %v2384, %v654
          %v2429 = vadd.f32 %v2424, %v655
          %v2430 = vmul.f32 %v2124, %v2124
          %v2431 = vmul.f32 %v2125, %v2125
          %v2432 = vmul.f32 %v2126, %v2126
          %v2433 = vmul.f32 %v2127, %v2127
          %v2434 = vadd.f32 %v2430, %v2431
          %v2435 = vadd.f32 %v2434, %v2432
          %v2436 = vadd.f32 %v2435, %v2433
          %2437 = vadd.xlane.f32.xlu0 %v2436
          %v2438 = vpop.xlane.xlu0 %2437
          %v2439 = vmax.f32 %v2438, 1e-24
          %v2440 = vrsqrt.pop %v2439
          %v2441 = vmul.f32 %v2440, %v2439
          %v2442 = vmul.f32 %v2441, %v2440
          %v2443 = vmul.f32 0.5, %v2442
          %v2444 = vsub.f32 1.5, %v2443
          %v2445 = vmul.f32 %v2440, %v2444
          %vm2446 = vweird.f32 %v2439
          %vm2447 = vweird.f32 %v2440
          %vm2448 = vmor %vm2446, %vm2447
          %v2449 = vsel %vm2448, %v2440, %v2445
          %v2450 = vmul.f32 %v2124, %v2449
          %v2451 = vmul.f32 %v2125, %v2449
          %v2452 = vmul.f32 %v2126, %v2449
          %v2453 = vmul.f32 %v2127, %v2449
          %v2454 = vmul.f32 %v2426, %v2426
          %v2455 = vmul.f32 %v2427, %v2427
          %v2456 = vmul.f32 %v2428, %v2428
          %v2457 = vmul.f32 %v2429, %v2429
          %v2458 = vadd.f32 %v2454, %v2455
          %v2459 = vadd.f32 %v2458, %v2456
          %v2460 = vadd.f32 %v2459, %v2457
          %2461 = vadd.xlane.f32.xlu0 %v2460
          %v2462 = vpop.xlane.xlu0 %2461
          %v2463 = vmax.f32 %v2462, 1e-24
          %v2464 = vrsqrt.pop %v2463
          %v2465 = vmul.f32 %v2464, %v2463
          %v2466 = vmul.f32 %v2465, %v2464
          %v2467 = vmul.f32 0.5, %v2466
          %v2468 = vsub.f32 1.5, %v2467
          %v2469 = vmul.f32 %v2464, %v2468
          %vm2470 = vweird.f32 %v2463
          %vm2471 = vweird.f32 %v2464
          %vm2472 = vmor %vm2470, %vm2471
          %v2473 = vsel %vm2472, %v2464, %v2469
          %v2474 = vmul.f32 %v2426, %v2473
          %v2475 = vmul.f32 %v2427, %v2473
          %v2476 = vmul.f32 %v2428, %v2473
          %v2477 = vmul.f32 %v2429, %v2473
          %2478 = vst [vmem:[#allocation29] sm:$0xff] %v2450
          %2479 = vst [vmem:[#allocation29 + $0x8] sm:$0xff] %v2451
          %2480 = vst [vmem:[#allocation29 + $0x10] sm:$0xff] %v2452
          %2481 = vst [vmem:[#allocation29 + $0x18] sm:$0xff] %v2453
          %2482 = vst [vmem:[#allocation29 + $0x20] sm:$0xff] %v2474
          %2483 = vst [vmem:[#allocation29 + $0x28] sm:$0xff] %v2475
          %2484 = vst [vmem:[#allocation29 + $0x30] sm:$0xff] %v2476
          %2485 = vst [vmem:[#allocation29 + $0x38] sm:$0xff] %v2477
          %v2486 = vld [vmem:[#allocation15] sm:$0xff]
          %v2487 = vld [vmem:[#allocation15 + $0x8] sm:$0xff]
          %v2488 = vld [vmem:[#allocation15 + $0x10] sm:$0xff]
          %v2489 = vld [vmem:[#allocation15 + $0x18] sm:$0xff]
          %v2490 = vld [vmem:[#allocation29] sm:$0xff]
          %v2491 = vld [vmem:[#allocation29 + $0x8] sm:$0xff]
          %v2492 = vld [vmem:[#allocation29 + $0x10] sm:$0xff]
          %v2493 = vld [vmem:[#allocation29 + $0x18] sm:$0xff]
          %v2494 = vld [vmem:[#allocation29 + $0x20] sm:$0xff]
          %v2495 = vld [vmem:[#allocation29 + $0x28] sm:$0xff]
          %v2496 = vld [vmem:[#allocation29 + $0x30] sm:$0xff]
          %v2497 = vld [vmem:[#allocation29 + $0x38] sm:$0xff]
          %2498 = vmatpush.xpose.msra.mxu0 0.0
          %2499 = vmatpush.xpose.msra.mxu0 0.0
          %2500 = vmatpush.xpose.msra.mxu0 0.0
          %2501 = vmatpush.xpose.msra.mxu0 0.0
          %2502 = vmatpush.xpose.msra.mxu0 0.0
          %2503 = vmatpush.xpose.msra.mxu0 0.0
          %2504 = vmatpush.xpose.msra.mxu0 0.0
          %2505 = vmatpush.xpose.msra.mxu0 0.0
          %2506 = vmatpush.xpose.msra.mxu0 0.0
          %2507 = vmatpush.xpose.msra.mxu0 0.0
          %2508 = vmatpush.xpose.msra.mxu0 0.0
          %2509 = vmatpush.xpose.msra.mxu0 0.0
          %2510 = vmatpush.xpose.msra.mxu0 0.0
          %2511 = vmatpush.xpose.msra.mxu0 0.0
          %2512 = vmatpush.xpose.msra.mxu0 0.0
          %2513 = vmatpush.xpose.msra.mxu0 %v2486
          %2514 = vmatmul.f32.gmra.mxu0 %v2490
          %v2515 = vpop.f32.mrf.mxu0
          %v2516 = vadd.f32 0.0, %v2515
          %2517 = vmatmul.f32.gmra.mxu0 %v2494
          %v2518 = vpop.f32.mrf.mxu0
          %v2519 = vadd.f32 0.0, %v2518
          %2520 = vdwg.mxu0
          %2521 = vmatpush.xpose.msra.mxu0 0.0
          %2522 = vmatpush.xpose.msra.mxu0 0.0
          %2523 = vmatpush.xpose.msra.mxu0 0.0
          %2524 = vmatpush.xpose.msra.mxu0 0.0
          %2525 = vmatpush.xpose.msra.mxu0 0.0
          %2526 = vmatpush.xpose.msra.mxu0 0.0
          %2527 = vmatpush.xpose.msra.mxu0 0.0
          %2528 = vmatpush.xpose.msra.mxu0 0.0
          %2529 = vmatpush.xpose.msra.mxu0 0.0
          %2530 = vmatpush.xpose.msra.mxu0 0.0
          %2531 = vmatpush.xpose.msra.mxu0 0.0
          %2532 = vmatpush.xpose.msra.mxu0 0.0
          %2533 = vmatpush.xpose.msra.mxu0 0.0
          %2534 = vmatpush.xpose.msra.mxu0 0.0
          %2535 = vmatpush.xpose.msra.mxu0 0.0
          %2536 = vmatpush.xpose.msra.mxu0 %v2487
          %2537 = vmatmul.f32.gmra.mxu0 %v2491
          %v2538 = vpop.f32.mrf.mxu0
          %v2539 = vadd.f32 %v2516, %v2538
          %2540 = vmatmul.f32.gmra.mxu0 %v2495
          %v2541 = vpop.f32.mrf.mxu0
          %v2542 = vadd.f32 %v2519, %v2541
          %2543 = vdwg.mxu0
          %2544 = vmatpush.xpose.msra.mxu0 0.0
          %2545 = vmatpush.xpose.msra.mxu0 0.0
          %2546 = vmatpush.xpose.msra.mxu0 0.0
          %2547 = vmatpush.xpose.msra.mxu0 0.0
          %2548 = vmatpush.xpose.msra.mxu0 0.0
          %2549 = vmatpush.xpose.msra.mxu0 0.0
          %2550 = vmatpush.xpose.msra.mxu0 0.0
          %2551 = vmatpush.xpose.msra.mxu0 0.0
          %2552 = vmatpush.xpose.msra.mxu0 0.0
          %2553 = vmatpush.xpose.msra.mxu0 0.0
          %2554 = vmatpush.xpose.msra.mxu0 0.0
          %2555 = vmatpush.xpose.msra.mxu0 0.0
          %2556 = vmatpush.xpose.msra.mxu0 0.0
          %2557 = vmatpush.xpose.msra.mxu0 0.0
          %2558 = vmatpush.xpose.msra.mxu0 0.0
          %2559 = vmatpush.xpose.msra.mxu0 %v2488
          %2560 = vmatmul.f32.gmra.mxu0 %v2492
          %v2561 = vpop.f32.mrf.mxu0
          %v2562 = vadd.f32 %v2539, %v2561
          %2563 = vmatmul.f32.gmra.mxu0 %v2496
          %v2564 = vpop.f32.mrf.mxu0
          %v2565 = vadd.f32 %v2542, %v2564
          %2566 = vdwg.mxu0
          %2567 = vmatpush.xpose.msra.mxu0 0.0
          %2568 = vmatpush.xpose.msra.mxu0 0.0
          %2569 = vmatpush.xpose.msra.mxu0 0.0
          %2570 = vmatpush.xpose.msra.mxu0 0.0
          %2571 = vmatpush.xpose.msra.mxu0 0.0
          %2572 = vmatpush.xpose.msra.mxu0 0.0
          %2573 = vmatpush.xpose.msra.mxu0 0.0
          %2574 = vmatpush.xpose.msra.mxu0 0.0
          %2575 = vmatpush.xpose.msra.mxu0 0.0
          %2576 = vmatpush.xpose.msra.mxu0 0.0
          %2577 = vmatpush.xpose.msra.mxu0 0.0
          %2578 = vmatpush.xpose.msra.mxu0 0.0
          %2579 = vmatpush.xpose.msra.mxu0 0.0
          %2580 = vmatpush.xpose.msra.mxu0 0.0
          %2581 = vmatpush.xpose.msra.mxu0 0.0
          %2582 = vmatpush.xpose.msra.mxu0 %v2489
          %2583 = vmatmul.f32.gmra.mxu0 %v2493
          %v2584 = vpop.f32.mrf.mxu0
          %v2585 = vadd.f32 %v2562, %v2584
          %2586 = vmatmul.f32.gmra.mxu0 %v2497
          %v2587 = vpop.f32.mrf.mxu0
          %v2588 = vadd.f32 %v2565, %v2587
          %2589 = vdwg.mxu0
          %v2590 = vmul.f32 %v2585, 100.0
          %v2591 = vmul.f32 %v2588, 100.0
          %2592 = vmatpush.xpose.msra.mxu0 0.0
          %2593 = vmatpush.xpose.msra.mxu0 0.0
          %2594 = vmatpush.xpose.msra.mxu0 0.0
          %2595 = vmatpush.xpose.msra.mxu0 0.0
          %2596 = vmatpush.xpose.msra.mxu0 0.0
          %2597 = vmatpush.xpose.msra.mxu0 0.0
          %2598 = vmatpush.xpose.msra.mxu0 0.0
          %2599 = vmatpush.xpose.msra.mxu0 0.0
          %2600 = vmatpush.xpose.msra.mxu0 0.0
          %2601 = vmatpush.xpose.msra.mxu0 0.0
          %2602 = vmatpush.xpose.msra.mxu0 0.0
          %2603 = vmatpush.xpose.msra.mxu0 0.0
          %2604 = vmatpush.xpose.msra.mxu0 0.0
          %2605 = vmatpush.xpose.msra.mxu0 0.0
          %2606 = vmatpush.xpose.msra.mxu0 0.0
          %2607 = vmatpush.xpose.msra.mxu0 %v2494
          %2608 = vmatmul.f32.gmra.mxu0 %v2486
          %v2609 = vpop.f32.mrf.mxu0
          %v2610 = vadd.f32 0.0, %v2609
          %2611 = vdwg.mxu0
          %2612 = vmatpush.xpose.msra.mxu0 0.0
          %2613 = vmatpush.xpose.msra.mxu0 0.0
          %2614 = vmatpush.xpose.msra.mxu0 0.0
          %2615 = vmatpush.xpose.msra.mxu0 0.0
          %2616 = vmatpush.xpose.msra.mxu0 0.0
          %2617 = vmatpush.xpose.msra.mxu0 0.0
          %2618 = vmatpush.xpose.msra.mxu0 0.0
          %2619 = vmatpush.xpose.msra.mxu0 0.0
          %2620 = vmatpush.xpose.msra.mxu0 0.0
          %2621 = vmatpush.xpose.msra.mxu0 0.0
          %2622 = vmatpush.xpose.msra.mxu0 0.0
          %2623 = vmatpush.xpose.msra.mxu0 0.0
          %2624 = vmatpush.xpose.msra.mxu0 0.0
          %2625 = vmatpush.xpose.msra.mxu0 0.0
          %2626 = vmatpush.xpose.msra.mxu0 0.0
          %2627 = vmatpush.xpose.msra.mxu0 %v2495
          %2628 = vmatmul.f32.gmra.mxu0 %v2487
          %v2629 = vpop.f32.mrf.mxu0
          %v2630 = vadd.f32 %v2610, %v2629
          %2631 = vdwg.mxu0
          %2632 = vmatpush.xpose.msra.mxu0 0.0
          %2633 = vmatpush.xpose.msra.mxu0 0.0
          %2634 = vmatpush.xpose.msra.mxu0 0.0
          %2635 = vmatpush.xpose.msra.mxu0 0.0
          %2636 = vmatpush.xpose.msra.mxu0 0.0
          %2637 = vmatpush.xpose.msra.mxu0 0.0
          %2638 = vmatpush.xpose.msra.mxu0 0.0
          %2639 = vmatpush.xpose.msra.mxu0 0.0
          %2640 = vmatpush.xpose.msra.mxu0 0.0
          %2641 = vmatpush.xpose.msra.mxu0 0.0
          %2642 = vmatpush.xpose.msra.mxu0 0.0
          %2643 = vmatpush.xpose.msra.mxu0 0.0
          %2644 = vmatpush.xpose.msra.mxu0 0.0
          %2645 = vmatpush.xpose.msra.mxu0 0.0
          %2646 = vmatpush.xpose.msra.mxu0 0.0
          %2647 = vmatpush.xpose.msra.mxu0 %v2496
          %2648 = vmatmul.f32.gmra.mxu0 %v2488
          %v2649 = vpop.f32.mrf.mxu0
          %v2650 = vadd.f32 %v2630, %v2649
          %2651 = vdwg.mxu0
          %2652 = vmatpush.xpose.msra.mxu0 0.0
          %2653 = vmatpush.xpose.msra.mxu0 0.0
          %2654 = vmatpush.xpose.msra.mxu0 0.0
          %2655 = vmatpush.xpose.msra.mxu0 0.0
          %2656 = vmatpush.xpose.msra.mxu0 0.0
          %2657 = vmatpush.xpose.msra.mxu0 0.0
          %2658 = vmatpush.xpose.msra.mxu0 0.0
          %2659 = vmatpush.xpose.msra.mxu0 0.0
          %2660 = vmatpush.xpose.msra.mxu0 0.0
          %2661 = vmatpush.xpose.msra.mxu0 0.0
          %2662 = vmatpush.xpose.msra.mxu0 0.0
          %2663 = vmatpush.xpose.msra.mxu0 0.0
          %2664 = vmatpush.xpose.msra.mxu0 0.0
          %2665 = vmatpush.xpose.msra.mxu0 0.0
          %2666 = vmatpush.xpose.msra.mxu0 0.0
          %2667 = vmatpush.xpose.msra.mxu0 %v2497
          %2668 = vmatmul.f32.gmra.mxu0 %v2489
          %v2669 = vpop.f32.mrf.mxu0
          %v2670 = vadd.f32 %v2650, %v2669
          %2671 = vdwg.mxu0
          %v2672 = vmul.f32 %v2670, 100.0
          %v2673 = vlaneseq
          %v2674 = vshrl.u32 %v2673, 7
          %v2675 = vlaneseq
          %v2676 = vand.u32 %v2675, 127
          %vm2677 = vcmp.eq.s32.totalorder %v2674, %v2676
          %v2678 = vsel %vm2677, %v2590, 0.0
          %vm2679 = vcmask 64512
          %v2680 = vsel %vm2679, %v2678, 0.0
          %2681 = vadd.xlane.f32.xlu0 %v2680
          %v2682 = vpop.xlane.xlu0 %2681
          %v2683 = vsel %vm2677, %v2672, 0.0
          %v2684 = vsel %vm2679, %v2683, 0.0
          %2685 = vadd.xlane.f32.xlu0 %v2684
          %v2686 = vpop.xlane.xlu0 %2685
          %v2687 = vsel %vm2679, %v2590, -inf
          %2688 = vmax.xlane.f32.xlu0 %v2687
          %v2689 = vpop.xlane.xlu0 %2688
          %v2690 = vsel %vm2679, %v2591, -inf
          %2691 = vmax.xlane.f32.xlu0 %v2690
          %v2692 = vpop.xlane.xlu0 %2691
          %v2693 = vsub.f32 %v2590, %v2689
          %v2694 = vsub.f32 %v2591, %v2692
          %v2695 = vmul.f32 %v2693, 1.442695
          %v2696 = vpow.pop %v2695
          %v2697 = vmul.f32 %v2694, 1.442695
          %v2698 = vpow.pop %v2697
          %vm2699 = vcmask 7168
          %2700 = vst.msk [vmem:[#allocation2] sm:$0xff] %vm2699, %v2689
          %2701 = vst.msk [vmem:[#allocation2 + $0x8] sm:$0xff] %vm2699, %v2692
          %v2702 = vsel %vm2679, %v2696, 0.0
          %2703 = vadd.xlane.f32.xlu0 %v2702
          %v2704 = vpop.xlane.xlu0 %2703
          %v2705 = vsel %vm2679, %v2698, 0.0
          %2706 = vadd.xlane.f32.xlu0 %v2705
          %v2707 = vpop.xlane.xlu0 %2706
          %2708 = vst.msk [vmem:[#allocation3] sm:$0xff] %vm2699, %v2704
          %2709 = vst.msk [vmem:[#allocation3 + $0x8] sm:$0xff] %vm2699, %v2707
          %v2710 = vmul.f32 %v2698, %v2590
          %v2711 = vsel %vm2679, %v2710, 0.0
          %2712 = vadd.xlane.f32.xlu0 %v2711
          %v2713 = vpop.xlane.xlu0 %2712
          %2714 = vst.msk [vmem:[#allocation4] sm:$0xff] %vm2699, %v2713
          %v2715 = vsel %vm2679, %v2672, -inf
          %2716 = vmax.xlane.f32.xlu0 %v2715
          %v2717 = vpop.xlane.xlu0 %2716
          %v2718 = vsub.f32 %v2672, %v2717
          %v2719 = vmul.f32 %v2718, 1.442695
          %v2720 = vpow.pop %v2719
          %2721 = vst.msk [vmem:[#allocation5] sm:$0xff] %vm2699, %v2717
          %v2722 = vsel %vm2679, %v2720, 0.0
          %2723 = vadd.xlane.f32.xlu0 %v2722
          %v2724 = vpop.xlane.xlu0 %2723
          %2725 = vst.msk [vmem:[#allocation6] sm:$0xff] %vm2699, %v2724
          %v2726 = vmul.f32 %v2720, %v2672
          %v2727 = vsel %vm2679, %v2726, 0.0
          %2728 = vadd.xlane.f32.xlu0 %v2727
          %v2729 = vpop.xlane.xlu0 %2728
          %2730 = vst.msk [vmem:[#allocation7] sm:$0xff] %vm2699, %v2729
          %v2731 = vadd.f32 %v2682, %v2686
          %v2732 = vmul.f32 %v2731, 0.6
          %v2733 = vsub.f32 0.0, %v2732
          %v2734 = vlog2.pop %v2704
          %v2735 = vmul.f32 %v2734, 0.6931472
          %v2736 = vadd.f32 %v2689, %v2735
          %v2737 = vadd.f32 %v2733, %v2736
          %v2738 = vsub.f32 %v2737, %v2682
          %2739 = vst.msk [vmem:[#allocation8] sm:$0xff] %vm2699, %v2738
        $region120: #{tpu_custom_call.1} parent=67 // pred_fallthru
          _
        %v2740 = vld [vmem:[#allocation29] sm:$0xff]
        %v2741 = vld [vmem:[#allocation29 + $0x8] sm:$0xff]
        %v2742 = vld [vmem:[#allocation29 + $0x10] sm:$0xff]
        %v2743 = vld [vmem:[#allocation29 + $0x18] sm:$0xff]
        %v2744 = vld [vmem:[#allocation29 + $0x20] sm:$0xff]
        %v2745 = vld [vmem:[#allocation29 + $0x28] sm:$0xff]
        %v2746 = vld [vmem:[#allocation29 + $0x30] sm:$0xff]
        %v2747 = vld [vmem:[#allocation29 + $0x38] sm:$0xff]
        %v2748 = vpack.c.bf16 %v2744, %v2740
        %v2749 = vpack.c.bf16 %v2745, %v2741
        %v2750 = vpack.c.bf16 %v2746, %v2742
        %v2751 = vpack.c.bf16 %v2747, %v2743
        %v2752 = vld [vmem:[#allocation15] sm:$0xff]
        %v2753 = vld [vmem:[#allocation15 + $0x8] sm:$0xff]
        %v2754 = vld [vmem:[#allocation15 + $0x10] sm:$0xff]
        %v2755 = vld [vmem:[#allocation15 + $0x18] sm:$0xff]
        %v2756 = vpack.c.bf16 %v2752, %v2752
        %v2757 = vpack.c.bf16 %v2753, %v2753
        %v2758 = vpack.c.bf16 %v2754, %v2754
        %v2759 = vpack.c.bf16 %v2755, %v2755
        %v2760 = vld [vmem:[%s584] sm:$0xff]
        %v2761 = vld [vmem:[%s584 + $0x8] sm:$0xff]
        %v2762 = vld [vmem:[%s584 + $0x10] sm:$0xf]
        %v2763 = vld [vmem:[%s584 + $0x14] sm:$0xff]
        %v2764 = vld [vmem:[%s584 + $0x1c] sm:$0xff]
        %v2765 = vld [vmem:[%s584 + $0x24] sm:$0xf]
        %v2766 = vld [vmem:[%s584 + $0x28] sm:$0xff]
        %v2767 = vld [vmem:[%s584 + $0x30] sm:$0xff]
        %v2768 = vld [vmem:[%s584 + $0x38] sm:$0xf]
        %v2769 = vld [vmem:[%s584 + $0x3c] sm:$0xff]
        %v2770 = vld [vmem:[%s584 + $0x44] sm:$0xff]
        %v2771 = vld [vmem:[%s584 + $0x4c] sm:$0xf]
        %v2772 = vld [vmem:[%s584 + $0x50] sm:$0xff]
        %v2773 = vld [vmem:[%s584 + $0x58] sm:$0xff]
        %v2774 = vld [vmem:[%s584 + $0x60] sm:$0xf]
        %v2775 = vld [vmem:[%s584 + $0x64] sm:$0xff]
        %v2776 = vld [vmem:[%s584 + $0x6c] sm:$0xff]
        %v2777 = vld [vmem:[%s584 + $0x74] sm:$0xf]
        %v2778 = vld [vmem:[%s584 + $0x78] sm:$0xff]
        %v2779 = vld [vmem:[%s584 + $0x80] sm:$0xff]
        %v2780 = vld [vmem:[%s584 + $0x88] sm:$0xf]
        %v2781 = vld [vmem:[%s584 + $0x8c] sm:$0xff]
        %v2782 = vld [vmem:[%s584 + $0x94] sm:$0xff]
        %v2783 = vld [vmem:[%s584 + $0x9c] sm:$0xf]
        %v2784 = vld [vmem:[%s584 + $0xa0] sm:$0xff]
        %v2785 = vld [vmem:[%s584 + $0xa8] sm:$0xff]
        %v2786 = vld [vmem:[%s584 + $0xb0] sm:$0xf]
        %v2787 = vld [vmem:[%s584 + $0xb4] sm:$0xff]
        %v2788 = vld [vmem:[%s584 + $0xbc] sm:$0xff]
        %v2789 = vld [vmem:[%s584 + $0xc4] sm:$0xf]
        %v2790 = vld [vmem:[%s584 + $0xc8] sm:$0xff]
        %v2791 = vld [vmem:[%s584 + $0xd0] sm:$0xff]
        %v2792 = vld [vmem:[%s584 + $0xd8] sm:$0xf]
        %v2793 = vld [vmem:[%s584 + $0xdc] sm:$0xff]
        %v2794 = vld [vmem:[%s584 + $0xe4] sm:$0xff]
        %v2795 = vld [vmem:[%s584 + $0xec] sm:$0xf]
        %v2796 = vld [vmem:[%s584 + $0xf0] sm:$0xff]
        %v2797 = vld [vmem:[%s584 + $0xf8] sm:$0xff]
        %v2798 = vld [vmem:[%s584 + $0x100] sm:$0xf]
        %v2799 = vld [vmem:[%s584 + $0x104] sm:$0xff]
        %v2800 = vld [vmem:[%s584 + $0x10c] sm:$0xff]
        %v2801 = vld [vmem:[%s584 + $0x114] sm:$0xf]
        %v2802 = vld [vmem:[%s584 + $0x118] sm:$0xff]
        %v2803 = vld [vmem:[%s584 + $0x120] sm:$0xff]
        %v2804 = vld [vmem:[%s584 + $0x128] sm:$0xf]
        %v2805 = vld [vmem:[%s584 + $0x12c] sm:$0xff]
        %v2806 = vld [vmem:[%s584 + $0x134] sm:$0xff]
        %v2807 = vld [vmem:[%s584 + $0x13c] sm:$0xf]
        %v2808 = vld [vmem:[%s584 + $0x140] sm:$0xff]
        %v2809 = vld [vmem:[%s584 + $0x148] sm:$0xff]
        %v2810 = vld [vmem:[%s584 + $0x150] sm:$0xf]
        %v2811 = vld [vmem:[%s584 + $0x154] sm:$0xff]
        %v2812 = vld [vmem:[%s584 + $0x15c] sm:$0xff]
        %v2813 = vld [vmem:[%s584 + $0x164] sm:$0xf]
        %v2814 = vld [vmem:[%s584 + $0x168] sm:$0xff]
        %v2815 = vld [vmem:[%s584 + $0x170] sm:$0xff]
        %v2816 = vld [vmem:[%s584 + $0x178] sm:$0xf]
        %v2817 = vld [vmem:[%s584 + $0x17c] sm:$0xff]
        %v2818 = vld [vmem:[%s584 + $0x184] sm:$0xff]
        %v2819 = vld [vmem:[%s584 + $0x18c] sm:$0xf]
        %v2820 = vld [vmem:[%s584 + $0x190] sm:$0xff]
        %v2821 = vld [vmem:[%s584 + $0x198] sm:$0xff]
        %v2822 = vld [vmem:[%s584 + $0x1a0] sm:$0xf]
        %v2823 = vld [vmem:[%s584 + $0x1a4] sm:$0xff]
        %v2824 = vld [vmem:[%s584 + $0x1ac] sm:$0xff]
        %v2825 = vld [vmem:[%s584 + $0x1b4] sm:$0xf]
        %v2826 = vld [vmem:[%s584 + $0x1b8] sm:$0xff]
        %v2827 = vld [vmem:[%s584 + $0x1c0] sm:$0xff]
        %v2828 = vld [vmem:[%s584 + $0x1c8] sm:$0xf]
        %v2829 = vld [vmem:[%s584 + $0x1cc] sm:$0xff]
        %v2830 = vld [vmem:[%s584 + $0x1d4] sm:$0xff]
        %v2831 = vld [vmem:[%s584 + $0x1dc] sm:$0xf]
        %v2832 = vld [vmem:[%s584 + $0x1e0] sm:$0xff]
        %v2833 = vld [vmem:[%s584 + $0x1e8] sm:$0xff]
        %v2834 = vld [vmem:[%s584 + $0x1f0] sm:$0xf]
        %v2835 = vld [vmem:[%s584 + $0x1f4] sm:$0xff]
        %v2836 = vld [vmem:[%s584 + $0x1fc] sm:$0xff]
        %v2837 = vld [vmem:[%s584 + $0x204] sm:$0xf]
        %v2838 = vld [vmem:[%s584 + $0x208] sm:$0xff]
        %v2839 = vld [vmem:[%s584 + $0x210] sm:$0xff]
        %v2840 = vld [vmem:[%s584 + $0x218] sm:$0xf]
        %v2841 = vld [vmem:[%s584 + $0x21c] sm:$0xff]
        %v2842 = vld [vmem:[%s584 + $0x224] sm:$0xff]
        %v2843 = vld [vmem:[%s584 + $0x22c] sm:$0xf]
        %v2844 = vld [vmem:[%s584 + $0x230] sm:$0xff]
        %v2845 = vld [vmem:[%s584 + $0x238] sm:$0xff]
        %v2846 = vld [vmem:[%s584 + $0x240] sm:$0xf]
        %v2847 = vld [vmem:[%s584 + $0x244] sm:$0xff]
        %v2848 = vld [vmem:[%s584 + $0x24c] sm:$0xff]
        %v2849 = vld [vmem:[%s584 + $0x254] sm:$0xf]
        %v2850 = vld [vmem:[%s584 + $0x258] sm:$0xff]
        %v2851 = vld [vmem:[%s584 + $0x260] sm:$0xff]
        %v2852 = vld [vmem:[%s584 + $0x268] sm:$0xf]
        %v2853 = vld [vmem:[%s584 + $0x26c] sm:$0xff]
        %v2854 = vld [vmem:[%s584 + $0x274] sm:$0xff]
        %v2855 = vld [vmem:[%s584 + $0x27c] sm:$0xf]
        %v2856 = vld [vmem:[%s584 + $0x280] sm:$0xff]
        %v2857 = vld [vmem:[%s584 + $0x288] sm:$0xff]
        %v2858 = vld [vmem:[%s584 + $0x290] sm:$0xf]
        %v2859 = vld [vmem:[%s584 + $0x294] sm:$0xff]
        %v2860 = vld [vmem:[%s584 + $0x29c] sm:$0xff]
        %v2861 = vld [vmem:[%s584 + $0x2a4] sm:$0xf]
        %v2862 = vld [vmem:[%s584 + $0x2a8] sm:$0xff]
        %v2863 = vld [vmem:[%s584 + $0x2b0] sm:$0xff]
        %v2864 = vld [vmem:[%s584 + $0x2b8] sm:$0xf]
        %v2865 = vld [vmem:[%s584 + $0x2bc] sm:$0xff]
        %v2866 = vld [vmem:[%s584 + $0x2c4] sm:$0xff]
        %v2867 = vld [vmem:[%s584 + $0x2cc] sm:$0xf]
        %v2868 = vld [vmem:[%s584 + $0x2d0] sm:$0xff]
        %v2869 = vld [vmem:[%s584 + $0x2d8] sm:$0xff]
        %v2870 = vld [vmem:[%s584 + $0x2e0] sm:$0xf]
        %v2871 = vld [vmem:[%s584 + $0x2e4] sm:$0xff]
        %v2872 = vld [vmem:[%s584 + $0x2ec] sm:$0xff]
        %v2873 = vld [vmem:[%s584 + $0x2f4] sm:$0xf]
        %v2874 = vld [vmem:[%s584 + $0x2f8] sm:$0xff]
        %v2875 = vld [vmem:[%s584 + $0x300] sm:$0xff]
        %v2876 = vld [vmem:[%s584 + $0x308] sm:$0xf]
        %v2877 = vld [vmem:[%s584 + $0x30c] sm:$0xff]
        %v2878 = vld [vmem:[%s584 + $0x314] sm:$0xff]
        %v2879 = vld [vmem:[%s584 + $0x31c] sm:$0xf]
        %v2880 = vld [vmem:[%s584 + $0x320] sm:$0xff]
        %v2881 = vld [vmem:[%s584 + $0x328] sm:$0xff]
        %v2882 = vld [vmem:[%s584 + $0x330] sm:$0xf]
        %v2883 = vld [vmem:[%s584 + $0x334] sm:$0xff]
        %v2884 = vld [vmem:[%s584 + $0x33c] sm:$0xff]
        %v2885 = vld [vmem:[%s584 + $0x344] sm:$0xf]
        %v2886 = vld [vmem:[%s584 + $0x348] sm:$0xff]
        %v2887 = vld [vmem:[%s584 + $0x350] sm:$0xff]
        %v2888 = vld [vmem:[%s584 + $0x358] sm:$0xf]
        %v2889 = vld [vmem:[%s584 + $0x35c] sm:$0xff]
        %v2890 = vld [vmem:[%s584 + $0x364] sm:$0xff]
        %v2891 = vld [vmem:[%s584 + $0x36c] sm:$0xf]
        %v2892 = vld [vmem:[%s584 + $0x370] sm:$0xff]
        %v2893 = vld [vmem:[%s584 + $0x378] sm:$0xff]
        %v2894 = vld [vmem:[%s584 + $0x380] sm:$0xf]
        %v2895 = vld [vmem:[%s584 + $0x384] sm:$0xff]
        %v2896 = vld [vmem:[%s584 + $0x38c] sm:$0xff]
        %v2897 = vld [vmem:[%s584 + $0x394] sm:$0xf]
        %v2898 = vld [vmem:[%s584 + $0x398] sm:$0xff]
        %v2899 = vld [vmem:[%s584 + $0x3a0] sm:$0xff]
        %v2900 = vld [vmem:[%s584 + $0x3a8] sm:$0xf]
        %v2901 = vld [vmem:[%s584 + $0x3ac] sm:$0xff]
        %v2902 = vld [vmem:[%s584 + $0x3b4] sm:$0xff]
        %v2903 = vld [vmem:[%s584 + $0x3bc] sm:$0xf]
        %v2904 = vld [vmem:[%s584 + $0x3c0] sm:$0xff]
        %v2905 = vld [vmem:[%s584 + $0x3c8] sm:$0xff]
        %v2906 = vld [vmem:[%s584 + $0x3d0] sm:$0xf]
        %v2907 = vld [vmem:[%s584 + $0x3d4] sm:$0xff]
        %v2908 = vld [vmem:[%s584 + $0x3dc] sm:$0xff]
        %v2909 = vld [vmem:[%s584 + $0x3e4] sm:$0xf]
        %v2910 = vld [vmem:[%s584 + $0x3e8] sm:$0xff]
        %v2911 = vld [vmem:[%s584 + $0x3f0] sm:$0xff]
        %v2912 = vld [vmem:[%s584 + $0x3f8] sm:$0xf]
        %v2913 = vld [vmem:[%s584 + $0x3fc] sm:$0xff]
        %v2914 = vld [vmem:[%s584 + $0x404] sm:$0xff]
        %v2915 = vld [vmem:[%s584 + $0x40c] sm:$0xf]
        %v2916 = vld [vmem:[%s584 + $0x410] sm:$0xff]
        %v2917 = vld [vmem:[%s584 + $0x418] sm:$0xff]
        %v2918 = vld [vmem:[%s584 + $0x420] sm:$0xf]
        %v2919 = vld [vmem:[%s584 + $0x424] sm:$0xff]
        %v2920 = vld [vmem:[%s584 + $0x42c] sm:$0xff]
        %v2921 = vld [vmem:[%s584 + $0x434] sm:$0xf]
        %v2922 = vld [vmem:[%s584 + $0x438] sm:$0xff]
        %v2923 = vld [vmem:[%s584 + $0x440] sm:$0xff]
        %v2924 = vld [vmem:[%s584 + $0x448] sm:$0xf]
        %v2925 = vld [vmem:[%s584 + $0x44c] sm:$0xff]
        %v2926 = vld [vmem:[%s584 + $0x454] sm:$0xff]
        %v2927 = vld [vmem:[%s584 + $0x45c] sm:$0xf]
        %v2928 = vld [vmem:[%s584 + $0x460] sm:$0xff]
        %v2929 = vld [vmem:[%s584 + $0x468] sm:$0xff]
        %v2930 = vld [vmem:[%s584 + $0x470] sm:$0xf]
        %v2931 = vld [vmem:[%s584 + $0x474] sm:$0xff]
        %v2932 = vld [vmem:[%s584 + $0x47c] sm:$0xff]
        %v2933 = vld [vmem:[%s584 + $0x484] sm:$0xf]
        %v2934 = vld [vmem:[%s584 + $0x488] sm:$0xff]
        %v2935 = vld [vmem:[%s584 + $0x490] sm:$0xff]
        %v2936 = vld [vmem:[%s584 + $0x498] sm:$0xf]
        %v2937 = vld [vmem:[%s584 + $0x49c] sm:$0xff]
        %v2938 = vld [vmem:[%s584 + $0x4a4] sm:$0xff]
        %v2939 = vld [vmem:[%s584 + $0x4ac] sm:$0xf]
        %v2940 = vld [vmem:[%s584 + $0x4b0] sm:$0xff]
        %v2941 = vld [vmem:[%s584 + $0x4b8] sm:$0xff]
        %v2942 = vld [vmem:[%s584 + $0x4c0] sm:$0xf]
        %v2943 = vld [vmem:[%s584 + $0x4c4] sm:$0xff]
        %v2944 = vld [vmem:[%s584 + $0x4cc] sm:$0xff]
        %v2945 = vld [vmem:[%s584 + $0x4d4] sm:$0xf]
        %v2946 = vld [vmem:[%s584 + $0x4d8] sm:$0xff]
        %v2947 = vld [vmem:[%s584 + $0x4e0] sm:$0xff]
        %v2948 = vld [vmem:[%s584 + $0x4e8] sm:$0xf]
        %v2949 = vld [vmem:[%s584 + $0x4ec] sm:$0xff]
        %v2950 = vld [vmem:[%s584 + $0x4f4] sm:$0xff]
        %v2951 = vld [vmem:[%s584 + $0x4fc] sm:$0xf]
        %v3144 = vunpack.c.l.b16 %v2760
        %v3145 = vunpack.c.h.b16 %v2760
        %v3146 = vunpack.c.l.b16 %v2761
        %v3147 = vunpack.c.h.b16 %v2761
        %v3148 = vunpack.c.l.b16 %v2762
        %v3149 = vunpack.c.l.b16 %v2763
        %v3150 = vunpack.c.h.b16 %v2763
        %v3151 = vunpack.c.l.b16 %v2764
        %v3152 = vunpack.c.h.b16 %v2764
        %v3153 = vunpack.c.l.b16 %v2765
        %v3154 = vunpack.c.l.b16 %v2766
        %v3155 = vunpack.c.h.b16 %v2766
        %v3156 = vunpack.c.l.b16 %v2767
        %v3157 = vunpack.c.h.b16 %v2767
        %v3158 = vunpack.c.l.b16 %v2768
        %v3159 = vunpack.c.l.b16 %v2769
        %v3160 = vunpack.c.h.b16 %v2769
        %v3161 = vunpack.c.l.b16 %v2770
        %v3162 = vunpack.c.h.b16 %v2770
        %v3163 = vunpack.c.l.b16 %v2771
        %v3164 = vunpack.c.l.b16 %v2772
        %v3165 = vunpack.c.h.b16 %v2772
        %v3166 = vunpack.c.l.b16 %v2773
        %v3167 = vunpack.c.h.b16 %v2773
        %v3168 = vunpack.c.l.b16 %v2774
        %v3169 = vunpack.c.l.b16 %v2775
        %v3170 = vunpack.c.h.b16 %v2775
        %v3171 = vunpack.c.l.b16 %v2776
        %v3172 = vunpack.c.h.b16 %v2776
        %v3173 = vunpack.c.l.b16 %v2777
        %v3174 = vunpack.c.l.b16 %v2778
        %v3175 = vunpack.c.h.b16 %v2778
        %v3176 = vunpack.c.l.b16 %v2779
        %v3177 = vunpack.c.h.b16 %v2779
        %v3178 = vunpack.c.l.b16 %v2780
        %v3179 = vunpack.c.l.b16 %v2781
        %v3180 = vunpack.c.h.b16 %v2781
        %v3181 = vunpack.c.l.b16 %v2782
        %v3182 = vunpack.c.h.b16 %v2782
        %v3183 = vunpack.c.l.b16 %v2783
        %v3184 = vunpack.c.l.b16 %v2784
        %v3185 = vunpack.c.h.b16 %v2784
        %v3186 = vunpack.c.l.b16 %v2785
        %v3187 = vunpack.c.h.b16 %v2785
        %v3188 = vunpack.c.l.b16 %v2786
        %v3189 = vunpack.c.l.b16 %v2787
        %v3190 = vunpack.c.h.b16 %v2787
        %v3191 = vunpack.c.l.b16 %v2788
        %v3192 = vunpack.c.h.b16 %v2788
        %v3193 = vunpack.c.l.b16 %v2789
        %v3194 = vunpack.c.l.b16 %v2790
        %v3195 = vunpack.c.h.b16 %v2790
        %v3196 = vunpack.c.l.b16 %v2791
        %v3197 = vunpack.c.h.b16 %v2791
        %v3198 = vunpack.c.l.b16 %v2792
        %v3199 = vunpack.c.l.b16 %v2793
        %v3200 = vunpack.c.h.b16 %v2793
        %v3201 = vunpack.c.l.b16 %v2794
        %v3202 = vunpack.c.h.b16 %v2794
        %v3203 = vunpack.c.l.b16 %v2795
        %v3204 = vunpack.c.l.b16 %v2796
        %v3205 = vunpack.c.h.b16 %v2796
        %v3206 = vunpack.c.l.b16 %v2797
        %v3207 = vunpack.c.h.b16 %v2797
        %v3208 = vunpack.c.l.b16 %v2798
        %v3209 = vunpack.c.l.b16 %v2799
        %v3210 = vunpack.c.h.b16 %v2799
        %v3211 = vunpack.c.l.b16 %v2800
        %v3212 = vunpack.c.h.b16 %v2800
        %v3213 = vunpack.c.l.b16 %v2801
        %v3214 = vunpack.c.l.b16 %v2802
        %v3215 = vunpack.c.h.b16 %v2802
        %v3216 = vunpack.c.l.b16 %v2803
        %v3217 = vunpack.c.h.b16 %v2803
        %v3218 = vunpack.c.l.b16 %v2804
        %v3219 = vunpack.c.l.b16 %v2805
        %v3220 = vunpack.c.h.b16 %v2805
        %v3221 = vunpack.c.l.b16 %v2806
        %v3222 = vunpack.c.h.b16 %v2806
        %v3223 = vunpack.c.l.b16 %v2807
        %v3224 = vunpack.c.l.b16 %v2808
        %v3225 = vunpack.c.h.b16 %v2808
        %v3226 = vunpack.c.l.b16 %v2809
        %v3227 = vunpack.c.h.b16 %v2809
        %v3228 = vunpack.c.l.b16 %v2810
        %v3229 = vunpack.c.l.b16 %v2811
        %v3230 = vunpack.c.h.b16 %v2811
        %v3231 = vunpack.c.l.b16 %v2812
        %v3232 = vunpack.c.h.b16 %v2812
        %v3233 = vunpack.c.l.b16 %v2813
        %v3234 = vunpack.c.l.b16 %v2814
        %v3235 = vunpack.c.h.b16 %v2814
        %v3236 = vunpack.c.l.b16 %v2815
        %v3237 = vunpack.c.h.b16 %v2815
        %v3238 = vunpack.c.l.b16 %v2816
        %v3239 = vunpack.c.l.b16 %v2817
        %v3240 = vunpack.c.h.b16 %v2817
        %v3241 = vunpack.c.l.b16 %v2818
        %v3242 = vunpack.c.h.b16 %v2818
        %v3243 = vunpack.c.l.b16 %v2819
        %v3244 = vunpack.c.l.b16 %v2820
        %v3245 = vunpack.c.h.b16 %v2820
        %v3246 = vunpack.c.l.b16 %v2821
        %v3247 = vunpack.c.h.b16 %v2821
        %v3248 = vunpack.c.l.b16 %v2822
        %v3249 = vunpack.c.l.b16 %v2823
        %v3250 = vunpack.c.h.b16 %v2823
        %v3251 = vunpack.c.l.b16 %v2824
        %v3252 = vunpack.c.h.b16 %v2824
        %v3253 = vunpack.c.l.b16 %v2825
        %v3254 = vunpack.c.l.b16 %v2826
        %v3255 = vunpack.c.h.b16 %v2826
        %v3256 = vunpack.c.l.b16 %v2827
        %v3257 = vunpack.c.h.b16 %v2827
        %v3258 = vunpack.c.l.b16 %v2828
        %v3259 = vunpack.c.l.b16 %v2829
        %v3260 = vunpack.c.h.b16 %v2829
        %v3261 = vunpack.c.l.b16 %v2830
        %v3262 = vunpack.c.h.b16 %v2830
        %v3263 = vunpack.c.l.b16 %v2831
        %v3264 = vunpack.c.l.b16 %v2832
        %v3265 = vunpack.c.h.b16 %v2832
        %v3266 = vunpack.c.l.b16 %v2833
        %v3267 = vunpack.c.h.b16 %v2833
        %v3268 = vunpack.c.l.b16 %v2834
        %v3269 = vunpack.c.l.b16 %v2835
        %v3270 = vunpack.c.h.b16 %v2835
        %v3271 = vunpack.c.l.b16 %v2836
        %v3272 = vunpack.c.h.b16 %v2836
        %v3273 = vunpack.c.l.b16 %v2837
        %v3274 = vunpack.c.l.b16 %v2838
        %v3275 = vunpack.c.h.b16 %v2838
        %v3276 = vunpack.c.l.b16 %v2839
        %v3277 = vunpack.c.h.b16 %v2839
        %v3278 = vunpack.c.l.b16 %v2840
        %v3279 = vunpack.c.l.b16 %v2841
        %v3280 = vunpack.c.h.b16 %v2841
        %v3281 = vunpack.c.l.b16 %v2842
        %v3282 = vunpack.c.h.b16 %v2842
        %v3283 = vunpack.c.l.b16 %v2843
        %v3284 = vunpack.c.l.b16 %v2844
        %v3285 = vunpack.c.h.b16 %v2844
        %v3286 = vunpack.c.l.b16 %v2845
        %v3287 = vunpack.c.h.b16 %v2845
        %v3288 = vunpack.c.l.b16 %v2846
        %v3289 = vunpack.c.l.b16 %v2847
        %v3290 = vunpack.c.h.b16 %v2847
        %v3291 = vunpack.c.l.b16 %v2848
        %v3292 = vunpack.c.h.b16 %v2848
        %v3293 = vunpack.c.l.b16 %v2849
        %v3294 = vunpack.c.l.b16 %v2850
        %v3295 = vunpack.c.h.b16 %v2850
        %v3296 = vunpack.c.l.b16 %v2851
        %v3297 = vunpack.c.h.b16 %v2851
        %v3298 = vunpack.c.l.b16 %v2852
        %v3299 = vunpack.c.l.b16 %v2853
        %v3300 = vunpack.c.h.b16 %v2853
        %v3301 = vunpack.c.l.b16 %v2854
        %v3302 = vunpack.c.h.b16 %v2854
        %v3303 = vunpack.c.l.b16 %v2855
        %v3304 = vunpack.c.l.b16 %v2856
        %v3305 = vunpack.c.h.b16 %v2856
        %v3306 = vunpack.c.l.b16 %v2857
        %v3307 = vunpack.c.h.b16 %v2857
        %v3308 = vunpack.c.l.b16 %v2858
        %v3309 = vunpack.c.l.b16 %v2859
        %v3310 = vunpack.c.h.b16 %v2859
        %v3311 = vunpack.c.l.b16 %v2860
        %v3312 = vunpack.c.h.b16 %v2860
        %v3313 = vunpack.c.l.b16 %v2861
        %v3314 = vunpack.c.l.b16 %v2862
        %v3315 = vunpack.c.h.b16 %v2862
        %v3316 = vunpack.c.l.b16 %v2863
        %v3317 = vunpack.c.h.b16 %v2863
        %v3318 = vunpack.c.l.b16 %v2864
        %v3319 = vunpack.c.l.b16 %v2865
        %v3320 = vunpack.c.h.b16 %v2865
        %v3321 = vunpack.c.l.b16 %v2866
        %v3322 = vunpack.c.h.b16 %v2866
        %v3323 = vunpack.c.l.b16 %v2867
        %v3324 = vunpack.c.l.b16 %v2868
        %v3325 = vunpack.c.h.b16 %v2868
        %v3326 = vunpack.c.l.b16 %v2869
        %v3327 = vunpack.c.h.b16 %v2869
        %v3328 = vunpack.c.l.b16 %v2870
        %v3329 = vunpack.c.l.b16 %v2871
        %v3330 = vunpack.c.h.b16 %v2871
        %v3331 = vunpack.c.l.b16 %v2872
        %v3332 = vunpack.c.h.b16 %v2872
        %v3333 = vunpack.c.l.b16 %v2873
        %v3334 = vunpack.c.l.b16 %v2874
        %v3335 = vunpack.c.h.b16 %v2874
        %v3336 = vunpack.c.l.b16 %v2875
        %v3337 = vunpack.c.h.b16 %v2875
        %v3338 = vunpack.c.l.b16 %v2876
        %v3339 = vunpack.c.l.b16 %v2877
        %v3340 = vunpack.c.h.b16 %v2877
        %v3341 = vunpack.c.l.b16 %v2878
        %v3342 = vunpack.c.h.b16 %v2878
        %v3343 = vunpack.c.l.b16 %v2879
        %v3344 = vunpack.c.l.b16 %v2880
        %v3345 = vunpack.c.h.b16 %v2880
        %v3346 = vunpack.c.l.b16 %v2881
        %v3347 = vunpack.c.h.b16 %v2881
        %v3348 = vunpack.c.l.b16 %v2882
        %v3349 = vunpack.c.l.b16 %v2883
        %v3350 = vunpack.c.h.b16 %v2883
        %v3351 = vunpack.c.l.b16 %v2884
        %v3352 = vunpack.c.h.b16 %v2884
        %v3353 = vunpack.c.l.b16 %v2885
        %v3354 = vunpack.c.l.b16 %v2886
        %v3355 = vunpack.c.h.b16 %v2886
        %v3356 = vunpack.c.l.b16 %v2887
        %v3357 = vunpack.c.h.b16 %v2887
        %v3358 = vunpack.c.l.b16 %v2888
        %v3359 = vunpack.c.l.b16 %v2889
        %v3360 = vunpack.c.h.b16 %v2889
        %v3361 = vunpack.c.l.b16 %v2890
        %v3362 = vunpack.c.h.b16 %v2890
        %v3363 = vunpack.c.l.b16 %v2891
        %v3364 = vunpack.c.l.b16 %v2892
        %v3365 = vunpack.c.h.b16 %v2892
        %v3366 = vunpack.c.l.b16 %v2893
        %v3367 = vunpack.c.h.b16 %v2893
        %v3368 = vunpack.c.l.b16 %v2894
        %v3369 = vunpack.c.l.b16 %v2895
        %v3370 = vunpack.c.h.b16 %v2895
        %v3371 = vunpack.c.l.b16 %v2896
        %v3372 = vunpack.c.h.b16 %v2896
        %v3373 = vunpack.c.l.b16 %v2897
        %v3374 = vunpack.c.l.b16 %v2898
        %v3375 = vunpack.c.h.b16 %v2898
        %v3376 = vunpack.c.l.b16 %v2899
        %v3377 = vunpack.c.h.b16 %v2899
        %v3378 = vunpack.c.l.b16 %v2900
        %v3379 = vunpack.c.l.b16 %v2901
        %v3380 = vunpack.c.h.b16 %v2901
        %v3381 = vunpack.c.l.b16 %v2902
        %v3382 = vunpack.c.h.b16 %v2902
        %v3383 = vunpack.c.l.b16 %v2903
        %v3384 = vunpack.c.l.b16 %v2904
        %v3385 = vunpack.c.h.b16 %v2904
        %v3386 = vunpack.c.l.b16 %v2905
        %v3387 = vunpack.c.h.b16 %v2905
        %v3388 = vunpack.c.l.b16 %v2906
        %v3389 = vunpack.c.l.b16 %v2907
        %v3390 = vunpack.c.h.b16 %v2907
        %v3391 = vunpack.c.l.b16 %v2908
        %v3392 = vunpack.c.h.b16 %v2908
        %v3393 = vunpack.c.l.b16 %v2909
        %v3394 = vunpack.c.l.b16 %v2910
        %v3395 = vunpack.c.h.b16 %v2910
        %v3396 = vunpack.c.l.b16 %v2911
        %v3397 = vunpack.c.h.b16 %v2911
        %v3398 = vunpack.c.l.b16 %v2912
        %v3399 = vunpack.c.l.b16 %v2913
        %v3400 = vunpack.c.h.b16 %v2913
        %v3401 = vunpack.c.l.b16 %v2914
        %v3402 = vunpack.c.h.b16 %v2914
        %v3403 = vunpack.c.l.b16 %v2915
        %v3404 = vunpack.c.l.b16 %v2916
        %v3405 = vunpack.c.h.b16 %v2916
        %v3406 = vunpack.c.l.b16 %v2917
        %v3407 = vunpack.c.h.b16 %v2917
        %v3408 = vunpack.c.l.b16 %v2918
        %v3409 = vunpack.c.l.b16 %v2919
        %v3410 = vunpack.c.h.b16 %v2919
        %v3411 = vunpack.c.l.b16 %v2920
        %v3412 = vunpack.c.h.b16 %v2920
        %v3413 = vunpack.c.l.b16 %v2921
        %v3414 = vunpack.c.l.b16 %v2922
        %v3415 = vunpack.c.h.b16 %v2922
        %v3416 = vunpack.c.l.b16 %v2923
        %v3417 = vunpack.c.h.b16 %v2923
        %v3418 = vunpack.c.l.b16 %v2924
        %v3419 = vunpack.c.l.b16 %v2925
        %v3420 = vunpack.c.h.b16 %v2925
        %v3421 = vunpack.c.l.b16 %v2926
        %v3422 = vunpack.c.h.b16 %v2926
        %v3423 = vunpack.c.l.b16 %v2927
        %v3424 = vunpack.c.l.b16 %v2928
        %v3425 = vunpack.c.h.b16 %v2928
        %v3426 = vunpack.c.l.b16 %v2929
        %v3427 = vunpack.c.h.b16 %v2929
        %v3428 = vunpack.c.l.b16 %v2930
        %v3429 = vunpack.c.l.b16 %v2931
        %v3430 = vunpack.c.h.b16 %v2931
        %v3431 = vunpack.c.l.b16 %v2932
        %v3432 = vunpack.c.h.b16 %v2932
        %v3433 = vunpack.c.l.b16 %v2933
        %v3434 = vunpack.c.l.b16 %v2934
        %v3435 = vunpack.c.h.b16 %v2934
        %v3436 = vunpack.c.l.b16 %v2935
        %v3437 = vunpack.c.h.b16 %v2935
        %v3438 = vunpack.c.l.b16 %v2936
        %v3439 = vunpack.c.l.b16 %v2937
        %v3440 = vunpack.c.h.b16 %v2937
        %v3441 = vunpack.c.l.b16 %v2938
        %v3442 = vunpack.c.h.b16 %v2938
        %v3443 = vunpack.c.l.b16 %v2939
        %v3444 = vunpack.c.l.b16 %v2940
        %v3445 = vunpack.c.h.b16 %v2940
        %v3446 = vunpack.c.l.b16 %v2941
        %v3447 = vunpack.c.h.b16 %v2941
        %v3448 = vunpack.c.l.b16 %v2942
        %v3449 = vunpack.c.l.b16 %v2943
        %v3450 = vunpack.c.h.b16 %v2943
        %v3451 = vunpack.c.l.b16 %v2944
        %v3452 = vunpack.c.h.b16 %v2944
        %v3453 = vunpack.c.l.b16 %v2945
        %v3454 = vunpack.c.l.b16 %v2946
        %v3455 = vunpack.c.h.b16 %v2946
        %v3456 = vunpack.c.l.b16 %v2947
        %v3457 = vunpack.c.h.b16 %v2947
        %v3458 = vunpack.c.l.b16 %v2948
        %v3459 = vunpack.c.l.b16 %v2949
        %v3460 = vunpack.c.h.b16 %v2949
        %v3461 = vunpack.c.l.b16 %v2950
        %v3462 = vunpack.c.h.b16 %v2950
        %v3463 = vunpack.c.l.b16 %v2951
        %v3464 = vpack.c.b16 %v3149, %v3144
        %v3465 = vpack.c.b16 %v3150, %v3145
        %v3466 = vpack.c.b16 %v3151, %v3146
        %v3467 = vpack.c.b16 %v3152, %v3147
        %v3468 = vpack.c.b16 %v3153, %v3148
        %v3469 = vpack.c.b16 %v3159, %v3154
        %v3470 = vpack.c.b16 %v3160, %v3155
        %v3471 = vpack.c.b16 %v3161, %v3156
        %v3472 = vpack.c.b16 %v3162, %v3157
        %v3473 = vpack.c.b16 %v3163, %v3158
        %v3474 = vpack.c.b16 %v3169, %v3164
        %v3475 = vpack.c.b16 %v3170, %v3165
        %v3476 = vpack.c.b16 %v3171, %v3166
        %v3477 = vpack.c.b16 %v3172, %v3167
        %v3478 = vpack.c.b16 %v3173, %v3168
        %v3479 = vpack.c.b16 %v3179, %v3174
        %v3480 = vpack.c.b16 %v3180, %v3175
        %v3481 = vpack.c.b16 %v3181, %v3176
        %v3482 = vpack.c.b16 %v3182, %v3177
        %v3483 = vpack.c.b16 %v3183, %v3178
        %v3484 = vpack.c.b16 %v3189, %v3184
        %v3485 = vpack.c.b16 %v3190, %v3185
        %v3486 = vpack.c.b16 %v3191, %v3186
        %v3487 = vpack.c.b16 %v3192, %v3187
        %v3488 = vpack.c.b16 %v3193, %v3188
        %v3489 = vpack.c.b16 %v3199, %v3194
        %v3490 = vpack.c.b16 %v3200, %v3195
        %v3491 = vpack.c.b16 %v3201, %v3196
        %v3492 = vpack.c.b16 %v3202, %v3197
        %v3493 = vpack.c.b16 %v3203, %v3198
        %v3494 = vpack.c.b16 %v3209, %v3204
        %v3495 = vpack.c.b16 %v3210, %v3205
        %v3496 = vpack.c.b16 %v3211, %v3206
        %v3497 = vpack.c.b16 %v3212, %v3207
        %v3498 = vpack.c.b16 %v3213, %v3208
        %v3499 = vpack.c.b16 %v3219, %v3214
        %v3500 = vpack.c.b16 %v3220, %v3215
        %v3501 = vpack.c.b16 %v3221, %v3216
        %v3502 = vpack.c.b16 %v3222, %v3217
        %v3503 = vpack.c.b16 %v3223, %v3218
        %v3504 = vpack.c.b16 %v3229, %v3224
        %v3505 = vpack.c.b16 %v3230, %v3225
        %v3506 = vpack.c.b16 %v3231, %v3226
        %v3507 = vpack.c.b16 %v3232, %v3227
        %v3508 = vpack.c.b16 %v3233, %v3228
        %v3509 = vpack.c.b16 %v3239, %v3234
        %v3510 = vpack.c.b16 %v3240, %v3235
        %v3511 = vpack.c.b16 %v3241, %v3236
        %v3512 = vpack.c.b16 %v3242, %v3237
        %v3513 = vpack.c.b16 %v3243, %v3238
        %v3514 = vpack.c.b16 %v3249, %v3244
        %v3515 = vpack.c.b16 %v3250, %v3245
        %v3516 = vpack.c.b16 %v3251, %v3246
        %v3517 = vpack.c.b16 %v3252, %v3247
        %v3518 = vpack.c.b16 %v3253, %v3248
        %v3519 = vpack.c.b16 %v3259, %v3254
        %v3520 = vpack.c.b16 %v3260, %v3255
        %v3521 = vpack.c.b16 %v3261, %v3256
        %v3522 = vpack.c.b16 %v3262, %v3257
        %v3523 = vpack.c.b16 %v3263, %v3258
        %v3524 = vpack.c.b16 %v3269, %v3264
        %v3525 = vpack.c.b16 %v3270, %v3265
        %v3526 = vpack.c.b16 %v3271, %v3266
        %v3527 = vpack.c.b16 %v3272, %v3267
        %v3528 = vpack.c.b16 %v3273, %v3268
        %v3529 = vpack.c.b16 %v3279, %v3274
        %v3530 = vpack.c.b16 %v3280, %v3275
        %v3531 = vpack.c.b16 %v3281, %v3276
        %v3532 = vpack.c.b16 %v3282, %v3277
        %v3533 = vpack.c.b16 %v3283, %v3278
        %v3534 = vpack.c.b16 %v3289, %v3284
        %v3535 = vpack.c.b16 %v3290, %v3285
        %v3536 = vpack.c.b16 %v3291, %v3286
        %v3537 = vpack.c.b16 %v3292, %v3287
        %v3538 = vpack.c.b16 %v3293, %v3288
        %v3539 = vpack.c.b16 %v3299, %v3294
        %v3540 = vpack.c.b16 %v3300, %v3295
        %v3541 = vpack.c.b16 %v3301, %v3296
        %v3542 = vpack.c.b16 %v3302, %v3297
        %v3543 = vpack.c.b16 %v3303, %v3298
        %v3544 = vpack.c.b16 %v3309, %v3304
        %v3545 = vpack.c.b16 %v3310, %v3305
        %v3546 = vpack.c.b16 %v3311, %v3306
        %v3547 = vpack.c.b16 %v3312, %v3307
        %v3548 = vpack.c.b16 %v3313, %v3308
        %v3549 = vpack.c.b16 %v3319, %v3314
        %v3550 = vpack.c.b16 %v3320, %v3315
        %v3551 = vpack.c.b16 %v3321, %v3316
        %v3552 = vpack.c.b16 %v3322, %v3317
        %v3553 = vpack.c.b16 %v3323, %v3318
        %v3554 = vpack.c.b16 %v3329, %v3324
        %v3555 = vpack.c.b16 %v3330, %v3325
        %v3556 = vpack.c.b16 %v3331, %v3326
        %v3557 = vpack.c.b16 %v3332, %v3327
        %v3558 = vpack.c.b16 %v3333, %v3328
        %v3559 = vpack.c.b16 %v3339, %v3334
        %v3560 = vpack.c.b16 %v3340, %v3335
        %v3561 = vpack.c.b16 %v3341, %v3336
        %v3562 = vpack.c.b16 %v3342, %v3337
        %v3563 = vpack.c.b16 %v3343, %v3338
        %v3564 = vpack.c.b16 %v3349, %v3344
        %v3565 = vpack.c.b16 %v3350, %v3345
        %v3566 = vpack.c.b16 %v3351, %v3346
        %v3567 = vpack.c.b16 %v3352, %v3347
        %v3568 = vpack.c.b16 %v3353, %v3348
        %v3569 = vpack.c.b16 %v3359, %v3354
        %v3570 = vpack.c.b16 %v3360, %v3355
        %v3571 = vpack.c.b16 %v3361, %v3356
        %v3572 = vpack.c.b16 %v3362, %v3357
        %v3573 = vpack.c.b16 %v3363, %v3358
        %v3574 = vpack.c.b16 %v3369, %v3364
        %v3575 = vpack.c.b16 %v3370, %v3365
        %v3576 = vpack.c.b16 %v3371, %v3366
        %v3577 = vpack.c.b16 %v3372, %v3367
        %v3578 = vpack.c.b16 %v3373, %v3368
        %v3579 = vpack.c.b16 %v3379, %v3374
        %v3580 = vpack.c.b16 %v3380, %v3375
        %v3581 = vpack.c.b16 %v3381, %v3376
        %v3582 = vpack.c.b16 %v3382, %v3377
        %v3583 = vpack.c.b16 %v3383, %v3378
        %v3584 = vpack.c.b16 %v3389, %v3384
        %v3585 = vpack.c.b16 %v3390, %v3385
        %v3586 = vpack.c.b16 %v3391, %v3386
        %v3587 = vpack.c.b16 %v3392, %v3387
        %v3588 = vpack.c.b16 %v3393, %v3388
        %v3589 = vpack.c.b16 %v3399, %v3394
        %v3590 = vpack.c.b16 %v3400, %v3395
        %v3591 = vpack.c.b16 %v3401, %v3396
        %v3592 = vpack.c.b16 %v3402, %v3397
        %v3593 = vpack.c.b16 %v3403, %v3398
        %v3594 = vpack.c.b16 %v3409, %v3404
        %v3595 = vpack.c.b16 %v3410, %v3405
        %v3596 = vpack.c.b16 %v3411, %v3406
        %v3597 = vpack.c.b16 %v3412, %v3407
        %v3598 = vpack.c.b16 %v3413, %v3408
        %v3599 = vpack.c.b16 %v3419, %v3414
        %v3600 = vpack.c.b16 %v3420, %v3415
        %v3601 = vpack.c.b16 %v3421, %v3416
        %v3602 = vpack.c.b16 %v3422, %v3417
        %v3603 = vpack.c.b16 %v3423, %v3418
        %v3604 = vpack.c.b16 %v3429, %v3424
        %v3605 = vpack.c.b16 %v3430, %v3425
        %v3606 = vpack.c.b16 %v3431, %v3426
        %v3607 = vpack.c.b16 %v3432, %v3427
        %v3608 = vpack.c.b16 %v3433, %v3428
        %v3609 = vpack.c.b16 %v3439, %v3434
        %v3610 = vpack.c.b16 %v3440, %v3435
        %v3611 = vpack.c.b16 %v3441, %v3436
        %v3612 = vpack.c.b16 %v3442, %v3437
        %v3613 = vpack.c.b16 %v3443, %v3438
        %v3614 = vpack.c.b16 %v3449, %v3444
        %v3615 = vpack.c.b16 %v3450, %v3445
        %v3616 = vpack.c.b16 %v3451, %v3446
        %v3617 = vpack.c.b16 %v3452, %v3447
        %v3618 = vpack.c.b16 %v3453, %v3448
        %v3619 = vpack.c.b16 %v3459, %v3454
        %v3620 = vpack.c.b16 %v3460, %v3455
        %v3621 = vpack.c.b16 %v3461, %v3456
        %v3622 = vpack.c.b16 %v3462, %v3457
        %v3623 = vpack.c.b16 %v3463, %v3458
        %3784 = vmatpush.bf16.msra.mxu0 %v3499
        %3785 = vmatpush.bf16.msra.mxu0 %v3494
        %3786 = vmatpush.bf16.msra.mxu0 %v3489
        %3787 = vmatpush.bf16.msra.mxu0 %v3484
        %3788 = vmatpush.bf16.msra.mxu0 %v3479
        %3789 = vmatpush.bf16.msra.mxu0 %v3474
        %3790 = vmatpush.bf16.msra.mxu0 %v3469
        %3791 = vmatpush.bf16.msra.mxu0 %v3464
        %3792 = vmatmul.bf16.gmra.mxu0 %v2748
        %v3793 = vpop.f32.mrf.mxu0
        %v3794 = vadd.f32 0.0, %v3793
        %v3795 = vpop.f32.mrf.mxu0
        %v3796 = vadd.f32 0.0, %v3795
        %3797 = vdwg.mxu0
        %3798 = vmatpush.bf16.msra.mxu0 %v3539
        %3799 = vmatpush.bf16.msra.mxu0 %v3534
        %3800 = vmatpush.bf16.msra.mxu0 %v3529
        %3801 = vmatpush.bf16.msra.mxu0 %v3524
        %3802 = vmatpush.bf16.msra.mxu0 %v3519
        %3803 = vmatpush.bf16.msra.mxu0 %v3514
        %3804 = vmatpush.bf16.msra.mxu0 %v3509
        %3805 = vmatpush.bf16.msra.mxu0 %v3504
        %3806 = vmatmul.bf16.gmra.mxu0 %v2749
        %v3807 = vpop.f32.mrf.mxu0
        %v3808 = vadd.f32 %v3794, %v3807
        %v3809 = vpop.f32.mrf.mxu0
        %v3810 = vadd.f32 %v3796, %v3809
        %3811 = vdwg.mxu0
        %3812 = vmatpush.bf16.msra.mxu0 %v3579
        %3813 = vmatpush.bf16.msra.mxu0 %v3574
        %3814 = vmatpush.bf16.msra.mxu0 %v3569
        %3815 = vmatpush.bf16.msra.mxu0 %v3564
        %3816 = vmatpush.bf16.msra.mxu0 %v3559
        %3817 = vmatpush.bf16.msra.mxu0 %v3554
        %3818 = vmatpush.bf16.msra.mxu0 %v3549
        %3819 = vmatpush.bf16.msra.mxu0 %v3544
        %3820 = vmatmul.bf16.gmra.mxu0 %v2750
        %v3821 = vpop.f32.mrf.mxu0
        %v3822 = vadd.f32 %v3808, %v3821
        %v3823 = vpop.f32.mrf.mxu0
        %v3824 = vadd.f32 %v3810, %v3823
        %3825 = vdwg.mxu0
        %3826 = vmatpush.bf16.msra.mxu0 %v3619
        %3827 = vmatpush.bf16.msra.mxu0 %v3614
        %3828 = vmatpush.bf16.msra.mxu0 %v3609
        %3829 = vmatpush.bf16.msra.mxu0 %v3604
        %3830 = vmatpush.bf16.msra.mxu0 %v3599
        %3831 = vmatpush.bf16.msra.mxu0 %v3594
        %3832 = vmatpush.bf16.msra.mxu0 %v3589
        %3833 = vmatpush.bf16.msra.mxu0 %v3584
        %3834 = vmatmul.bf16.gmra.mxu0 %v2751
        %v3835 = vpop.f32.mrf.mxu0
        %v3836 = vadd.f32 %v3822, %v3835
        %v3837 = vpop.f32.mrf.mxu0
        %v3838 = vadd.f32 %v3824, %v3837
        %3839 = vdwg.mxu0
        %3840 = vmatpush.bf16.msra.mxu0 %v3500
        %3841 = vmatpush.bf16.msra.mxu0 %v3495
        %3842 = vmatpush.bf16.msra.mxu0 %v3490
        %3843 = vmatpush.bf16.msra.mxu0 %v3485
        %3844 = vmatpush.bf16.msra.mxu0 %v3480
        %3845 = vmatpush.bf16.msra.mxu0 %v3475
        %3846 = vmatpush.bf16.msra.mxu0 %v3470
        %3847 = vmatpush.bf16.msra.mxu0 %v3465
        %3848 = vmatmul.bf16.gmra.mxu0 %v2748
        %v3849 = vpop.f32.mrf.mxu0
        %v3850 = vadd.f32 0.0, %v3849
        %v3851 = vpop.f32.mrf.mxu0
        %v3852 = vadd.f32 0.0, %v3851
        %3853 = vdwg.mxu0
        %3854 = vmatpush.bf16.msra.mxu0 %v3540
        %3855 = vmatpush.bf16.msra.mxu0 %v3535
        %3856 = vmatpush.bf16.msra.mxu0 %v3530
        %3857 = vmatpush.bf16.msra.mxu0 %v3525
        %3858 = vmatpush.bf16.msra.mxu0 %v3520
        %3859 = vmatpush.bf16.msra.mxu0 %v3515
        %3860 = vmatpush.bf16.msra.mxu0 %v3510
        %3861 = vmatpush.bf16.msra.mxu0 %v3505
        %3862 = vmatmul.bf16.gmra.mxu0 %v2749
        %v3863 = vpop.f32.mrf.mxu0
        %v3864 = vadd.f32 %v3850, %v3863
        %v3865 = vpop.f32.mrf.mxu0
        %v3866 = vadd.f32 %v3852, %v3865
        %3867 = vdwg.mxu0
        %3868 = vmatpush.bf16.msra.mxu0 %v3580
        %3869 = vmatpush.bf16.msra.mxu0 %v3575
        %3870 = vmatpush.bf16.msra.mxu0 %v3570
        %3871 = vmatpush.bf16.msra.mxu0 %v3565
        %3872 = vmatpush.bf16.msra.mxu0 %v3560
        %3873 = vmatpush.bf16.msra.mxu0 %v3555
        %3874 = vmatpush.bf16.msra.mxu0 %v3550
        %3875 = vmatpush.bf16.msra.mxu0 %v3545
        %3876 = vmatmul.bf16.gmra.mxu0 %v2750
        %v3877 = vpop.f32.mrf.mxu0
        %v3878 = vadd.f32 %v3864, %v3877
        %v3879 = vpop.f32.mrf.mxu0
        %v3880 = vadd.f32 %v3866, %v3879
        %3881 = vdwg.mxu0
        %3882 = vmatpush.bf16.msra.mxu0 %v3620
        %3883 = vmatpush.bf16.msra.mxu0 %v3615
        %3884 = vmatpush.bf16.msra.mxu0 %v3610
        %3885 = vmatpush.bf16.msra.mxu0 %v3605
        %3886 = vmatpush.bf16.msra.mxu0 %v3600
        %3887 = vmatpush.bf16.msra.mxu0 %v3595
        %3888 = vmatpush.bf16.msra.mxu0 %v3590
        %3889 = vmatpush.bf16.msra.mxu0 %v3585
        %3890 = vmatmul.bf16.gmra.mxu0 %v2751
        %v3891 = vpop.f32.mrf.mxu0
        %v3892 = vadd.f32 %v3878, %v3891
        %v3893 = vpop.f32.mrf.mxu0
        %v3894 = vadd.f32 %v3880, %v3893
        %3895 = vdwg.mxu0
        %3896 = vmatpush.bf16.msra.mxu0 %v3501
        %3897 = vmatpush.bf16.msra.mxu0 %v3496
        %3898 = vmatpush.bf16.msra.mxu0 %v3491
        %3899 = vmatpush.bf16.msra.mxu0 %v3486
        %3900 = vmatpush.bf16.msra.mxu0 %v3481
        %3901 = vmatpush.bf16.msra.mxu0 %v3476
        %3902 = vmatpush.bf16.msra.mxu0 %v3471
        %3903 = vmatpush.bf16.msra.mxu0 %v3466
        %3904 = vmatmul.bf16.gmra.mxu0 %v2748
        %v3905 = vpop.f32.mrf.mxu0
        %v3906 = vadd.f32 0.0, %v3905
        %v3907 = vpop.f32.mrf.mxu0
        %v3908 = vadd.f32 0.0, %v3907
        %3909 = vdwg.mxu0
        %3910 = vmatpush.bf16.msra.mxu0 %v3541
        %3911 = vmatpush.bf16.msra.mxu0 %v3536
        %3912 = vmatpush.bf16.msra.mxu0 %v3531
        %3913 = vmatpush.bf16.msra.mxu0 %v3526
        %3914 = vmatpush.bf16.msra.mxu0 %v3521
        %3915 = vmatpush.bf16.msra.mxu0 %v3516
        %3916 = vmatpush.bf16.msra.mxu0 %v3511
        %3917 = vmatpush.bf16.msra.mxu0 %v3506
        %3918 = vmatmul.bf16.gmra.mxu0 %v2749
        %v3919 = vpop.f32.mrf.mxu0
        %v3920 = vadd.f32 %v3906, %v3919
        %v3921 = vpop.f32.mrf.mxu0
        %v3922 = vadd.f32 %v3908, %v3921
        %3923 = vdwg.mxu0
        %3924 = vmatpush.bf16.msra.mxu0 %v3581
        %3925 = vmatpush.bf16.msra.mxu0 %v3576
        %3926 = vmatpush.bf16.msra.mxu0 %v3571
        %3927 = vmatpush.bf16.msra.mxu0 %v3566
        %3928 = vmatpush.bf16.msra.mxu0 %v3561
        %3929 = vmatpush.bf16.msra.mxu0 %v3556
        %3930 = vmatpush.bf16.msra.mxu0 %v3551
        %3931 = vmatpush.bf16.msra.mxu0 %v3546
        %3932 = vmatmul.bf16.gmra.mxu0 %v2750
        %v3933 = vpop.f32.mrf.mxu0
        %v3934 = vadd.f32 %v3920, %v3933
        %v3935 = vpop.f32.mrf.mxu0
        %v3936 = vadd.f32 %v3922, %v3935
        %3937 = vdwg.mxu0
        %3938 = vmatpush.bf16.msra.mxu0 %v3621
        %3939 = vmatpush.bf16.msra.mxu0 %v3616
        %3940 = vmatpush.bf16.msra.mxu0 %v3611
        %3941 = vmatpush.bf16.msra.mxu0 %v3606
        %3942 = vmatpush.bf16.msra.mxu0 %v3601
        %3943 = vmatpush.bf16.msra.mxu0 %v3596
        %3944 = vmatpush.bf16.msra.mxu0 %v3591
        %3945 = vmatpush.bf16.msra.mxu0 %v3586
        %3946 = vmatmul.bf16.gmra.mxu0 %v2751
        %v3947 = vpop.f32.mrf.mxu0
        %v3948 = vadd.f32 %v3934, %v3947
        %v3949 = vpop.f32.mrf.mxu0
        %v3950 = vadd.f32 %v3936, %v3949
        %3951 = vdwg.mxu0
        %3952 = vmatpush.bf16.msra.mxu0 %v3502
        %3953 = vmatpush.bf16.msra.mxu0 %v3497
        %3954 = vmatpush.bf16.msra.mxu0 %v3492
        %3955 = vmatpush.bf16.msra.mxu0 %v3487
        %3956 = vmatpush.bf16.msra.mxu0 %v3482
        %3957 = vmatpush.bf16.msra.mxu0 %v3477
        %3958 = vmatpush.bf16.msra.mxu0 %v3472
        %3959 = vmatpush.bf16.msra.mxu0 %v3467
        %3960 = vmatmul.bf16.gmra.mxu0 %v2748
        %v3961 = vpop.f32.mrf.mxu0
        %v3962 = vadd.f32 0.0, %v3961
        %v3963 = vpop.f32.mrf.mxu0
        %v3964 = vadd.f32 0.0, %v3963
        %3965 = vdwg.mxu0
        %3966 = vmatpush.bf16.msra.mxu0 %v3542
        %3967 = vmatpush.bf16.msra.mxu0 %v3537
        %3968 = vmatpush.bf16.msra.mxu0 %v3532
        %3969 = vmatpush.bf16.msra.mxu0 %v3527
        %3970 = vmatpush.bf16.msra.mxu0 %v3522
        %3971 = vmatpush.bf16.msra.mxu0 %v3517
        %3972 = vmatpush.bf16.msra.mxu0 %v3512
        %3973 = vmatpush.bf16.msra.mxu0 %v3507
        %3974 = vmatmul.bf16.gmra.mxu0 %v2749
        %v3975 = vpop.f32.mrf.mxu0
        %v3976 = vadd.f32 %v3962, %v3975
        %v3977 = vpop.f32.mrf.mxu0
        %v3978 = vadd.f32 %v3964, %v3977
        %3979 = vdwg.mxu0
        %3980 = vmatpush.bf16.msra.mxu0 %v3582
        %3981 = vmatpush.bf16.msra.mxu0 %v3577
        %3982 = vmatpush.bf16.msra.mxu0 %v3572
        %3983 = vmatpush.bf16.msra.mxu0 %v3567
        %3984 = vmatpush.bf16.msra.mxu0 %v3562
        %3985 = vmatpush.bf16.msra.mxu0 %v3557
        %3986 = vmatpush.bf16.msra.mxu0 %v3552
        %3987 = vmatpush.bf16.msra.mxu0 %v3547
        %3988 = vmatmul.bf16.gmra.mxu0 %v2750
        %v3989 = vpop.f32.mrf.mxu0
        %v3990 = vadd.f32 %v3976, %v3989
        %v3991 = vpop.f32.mrf.mxu0
        %v3992 = vadd.f32 %v3978, %v3991
        %3993 = vdwg.mxu0
        %3994 = vmatpush.bf16.msra.mxu0 %v3622
        %3995 = vmatpush.bf16.msra.mxu0 %v3617
        %3996 = vmatpush.bf16.msra.mxu0 %v3612
        %3997 = vmatpush.bf16.msra.mxu0 %v3607
        %3998 = vmatpush.bf16.msra.mxu0 %v3602
        %3999 = vmatpush.bf16.msra.mxu0 %v3597
        %4000 = vmatpush.bf16.msra.mxu0 %v3592
        %4001 = vmatpush.bf16.msra.mxu0 %v3587
        %4002 = vmatmul.bf16.gmra.mxu0 %v2751
        %v4003 = vpop.f32.mrf.mxu0
        %v4004 = vadd.f32 %v3990, %v4003
        %v4005 = vpop.f32.mrf.mxu0
        %v4006 = vadd.f32 %v3992, %v4005
        %4007 = vdwg.mxu0
        %4008 = vmatpush.bf16.msra.mxu0 %v3503
        %4009 = vmatpush.bf16.msra.mxu0 %v3498
        %4010 = vmatpush.bf16.msra.mxu0 %v3493
        %4011 = vmatpush.bf16.msra.mxu0 %v3488
        %4012 = vmatpush.bf16.msra.mxu0 %v3483
        %4013 = vmatpush.bf16.msra.mxu0 %v3478
        %4014 = vmatpush.bf16.msra.mxu0 %v3473
        %4015 = vmatpush.bf16.msra.mxu0 %v3468
        %4016 = vmatmul.bf16.gmra.mxu0 %v2748
        %v4017 = vpop.f32.mrf.mxu0
        %v4018 = vadd.f32 0.0, %v4017
        %v4019 = vpop.f32.mrf.mxu0
        %v4020 = vadd.f32 0.0, %v4019
        %4021 = vdwg.mxu0
        %4022 = vmatpush.bf16.msra.mxu0 %v3543
        %4023 = vmatpush.bf16.msra.mxu0 %v3538
        %4024 = vmatpush.bf16.msra.mxu0 %v3533
        %4025 = vmatpush.bf16.msra.mxu0 %v3528
        %4026 = vmatpush.bf16.msra.mxu0 %v3523
        %4027 = vmatpush.bf16.msra.mxu0 %v3518
        %4028 = vmatpush.bf16.msra.mxu0 %v3513
        %4029 = vmatpush.bf16.msra.mxu0 %v3508
        %4030 = vmatmul.bf16.gmra.mxu0 %v2749
        %v4031 = vpop.f32.mrf.mxu0
        %v4032 = vadd.f32 %v4018, %v4031
        %v4033 = vpop.f32.mrf.mxu0
        %v4034 = vadd.f32 %v4020, %v4033
        %4035 = vdwg.mxu0
        %4036 = vmatpush.bf16.msra.mxu0 %v3583
        %4037 = vmatpush.bf16.msra.mxu0 %v3578
        %4038 = vmatpush.bf16.msra.mxu0 %v3573
        %4039 = vmatpush.bf16.msra.mxu0 %v3568
        %4040 = vmatpush.bf16.msra.mxu0 %v3563
        %4041 = vmatpush.bf16.msra.mxu0 %v3558
        %4042 = vmatpush.bf16.msra.mxu0 %v3553
        %4043 = vmatpush.bf16.msra.mxu0 %v3548
        %4044 = vmatmul.bf16.gmra.mxu0 %v2750
        %v4045 = vpop.f32.mrf.mxu0
        %v4046 = vadd.f32 %v4032, %v4045
        %v4047 = vpop.f32.mrf.mxu0
        %v4048 = vadd.f32 %v4034, %v4047
        %4049 = vdwg.mxu0
        %4050 = vmatpush.bf16.msra.mxu0 %v3623
        %4051 = vmatpush.bf16.msra.mxu0 %v3618
        %4052 = vmatpush.bf16.msra.mxu0 %v3613
        %4053 = vmatpush.bf16.msra.mxu0 %v3608
        %4054 = vmatpush.bf16.msra.mxu0 %v3603
        %4055 = vmatpush.bf16.msra.mxu0 %v3598
        %4056 = vmatpush.bf16.msra.mxu0 %v3593
        %4057 = vmatpush.bf16.msra.mxu0 %v3588
        %4058 = vmatmul.bf16.gmra.mxu0 %v2751
        %v4059 = vpop.f32.mrf.mxu0
        %v4060 = vadd.f32 %v4046, %v4059
        %v4061 = vpop.f32.mrf.mxu0
        %v4062 = vadd.f32 %v4048, %v4061
        %4063 = vdwg.mxu0
        %v4064 = vmul.f32 %v3836, 100.0
        %v4065 = vmul.f32 %v3892, 100.0
        %v4066 = vmul.f32 %v3948, 100.0
        %v4067 = vmul.f32 %v4004, 100.0
        %v4068 = vmul.f32 %v4060, 100.0
        %v4069 = vmul.f32 %v3838, 100.0
        %v4070 = vmul.f32 %v3894, 100.0
        %v4071 = vmul.f32 %v3950, 100.0
        %v4072 = vmul.f32 %v4006, 100.0
        %v4073 = vmul.f32 %v4062, 100.0
        %v4074 = vld [vmem:[%s594] sm:$0xff]
        %v4075 = vld [vmem:[%s594 + $0x8] sm:$0xff]
        %v4076 = vld [vmem:[%s594 + $0x10] sm:$0xf]
        %v4077 = vld [vmem:[%s594 + $0x14] sm:$0xff]
        %v4078 = vld [vmem:[%s594 + $0x1c] sm:$0xff]
        %v4079 = vld [vmem:[%s594 + $0x24] sm:$0xf]
        %v4080 = vld [vmem:[%s594 + $0x28] sm:$0xff]
        %v4081 = vld [vmem:[%s594 + $0x30] sm:$0xff]
        %v4082 = vld [vmem:[%s594 + $0x38] sm:$0xf]
        %v4083 = vld [vmem:[%s594 + $0x3c] sm:$0xff]
        %v4084 = vld [vmem:[%s594 + $0x44] sm:$0xff]
        %v4085 = vld [vmem:[%s594 + $0x4c] sm:$0xf]
        %v4086 = vld [vmem:[%s594 + $0x50] sm:$0xff]
        %v4087 = vld [vmem:[%s594 + $0x58] sm:$0xff]
        %v4088 = vld [vmem:[%s594 + $0x60] sm:$0xf]
        %v4089 = vld [vmem:[%s594 + $0x64] sm:$0xff]
        %v4090 = vld [vmem:[%s594 + $0x6c] sm:$0xff]
        %v4091 = vld [vmem:[%s594 + $0x74] sm:$0xf]
        %v4092 = vld [vmem:[%s594 + $0x78] sm:$0xff]
        %v4093 = vld [vmem:[%s594 + $0x80] sm:$0xff]
        %v4094 = vld [vmem:[%s594 + $0x88] sm:$0xf]
        %v4095 = vld [vmem:[%s594 + $0x8c] sm:$0xff]
        %v4096 = vld [vmem:[%s594 + $0x94] sm:$0xff]
        %v4097 = vld [vmem:[%s594 + $0x9c] sm:$0xf]
        %v4098 = vld [vmem:[%s594 + $0xa0] sm:$0xff]
        %v4099 = vld [vmem:[%s594 + $0xa8] sm:$0xff]
        %v4100 = vld [vmem:[%s594 + $0xb0] sm:$0xf]
        %v4101 = vld [vmem:[%s594 + $0xb4] sm:$0xff]
        %v4102 = vld [vmem:[%s594 + $0xbc] sm:$0xff]
        %v4103 = vld [vmem:[%s594 + $0xc4] sm:$0xf]
        %v4104 = vld [vmem:[%s594 + $0xc8] sm:$0xff]
        %v4105 = vld [vmem:[%s594 + $0xd0] sm:$0xff]
        %v4106 = vld [vmem:[%s594 + $0xd8] sm:$0xf]
        %v4107 = vld [vmem:[%s594 + $0xdc] sm:$0xff]
        %v4108 = vld [vmem:[%s594 + $0xe4] sm:$0xff]
        %v4109 = vld [vmem:[%s594 + $0xec] sm:$0xf]
        %v4110 = vld [vmem:[%s594 + $0xf0] sm:$0xff]
        %v4111 = vld [vmem:[%s594 + $0xf8] sm:$0xff]
        %v4112 = vld [vmem:[%s594 + $0x100] sm:$0xf]
        %v4113 = vld [vmem:[%s594 + $0x104] sm:$0xff]
        %v4114 = vld [vmem:[%s594 + $0x10c] sm:$0xff]
        %v4115 = vld [vmem:[%s594 + $0x114] sm:$0xf]
        %v4116 = vld [vmem:[%s594 + $0x118] sm:$0xff]
        %v4117 = vld [vmem:[%s594 + $0x120] sm:$0xff]
        %v4118 = vld [vmem:[%s594 + $0x128] sm:$0xf]
        %v4119 = vld [vmem:[%s594 + $0x12c] sm:$0xff]
        %v4120 = vld [vmem:[%s594 + $0x134] sm:$0xff]
        %v4121 = vld [vmem:[%s594 + $0x13c] sm:$0xf]
        %v4122 = vld [vmem:[%s594 + $0x140] sm:$0xff]
        %v4123 = vld [vmem:[%s594 + $0x148] sm:$0xff]
        %v4124 = vld [vmem:[%s594 + $0x150] sm:$0xf]
        %v4125 = vld [vmem:[%s594 + $0x154] sm:$0xff]
        %v4126 = vld [vmem:[%s594 + $0x15c] sm:$0xff]
        %v4127 = vld [vmem:[%s594 + $0x164] sm:$0xf]
        %v4128 = vld [vmem:[%s594 + $0x168] sm:$0xff]
        %v4129 = vld [vmem:[%s594 + $0x170] sm:$0xff]
        %v4130 = vld [vmem:[%s594 + $0x178] sm:$0xf]
        %v4131 = vld [vmem:[%s594 + $0x17c] sm:$0xff]
        %v4132 = vld [vmem:[%s594 + $0x184] sm:$0xff]
        %v4133 = vld [vmem:[%s594 + $0x18c] sm:$0xf]
        %v4134 = vld [vmem:[%s594 + $0x190] sm:$0xff]
        %v4135 = vld [vmem:[%s594 + $0x198] sm:$0xff]
        %v4136 = vld [vmem:[%s594 + $0x1a0] sm:$0xf]
        %v4137 = vld [vmem:[%s594 + $0x1a4] sm:$0xff]
        %v4138 = vld [vmem:[%s594 + $0x1ac] sm:$0xff]
        %v4139 = vld [vmem:[%s594 + $0x1b4] sm:$0xf]
        %v4140 = vld [vmem:[%s594 + $0x1b8] sm:$0xff]
        %v4141 = vld [vmem:[%s594 + $0x1c0] sm:$0xff]
        %v4142 = vld [vmem:[%s594 + $0x1c8] sm:$0xf]
        %v4143 = vld [vmem:[%s594 + $0x1cc] sm:$0xff]
        %v4144 = vld [vmem:[%s594 + $0x1d4] sm:$0xff]
        %v4145 = vld [vmem:[%s594 + $0x1dc] sm:$0xf]
        %v4146 = vld [vmem:[%s594 + $0x1e0] sm:$0xff]
        %v4147 = vld [vmem:[%s594 + $0x1e8] sm:$0xff]
        %v4148 = vld [vmem:[%s594 + $0x1f0] sm:$0xf]
        %v4149 = vld [vmem:[%s594 + $0x1f4] sm:$0xff]
        %v4150 = vld [vmem:[%s594 + $0x1fc] sm:$0xff]
        %v4151 = vld [vmem:[%s594 + $0x204] sm:$0xf]
        %v4152 = vld [vmem:[%s594 + $0x208] sm:$0xff]
        %v4153 = vld [vmem:[%s594 + $0x210] sm:$0xff]
        %v4154 = vld [vmem:[%s594 + $0x218] sm:$0xf]
        %v4155 = vld [vmem:[%s594 + $0x21c] sm:$0xff]
        %v4156 = vld [vmem:[%s594 + $0x224] sm:$0xff]
        %v4157 = vld [vmem:[%s594 + $0x22c] sm:$0xf]
        %v4158 = vld [vmem:[%s594 + $0x230] sm:$0xff]
        %v4159 = vld [vmem:[%s594 + $0x238] sm:$0xff]
        %v4160 = vld [vmem:[%s594 + $0x240] sm:$0xf]
        %v4161 = vld [vmem:[%s594 + $0x244] sm:$0xff]
        %v4162 = vld [vmem:[%s594 + $0x24c] sm:$0xff]
        %v4163 = vld [vmem:[%s594 + $0x254] sm:$0xf]
        %v4164 = vld [vmem:[%s594 + $0x258] sm:$0xff]
        %v4165 = vld [vmem:[%s594 + $0x260] sm:$0xff]
        %v4166 = vld [vmem:[%s594 + $0x268] sm:$0xf]
        %v4167 = vld [vmem:[%s594 + $0x26c] sm:$0xff]
        %v4168 = vld [vmem:[%s594 + $0x274] sm:$0xff]
        %v4169 = vld [vmem:[%s594 + $0x27c] sm:$0xf]
        %v4170 = vld [vmem:[%s594 + $0x280] sm:$0xff]
        %v4171 = vld [vmem:[%s594 + $0x288] sm:$0xff]
        %v4172 = vld [vmem:[%s594 + $0x290] sm:$0xf]
        %v4173 = vld [vmem:[%s594 + $0x294] sm:$0xff]
        %v4174 = vld [vmem:[%s594 + $0x29c] sm:$0xff]
        %v4175 = vld [vmem:[%s594 + $0x2a4] sm:$0xf]
        %v4176 = vld [vmem:[%s594 + $0x2a8] sm:$0xff]
        %v4177 = vld [vmem:[%s594 + $0x2b0] sm:$0xff]
        %v4178 = vld [vmem:[%s594 + $0x2b8] sm:$0xf]
        %v4179 = vld [vmem:[%s594 + $0x2bc] sm:$0xff]
        %v4180 = vld [vmem:[%s594 + $0x2c4] sm:$0xff]
        %v4181 = vld [vmem:[%s594 + $0x2cc] sm:$0xf]
        %v4182 = vld [vmem:[%s594 + $0x2d0] sm:$0xff]
        %v4183 = vld [vmem:[%s594 + $0x2d8] sm:$0xff]
        %v4184 = vld [vmem:[%s594 + $0x2e0] sm:$0xf]
        %v4185 = vld [vmem:[%s594 + $0x2e4] sm:$0xff]
        %v4186 = vld [vmem:[%s594 + $0x2ec] sm:$0xff]
        %v4187 = vld [vmem:[%s594 + $0x2f4] sm:$0xf]
        %v4188 = vld [vmem:[%s594 + $0x2f8] sm:$0xff]
        %v4189 = vld [vmem:[%s594 + $0x300] sm:$0xff]
        %v4190 = vld [vmem:[%s594 + $0x308] sm:$0xf]
        %v4191 = vld [vmem:[%s594 + $0x30c] sm:$0xff]
        %v4192 = vld [vmem:[%s594 + $0x314] sm:$0xff]
        %v4193 = vld [vmem:[%s594 + $0x31c] sm:$0xf]
        %v4194 = vld [vmem:[%s594 + $0x320] sm:$0xff]
        %v4195 = vld [vmem:[%s594 + $0x328] sm:$0xff]
        %v4196 = vld [vmem:[%s594 + $0x330] sm:$0xf]
        %v4197 = vld [vmem:[%s594 + $0x334] sm:$0xff]
        %v4198 = vld [vmem:[%s594 + $0x33c] sm:$0xff]
        %v4199 = vld [vmem:[%s594 + $0x344] sm:$0xf]
        %v4200 = vld [vmem:[%s594 + $0x348] sm:$0xff]
        %v4201 = vld [vmem:[%s594 + $0x350] sm:$0xff]
        %v4202 = vld [vmem:[%s594 + $0x358] sm:$0xf]
        %v4203 = vld [vmem:[%s594 + $0x35c] sm:$0xff]
        %v4204 = vld [vmem:[%s594 + $0x364] sm:$0xff]
        %v4205 = vld [vmem:[%s594 + $0x36c] sm:$0xf]
        %v4206 = vld [vmem:[%s594 + $0x370] sm:$0xff]
        %v4207 = vld [vmem:[%s594 + $0x378] sm:$0xff]
        %v4208 = vld [vmem:[%s594 + $0x380] sm:$0xf]
        %v4209 = vld [vmem:[%s594 + $0x384] sm:$0xff]
        %v4210 = vld [vmem:[%s594 + $0x38c] sm:$0xff]
        %v4211 = vld [vmem:[%s594 + $0x394] sm:$0xf]
        %v4212 = vld [vmem:[%s594 + $0x398] sm:$0xff]
        %v4213 = vld [vmem:[%s594 + $0x3a0] sm:$0xff]
        %v4214 = vld [vmem:[%s594 + $0x3a8] sm:$0xf]
        %v4215 = vld [vmem:[%s594 + $0x3ac] sm:$0xff]
        %v4216 = vld [vmem:[%s594 + $0x3b4] sm:$0xff]
        %v4217 = vld [vmem:[%s594 + $0x3bc] sm:$0xf]
        %v4218 = vld [vmem:[%s594 + $0x3c0] sm:$0xff]
        %v4219 = vld [vmem:[%s594 + $0x3c8] sm:$0xff]
        %v4220 = vld [vmem:[%s594 + $0x3d0] sm:$0xf]
        %v4221 = vld [vmem:[%s594 + $0x3d4] sm:$0xff]
        %v4222 = vld [vmem:[%s594 + $0x3dc] sm:$0xff]
        %v4223 = vld [vmem:[%s594 + $0x3e4] sm:$0xf]
        %v4224 = vld [vmem:[%s594 + $0x3e8] sm:$0xff]
        %v4225 = vld [vmem:[%s594 + $0x3f0] sm:$0xff]
        %v4226 = vld [vmem:[%s594 + $0x3f8] sm:$0xf]
        %v4227 = vld [vmem:[%s594 + $0x3fc] sm:$0xff]
        %v4228 = vld [vmem:[%s594 + $0x404] sm:$0xff]
        %v4229 = vld [vmem:[%s594 + $0x40c] sm:$0xf]
        %v4230 = vld [vmem:[%s594 + $0x410] sm:$0xff]
        %v4231 = vld [vmem:[%s594 + $0x418] sm:$0xff]
        %v4232 = vld [vmem:[%s594 + $0x420] sm:$0xf]
        %v4233 = vld [vmem:[%s594 + $0x424] sm:$0xff]
        %v4234 = vld [vmem:[%s594 + $0x42c] sm:$0xff]
        %v4235 = vld [vmem:[%s594 + $0x434] sm:$0xf]
        %v4236 = vld [vmem:[%s594 + $0x438] sm:$0xff]
        %v4237 = vld [vmem:[%s594 + $0x440] sm:$0xff]
        %v4238 = vld [vmem:[%s594 + $0x448] sm:$0xf]
        %v4239 = vld [vmem:[%s594 + $0x44c] sm:$0xff]
        %v4240 = vld [vmem:[%s594 + $0x454] sm:$0xff]
        %v4241 = vld [vmem:[%s594 + $0x45c] sm:$0xf]
        %v4242 = vld [vmem:[%s594 + $0x460] sm:$0xff]
        %v4243 = vld [vmem:[%s594 + $0x468] sm:$0xff]
        %v4244 = vld [vmem:[%s594 + $0x470] sm:$0xf]
        %v4245 = vld [vmem:[%s594 + $0x474] sm:$0xff]
        %v4246 = vld [vmem:[%s594 + $0x47c] sm:$0xff]
        %v4247 = vld [vmem:[%s594 + $0x484] sm:$0xf]
        %v4248 = vld [vmem:[%s594 + $0x488] sm:$0xff]
        %v4249 = vld [vmem:[%s594 + $0x490] sm:$0xff]
        %v4250 = vld [vmem:[%s594 + $0x498] sm:$0xf]
        %v4251 = vld [vmem:[%s594 + $0x49c] sm:$0xff]
        %v4252 = vld [vmem:[%s594 + $0x4a4] sm:$0xff]
        %v4253 = vld [vmem:[%s594 + $0x4ac] sm:$0xf]
        %v4254 = vld [vmem:[%s594 + $0x4b0] sm:$0xff]
        %v4255 = vld [vmem:[%s594 + $0x4b8] sm:$0xff]
        %v4256 = vld [vmem:[%s594 + $0x4c0] sm:$0xf]
        %v4257 = vld [vmem:[%s594 + $0x4c4] sm:$0xff]
        %v4258 = vld [vmem:[%s594 + $0x4cc] sm:$0xff]
        %v4259 = vld [vmem:[%s594 + $0x4d4] sm:$0xf]
        %v4260 = vld [vmem:[%s594 + $0x4d8] sm:$0xff]
        %v4261 = vld [vmem:[%s594 + $0x4e0] sm:$0xff]
        %v4262 = vld [vmem:[%s594 + $0x4e8] sm:$0xf]
        %v4263 = vld [vmem:[%s594 + $0x4ec] sm:$0xff]
        %v4264 = vld [vmem:[%s594 + $0x4f4] sm:$0xff]
        %v4265 = vld [vmem:[%s594 + $0x4fc] sm:$0xf]
        %v4458 = vunpack.c.l.b16 %v4074
        %v4459 = vunpack.c.h.b16 %v4074
        %v4460 = vunpack.c.l.b16 %v4075
        %v4461 = vunpack.c.h.b16 %v4075
        %v4462 = vunpack.c.l.b16 %v4076
        %v4463 = vunpack.c.l.b16 %v4077
        %v4464 = vunpack.c.h.b16 %v4077
        %v4465 = vunpack.c.l.b16 %v4078
        %v4466 = vunpack.c.h.b16 %v4078
        %v4467 = vunpack.c.l.b16 %v4079
        %v4468 = vunpack.c.l.b16 %v4080
        %v4469 = vunpack.c.h.b16 %v4080
        %v4470 = vunpack.c.l.b16 %v4081
        %v4471 = vunpack.c.h.b16 %v4081
        %v4472 = vunpack.c.l.b16 %v4082
        %v4473 = vunpack.c.l.b16 %v4083
        %v4474 = vunpack.c.h.b16 %v4083
        %v4475 = vunpack.c.l.b16 %v4084
        %v4476 = vunpack.c.h.b16 %v4084
        %v4477 = vunpack.c.l.b16 %v4085
        %v4478 = vunpack.c.l.b16 %v4086
        %v4479 = vunpack.c.h.b16 %v4086
        %v4480 = vunpack.c.l.b16 %v4087
        %v4481 = vunpack.c.h.b16 %v4087
        %v4482 = vunpack.c.l.b16 %v4088
        %v4483 = vunpack.c.l.b16 %v4089
        %v4484 = vunpack.c.h.b16 %v4089
        %v4485 = vunpack.c.l.b16 %v4090
        %v4486 = vunpack.c.h.b16 %v4090
        %v4487 = vunpack.c.l.b16 %v4091
        %v4488 = vunpack.c.l.b16 %v4092
        %v4489 = vunpack.c.h.b16 %v4092
        %v4490 = vunpack.c.l.b16 %v4093
        %v4491 = vunpack.c.h.b16 %v4093
        %v4492 = vunpack.c.l.b16 %v4094
        %v4493 = vunpack.c.l.b16 %v4095
        %v4494 = vunpack.c.h.b16 %v4095
        %v4495 = vunpack.c.l.b16 %v4096
        %v4496 = vunpack.c.h.b16 %v4096
        %v4497 = vunpack.c.l.b16 %v4097
        %v4498 = vunpack.c.l.b16 %v4098
        %v4499 = vunpack.c.h.b16 %v4098
        %v4500 = vunpack.c.l.b16 %v4099
        %v4501 = vunpack.c.h.b16 %v4099
        %v4502 = vunpack.c.l.b16 %v4100
        %v4503 = vunpack.c.l.b16 %v4101
        %v4504 = vunpack.c.h.b16 %v4101
        %v4505 = vunpack.c.l.b16 %v4102
        %v4506 = vunpack.c.h.b16 %v4102
        %v4507 = vunpack.c.l.b16 %v4103
        %v4508 = vunpack.c.l.b16 %v4104
        %v4509 = vunpack.c.h.b16 %v4104
        %v4510 = vunpack.c.l.b16 %v4105
        %v4511 = vunpack.c.h.b16 %v4105
        %v4512 = vunpack.c.l.b16 %v4106
        %v4513 = vunpack.c.l.b16 %v4107
        %v4514 = vunpack.c.h.b16 %v4107
        %v4515 = vunpack.c.l.b16 %v4108
        %v4516 = vunpack.c.h.b16 %v4108
        %v4517 = vunpack.c.l.b16 %v4109
        %v4518 = vunpack.c.l.b16 %v4110
        %v4519 = vunpack.c.h.b16 %v4110
        %v4520 = vunpack.c.l.b16 %v4111
        %v4521 = vunpack.c.h.b16 %v4111
        %v4522 = vunpack.c.l.b16 %v4112
        %v4523 = vunpack.c.l.b16 %v4113
        %v4524 = vunpack.c.h.b16 %v4113
        %v4525 = vunpack.c.l.b16 %v4114
        %v4526 = vunpack.c.h.b16 %v4114
        %v4527 = vunpack.c.l.b16 %v4115
        %v4528 = vunpack.c.l.b16 %v4116
        %v4529 = vunpack.c.h.b16 %v4116
        %v4530 = vunpack.c.l.b16 %v4117
        %v4531 = vunpack.c.h.b16 %v4117
        %v4532 = vunpack.c.l.b16 %v4118
        %v4533 = vunpack.c.l.b16 %v4119
        %v4534 = vunpack.c.h.b16 %v4119
        %v4535 = vunpack.c.l.b16 %v4120
        %v4536 = vunpack.c.h.b16 %v4120
        %v4537 = vunpack.c.l.b16 %v4121
        %v4538 = vunpack.c.l.b16 %v4122
        %v4539 = vunpack.c.h.b16 %v4122
        %v4540 = vunpack.c.l.b16 %v4123
        %v4541 = vunpack.c.h.b16 %v4123
        %v4542 = vunpack.c.l.b16 %v4124
        %v4543 = vunpack.c.l.b16 %v4125
        %v4544 = vunpack.c.h.b16 %v4125
        %v4545 = vunpack.c.l.b16 %v4126
        %v4546 = vunpack.c.h.b16 %v4126
        %v4547 = vunpack.c.l.b16 %v4127
        %v4548 = vunpack.c.l.b16 %v4128
        %v4549 = vunpack.c.h.b16 %v4128
        %v4550 = vunpack.c.l.b16 %v4129
        %v4551 = vunpack.c.h.b16 %v4129
        %v4552 = vunpack.c.l.b16 %v4130
        %v4553 = vunpack.c.l.b16 %v4131
        %v4554 = vunpack.c.h.b16 %v4131
        %v4555 = vunpack.c.l.b16 %v4132
        %v4556 = vunpack.c.h.b16 %v4132
        %v4557 = vunpack.c.l.b16 %v4133
        %v4558 = vunpack.c.l.b16 %v4134
        %v4559 = vunpack.c.h.b16 %v4134
        %v4560 = vunpack.c.l.b16 %v4135
        %v4561 = vunpack.c.h.b16 %v4135
        %v4562 = vunpack.c.l.b16 %v4136
        %v4563 = vunpack.c.l.b16 %v4137
        %v4564 = vunpack.c.h.b16 %v4137
        %v4565 = vunpack.c.l.b16 %v4138
        %v4566 = vunpack.c.h.b16 %v4138
        %v4567 = vunpack.c.l.b16 %v4139
        %v4568 = vunpack.c.l.b16 %v4140
        %v4569 = vunpack.c.h.b16 %v4140
        %v4570 = vunpack.c.l.b16 %v4141
        %v4571 = vunpack.c.h.b16 %v4141
        %v4572 = vunpack.c.l.b16 %v4142
        %v4573 = vunpack.c.l.b16 %v4143
        %v4574 = vunpack.c.h.b16 %v4143
        %v4575 = vunpack.c.l.b16 %v4144
        %v4576 = vunpack.c.h.b16 %v4144
        %v4577 = vunpack.c.l.b16 %v4145
        %v4578 = vunpack.c.l.b16 %v4146
        %v4579 = vunpack.c.h.b16 %v4146
        %v4580 = vunpack.c.l.b16 %v4147
        %v4581 = vunpack.c.h.b16 %v4147
        %v4582 = vunpack.c.l.b16 %v4148
        %v4583 = vunpack.c.l.b16 %v4149
        %v4584 = vunpack.c.h.b16 %v4149
        %v4585 = vunpack.c.l.b16 %v4150
        %v4586 = vunpack.c.h.b16 %v4150
        %v4587 = vunpack.c.l.b16 %v4151
        %v4588 = vunpack.c.l.b16 %v4152
        %v4589 = vunpack.c.h.b16 %v4152
        %v4590 = vunpack.c.l.b16 %v4153
        %v4591 = vunpack.c.h.b16 %v4153
        %v4592 = vunpack.c.l.b16 %v4154
        %v4593 = vunpack.c.l.b16 %v4155
        %v4594 = vunpack.c.h.b16 %v4155
        %v4595 = vunpack.c.l.b16 %v4156
        %v4596 = vunpack.c.h.b16 %v4156
        %v4597 = vunpack.c.l.b16 %v4157
        %v4598 = vunpack.c.l.b16 %v4158
        %v4599 = vunpack.c.h.b16 %v4158
        %v4600 = vunpack.c.l.b16 %v4159
        %v4601 = vunpack.c.h.b16 %v4159
        %v4602 = vunpack.c.l.b16 %v4160
        %v4603 = vunpack.c.l.b16 %v4161
        %v4604 = vunpack.c.h.b16 %v4161
        %v4605 = vunpack.c.l.b16 %v4162
        %v4606 = vunpack.c.h.b16 %v4162
        %v4607 = vunpack.c.l.b16 %v4163
        %v4608 = vunpack.c.l.b16 %v4164
        %v4609 = vunpack.c.h.b16 %v4164
        %v4610 = vunpack.c.l.b16 %v4165
        %v4611 = vunpack.c.h.b16 %v4165
        %v4612 = vunpack.c.l.b16 %v4166
        %v4613 = vunpack.c.l.b16 %v4167
        %v4614 = vunpack.c.h.b16 %v4167
        %v4615 = vunpack.c.l.b16 %v4168
        %v4616 = vunpack.c.h.b16 %v4168
        %v4617 = vunpack.c.l.b16 %v4169
        %v4618 = vunpack.c.l.b16 %v4170
        %v4619 = vunpack.c.h.b16 %v4170
        %v4620 = vunpack.c.l.b16 %v4171
        %v4621 = vunpack.c.h.b16 %v4171
        %v4622 = vunpack.c.l.b16 %v4172
        %v4623 = vunpack.c.l.b16 %v4173
        %v4624 = vunpack.c.h.b16 %v4173
        %v4625 = vunpack.c.l.b16 %v4174
        %v4626 = vunpack.c.h.b16 %v4174
        %v4627 = vunpack.c.l.b16 %v4175
        %v4628 = vunpack.c.l.b16 %v4176
        %v4629 = vunpack.c.h.b16 %v4176
        %v4630 = vunpack.c.l.b16 %v4177
        %v4631 = vunpack.c.h.b16 %v4177
        %v4632 = vunpack.c.l.b16 %v4178
        %v4633 = vunpack.c.l.b16 %v4179
        %v4634 = vunpack.c.h.b16 %v4179
        %v4635 = vunpack.c.l.b16 %v4180
        %v4636 = vunpack.c.h.b16 %v4180
        %v4637 = vunpack.c.l.b16 %v4181
        %v4638 = vunpack.c.l.b16 %v4182
        %v4639 = vunpack.c.h.b16 %v4182
        %v4640 = vunpack.c.l.b16 %v4183
        %v4641 = vunpack.c.h.b16 %v4183
        %v4642 = vunpack.c.l.b16 %v4184
        %v4643 = vunpack.c.l.b16 %v4185
        %v4644 = vunpack.c.h.b16 %v4185
        %v4645 = vunpack.c.l.b16 %v4186
        %v4646 = vunpack.c.h.b16 %v4186
        %v4647 = vunpack.c.l.b16 %v4187
        %v4648 = vunpack.c.l.b16 %v4188
        %v4649 = vunpack.c.h.b16 %v4188
        %v4650 = vunpack.c.l.b16 %v4189
        %v4651 = vunpack.c.h.b16 %v4189
        %v4652 = vunpack.c.l.b16 %v4190
        %v4653 = vunpack.c.l.b16 %v4191
        %v4654 = vunpack.c.h.b16 %v4191
        %v4655 = vunpack.c.l.b16 %v4192
        %v4656 = vunpack.c.h.b16 %v4192
        %v4657 = vunpack.c.l.b16 %v4193
        %v4658 = vunpack.c.l.b16 %v4194
        %v4659 = vunpack.c.h.b16 %v4194
        %v4660 = vunpack.c.l.b16 %v4195
        %v4661 = vunpack.c.h.b16 %v4195
        %v4662 = vunpack.c.l.b16 %v4196
        %v4663 = vunpack.c.l.b16 %v4197
        %v4664 = vunpack.c.h.b16 %v4197
        %v4665 = vunpack.c.l.b16 %v4198
        %v4666 = vunpack.c.h.b16 %v4198
        %v4667 = vunpack.c.l.b16 %v4199
        %v4668 = vunpack.c.l.b16 %v4200
        %v4669 = vunpack.c.h.b16 %v4200
        %v4670 = vunpack.c.l.b16 %v4201
        %v4671 = vunpack.c.h.b16 %v4201
        %v4672 = vunpack.c.l.b16 %v4202
        %v4673 = vunpack.c.l.b16 %v4203
        %v4674 = vunpack.c.h.b16 %v4203
        %v4675 = vunpack.c.l.b16 %v4204
        %v4676 = vunpack.c.h.b16 %v4204
        %v4677 = vunpack.c.l.b16 %v4205
        %v4678 = vunpack.c.l.b16 %v4206
        %v4679 = vunpack.c.h.b16 %v4206
        %v4680 = vunpack.c.l.b16 %v4207
        %v4681 = vunpack.c.h.b16 %v4207
        %v4682 = vunpack.c.l.b16 %v4208
        %v4683 = vunpack.c.l.b16 %v4209
        %v4684 = vunpack.c.h.b16 %v4209
        %v4685 = vunpack.c.l.b16 %v4210
        %v4686 = vunpack.c.h.b16 %v4210
        %v4687 = vunpack.c.l.b16 %v4211
        %v4688 = vunpack.c.l.b16 %v4212
        %v4689 = vunpack.c.h.b16 %v4212
        %v4690 = vunpack.c.l.b16 %v4213
        %v4691 = vunpack.c.h.b16 %v4213
        %v4692 = vunpack.c.l.b16 %v4214
        %v4693 = vunpack.c.l.b16 %v4215
        %v4694 = vunpack.c.h.b16 %v4215
        %v4695 = vunpack.c.l.b16 %v4216
        %v4696 = vunpack.c.h.b16 %v4216
        %v4697 = vunpack.c.l.b16 %v4217
        %v4698 = vunpack.c.l.b16 %v4218
        %v4699 = vunpack.c.h.b16 %v4218
        %v4700 = vunpack.c.l.b16 %v4219
        %v4701 = vunpack.c.h.b16 %v4219
        %v4702 = vunpack.c.l.b16 %v4220
        %v4703 = vunpack.c.l.b16 %v4221
        %v4704 = vunpack.c.h.b16 %v4221
        %v4705 = vunpack.c.l.b16 %v4222
        %v4706 = vunpack.c.h.b16 %v4222
        %v4707 = vunpack.c.l.b16 %v4223
        %v4708 = vunpack.c.l.b16 %v4224
        %v4709 = vunpack.c.h.b16 %v4224
        %v4710 = vunpack.c.l.b16 %v4225
        %v4711 = vunpack.c.h.b16 %v4225
        %v4712 = vunpack.c.l.b16 %v4226
        %v4713 = vunpack.c.l.b16 %v4227
        %v4714 = vunpack.c.h.b16 %v4227
        %v4715 = vunpack.c.l.b16 %v4228
        %v4716 = vunpack.c.h.b16 %v4228
        %v4717 = vunpack.c.l.b16 %v4229
        %v4718 = vunpack.c.l.b16 %v4230
        %v4719 = vunpack.c.h.b16 %v4230
        %v4720 = vunpack.c.l.b16 %v4231
        %v4721 = vunpack.c.h.b16 %v4231
        %v4722 = vunpack.c.l.b16 %v4232
        %v4723 = vunpack.c.l.b16 %v4233
        %v4724 = vunpack.c.h.b16 %v4233
        %v4725 = vunpack.c.l.b16 %v4234
        %v4726 = vunpack.c.h.b16 %v4234
        %v4727 = vunpack.c.l.b16 %v4235
        %v4728 = vunpack.c.l.b16 %v4236
        %v4729 = vunpack.c.h.b16 %v4236
        %v4730 = vunpack.c.l.b16 %v4237
        %v4731 = vunpack.c.h.b16 %v4237
        %v4732 = vunpack.c.l.b16 %v4238
        %v4733 = vunpack.c.l.b16 %v4239
        %v4734 = vunpack.c.h.b16 %v4239
        %v4735 = vunpack.c.l.b16 %v4240
        %v4736 = vunpack.c.h.b16 %v4240
        %v4737 = vunpack.c.l.b16 %v4241
        %v4738 = vunpack.c.l.b16 %v4242
        %v4739 = vunpack.c.h.b16 %v4242
        %v4740 = vunpack.c.l.b16 %v4243
        %v4741 = vunpack.c.h.b16 %v4243
        %v4742 = vunpack.c.l.b16 %v4244
        %v4743 = vunpack.c.l.b16 %v4245
        %v4744 = vunpack.c.h.b16 %v4245
        %v4745 = vunpack.c.l.b16 %v4246
        %v4746 = vunpack.c.h.b16 %v4246
        %v4747 = vunpack.c.l.b16 %v4247
        %v4748 = vunpack.c.l.b16 %v4248
        %v4749 = vunpack.c.h.b16 %v4248
        %v4750 = vunpack.c.l.b16 %v4249
        %v4751 = vunpack.c.h.b16 %v4249
        %v4752 = vunpack.c.l.b16 %v4250
        %v4753 = vunpack.c.l.b16 %v4251
        %v4754 = vunpack.c.h.b16 %v4251
        %v4755 = vunpack.c.l.b16 %v4252
        %v4756 = vunpack.c.h.b16 %v4252
        %v4757 = vunpack.c.l.b16 %v4253
        %v4758 = vunpack.c.l.b16 %v4254
        %v4759 = vunpack.c.h.b16 %v4254
        %v4760 = vunpack.c.l.b16 %v4255
        %v4761 = vunpack.c.h.b16 %v4255
        %v4762 = vunpack.c.l.b16 %v4256
        %v4763 = vunpack.c.l.b16 %v4257
        %v4764 = vunpack.c.h.b16 %v4257
        %v4765 = vunpack.c.l.b16 %v4258
        %v4766 = vunpack.c.h.b16 %v4258
        %v4767 = vunpack.c.l.b16 %v4259
        %v4768 = vunpack.c.l.b16 %v4260
        %v4769 = vunpack.c.h.b16 %v4260
        %v4770 = vunpack.c.l.b16 %v4261
        %v4771 = vunpack.c.h.b16 %v4261
        %v4772 = vunpack.c.l.b16 %v4262
        %v4773 = vunpack.c.l.b16 %v4263
        %v4774 = vunpack.c.h.b16 %v4263
        %v4775 = vunpack.c.l.b16 %v4264
        %v4776 = vunpack.c.h.b16 %v4264
        %v4777 = vunpack.c.l.b16 %v4265
        %v4778 = vpack.c.b16 %v4463, %v4458
        %v4779 = vpack.c.b16 %v4464, %v4459
        %v4780 = vpack.c.b16 %v4465, %v4460
        %v4781 = vpack.c.b16 %v4466, %v4461
        %v4782 = vpack.c.b16 %v4467, %v4462
        %v4783 = vpack.c.b16 %v4473, %v4468
        %v4784 = vpack.c.b16 %v4474, %v4469
        %v4785 = vpack.c.b16 %v4475, %v4470
        %v4786 = vpack.c.b16 %v4476, %v4471
        %v4787 = vpack.c.b16 %v4477, %v4472
        %v4788 = vpack.c.b16 %v4483, %v4478
        %v4789 = vpack.c.b16 %v4484, %v4479
        %v4790 = vpack.c.b16 %v4485, %v4480
        %v4791 = vpack.c.b16 %v4486, %v4481
        %v4792 = vpack.c.b16 %v4487, %v4482
        %v4793 = vpack.c.b16 %v4493, %v4488
        %v4794 = vpack.c.b16 %v4494, %v4489
        %v4795 = vpack.c.b16 %v4495, %v4490
        %v4796 = vpack.c.b16 %v4496, %v4491
        %v4797 = vpack.c.b16 %v4497, %v4492
        %v4798 = vpack.c.b16 %v4503, %v4498
        %v4799 = vpack.c.b16 %v4504, %v4499
        %v4800 = vpack.c.b16 %v4505, %v4500
        %v4801 = vpack.c.b16 %v4506, %v4501
        %v4802 = vpack.c.b16 %v4507, %v4502
        %v4803 = vpack.c.b16 %v4513, %v4508
        %v4804 = vpack.c.b16 %v4514, %v4509
        %v4805 = vpack.c.b16 %v4515, %v4510
        %v4806 = vpack.c.b16 %v4516, %v4511
        %v4807 = vpack.c.b16 %v4517, %v4512
        %v4808 = vpack.c.b16 %v4523, %v4518
        %v4809 = vpack.c.b16 %v4524, %v4519
        %v4810 = vpack.c.b16 %v4525, %v4520
        %v4811 = vpack.c.b16 %v4526, %v4521
        %v4812 = vpack.c.b16 %v4527, %v4522
        %v4813 = vpack.c.b16 %v4533, %v4528
        %v4814 = vpack.c.b16 %v4534, %v4529
        %v4815 = vpack.c.b16 %v4535, %v4530
        %v4816 = vpack.c.b16 %v4536, %v4531
        %v4817 = vpack.c.b16 %v4537, %v4532
        %v4818 = vpack.c.b16 %v4543, %v4538
        %v4819 = vpack.c.b16 %v4544, %v4539
        %v4820 = vpack.c.b16 %v4545, %v4540
        %v4821 = vpack.c.b16 %v4546, %v4541
        %v4822 = vpack.c.b16 %v4547, %v4542
        %v4823 = vpack.c.b16 %v4553, %v4548
        %v4824 = vpack.c.b16 %v4554, %v4549
        %v4825 = vpack.c.b16 %v4555, %v4550
        %v4826 = vpack.c.b16 %v4556, %v4551
        %v4827 = vpack.c.b16 %v4557, %v4552
        %v4828 = vpack.c.b16 %v4563, %v4558
        %v4829 = vpack.c.b16 %v4564, %v4559
        %v4830 = vpack.c.b16 %v4565, %v4560
        %v4831 = vpack.c.b16 %v4566, %v4561
        %v4832 = vpack.c.b16 %v4567, %v4562
        %v4833 = vpack.c.b16 %v4573, %v4568
        %v4834 = vpack.c.b16 %v4574, %v4569
        %v4835 = vpack.c.b16 %v4575, %v4570
        %v4836 = vpack.c.b16 %v4576, %v4571
        %v4837 = vpack.c.b16 %v4577, %v4572
        %v4838 = vpack.c.b16 %v4583, %v4578
        %v4839 = vpack.c.b16 %v4584, %v4579
        %v4840 = vpack.c.b16 %v4585, %v4580
        %v4841 = vpack.c.b16 %v4586, %v4581
        %v4842 = vpack.c.b16 %v4587, %v4582
        %v4843 = vpack.c.b16 %v4593, %v4588
        %v4844 = vpack.c.b16 %v4594, %v4589
        %v4845 = vpack.c.b16 %v4595, %v4590
        %v4846 = vpack.c.b16 %v4596, %v4591
        %v4847 = vpack.c.b16 %v4597, %v4592
        %v4848 = vpack.c.b16 %v4603, %v4598
        %v4849 = vpack.c.b16 %v4604, %v4599
        %v4850 = vpack.c.b16 %v4605, %v4600
        %v4851 = vpack.c.b16 %v4606, %v4601
        %v4852 = vpack.c.b16 %v4607, %v4602
        %v4853 = vpack.c.b16 %v4613, %v4608
        %v4854 = vpack.c.b16 %v4614, %v4609
        %v4855 = vpack.c.b16 %v4615, %v4610
        %v4856 = vpack.c.b16 %v4616, %v4611
        %v4857 = vpack.c.b16 %v4617, %v4612
        %v4858 = vpack.c.b16 %v4623, %v4618
        %v4859 = vpack.c.b16 %v4624, %v4619
        %v4860 = vpack.c.b16 %v4625, %v4620
        %v4861 = vpack.c.b16 %v4626, %v4621
        %v4862 = vpack.c.b16 %v4627, %v4622
        %v4863 = vpack.c.b16 %v4633, %v4628
        %v4864 = vpack.c.b16 %v4634, %v4629
        %v4865 = vpack.c.b16 %v4635, %v4630
        %v4866 = vpack.c.b16 %v4636, %v4631
        %v4867 = vpack.c.b16 %v4637, %v4632
        %v4868 = vpack.c.b16 %v4643, %v4638
        %v4869 = vpack.c.b16 %v4644, %v4639
        %v4870 = vpack.c.b16 %v4645, %v4640
        %v4871 = vpack.c.b16 %v4646, %v4641
        %v4872 = vpack.c.b16 %v4647, %v4642
        %v4873 = vpack.c.b16 %v4653, %v4648
        %v4874 = vpack.c.b16 %v4654, %v4649
        %v4875 = vpack.c.b16 %v4655, %v4650
        %v4876 = vpack.c.b16 %v4656, %v4651
        %v4877 = vpack.c.b16 %v4657, %v4652
        %v4878 = vpack.c.b16 %v4663, %v4658
        %v4879 = vpack.c.b16 %v4664, %v4659
        %v4880 = vpack.c.b16 %v4665, %v4660
        %v4881 = vpack.c.b16 %v4666, %v4661
        %v4882 = vpack.c.b16 %v4667, %v4662
        %v4883 = vpack.c.b16 %v4673, %v4668
        %v4884 = vpack.c.b16 %v4674, %v4669
        %v4885 = vpack.c.b16 %v4675, %v4670
        %v4886 = vpack.c.b16 %v4676, %v4671
        %v4887 = vpack.c.b16 %v4677, %v4672
        %v4888 = vpack.c.b16 %v4683, %v4678
        %v4889 = vpack.c.b16 %v4684, %v4679
        %v4890 = vpack.c.b16 %v4685, %v4680
        %v4891 = vpack.c.b16 %v4686, %v4681
        %v4892 = vpack.c.b16 %v4687, %v4682
        %v4893 = vpack.c.b16 %v4693, %v4688
        %v4894 = vpack.c.b16 %v4694, %v4689
        %v4895 = vpack.c.b16 %v4695, %v4690
        %v4896 = vpack.c.b16 %v4696, %v4691
        %v4897 = vpack.c.b16 %v4697, %v4692
        %v4898 = vpack.c.b16 %v4703, %v4698
        %v4899 = vpack.c.b16 %v4704, %v4699
        %v4900 = vpack.c.b16 %v4705, %v4700
        %v4901 = vpack.c.b16 %v4706, %v4701
        %v4902 = vpack.c.b16 %v4707, %v4702
        %v4903 = vpack.c.b16 %v4713, %v4708
        %v4904 = vpack.c.b16 %v4714, %v4709
        %v4905 = vpack.c.b16 %v4715, %v4710
        %v4906 = vpack.c.b16 %v4716, %v4711
        %v4907 = vpack.c.b16 %v4717, %v4712
        %v4908 = vpack.c.b16 %v4723, %v4718
        %v4909 = vpack.c.b16 %v4724, %v4719
        %v4910 = vpack.c.b16 %v4725, %v4720
        %v4911 = vpack.c.b16 %v4726, %v4721
        %v4912 = vpack.c.b16 %v4727, %v4722
        %v4913 = vpack.c.b16 %v4733, %v4728
        %v4914 = vpack.c.b16 %v4734, %v4729
        %v4915 = vpack.c.b16 %v4735, %v4730
        %v4916 = vpack.c.b16 %v4736, %v4731
        %v4917 = vpack.c.b16 %v4737, %v4732
        %v4918 = vpack.c.b16 %v4743, %v4738
        %v4919 = vpack.c.b16 %v4744, %v4739
        %v4920 = vpack.c.b16 %v4745, %v4740
        %v4921 = vpack.c.b16 %v4746, %v4741
        %v4922 = vpack.c.b16 %v4747, %v4742
        %v4923 = vpack.c.b16 %v4753, %v4748
        %v4924 = vpack.c.b16 %v4754, %v4749
        %v4925 = vpack.c.b16 %v4755, %v4750
        %v4926 = vpack.c.b16 %v4756, %v4751
        %v4927 = vpack.c.b16 %v4757, %v4752
        %v4928 = vpack.c.b16 %v4763, %v4758
        %v4929 = vpack.c.b16 %v4764, %v4759
        %v4930 = vpack.c.b16 %v4765, %v4760
        %v4931 = vpack.c.b16 %v4766, %v4761
        %v4932 = vpack.c.b16 %v4767, %v4762
        %v4933 = vpack.c.b16 %v4773, %v4768
        %v4934 = vpack.c.b16 %v4774, %v4769
        %v4935 = vpack.c.b16 %v4775, %v4770
        %v4936 = vpack.c.b16 %v4776, %v4771
        %v4937 = vpack.c.b16 %v4777, %v4772
        %5098 = vmatpush.bf16.msra.mxu0 %v4813
        %5099 = vmatpush.bf16.msra.mxu0 %v4808
        %5100 = vmatpush.bf16.msra.mxu0 %v4803
        %5101 = vmatpush.bf16.msra.mxu0 %v4798
        %5102 = vmatpush.bf16.msra.mxu0 %v4793
        %5103 = vmatpush.bf16.msra.mxu0 %v4788
        %5104 = vmatpush.bf16.msra.mxu0 %v4783
        %5105 = vmatpush.bf16.msra.mxu0 %v4778
        %5106 = vmatmul.bf16.gmra.mxu0 %v2756
        %v5107 = vpop.f32.mrf.mxu0
        %v5108 = vadd.f32 0.0, %v5107
        %v5109 = vpop.f32.mrf.mxu0
        %5110 = vdwg.mxu0
        %5111 = vmatpush.bf16.msra.mxu0 %v4853
        %5112 = vmatpush.bf16.msra.mxu0 %v4848
        %5113 = vmatpush.bf16.msra.mxu0 %v4843
        %5114 = vmatpush.bf16.msra.mxu0 %v4838
        %5115 = vmatpush.bf16.msra.mxu0 %v4833
        %5116 = vmatpush.bf16.msra.mxu0 %v4828
        %5117 = vmatpush.bf16.msra.mxu0 %v4823
        %5118 = vmatpush.bf16.msra.mxu0 %v4818
        %5119 = vmatmul.bf16.gmra.mxu0 %v2757
        %v5120 = vpop.f32.mrf.mxu0
        %v5121 = vadd.f32 %v5108, %v5120
        %v5122 = vpop.f32.mrf.mxu0
        %5123 = vdwg.mxu0
        %5124 = vmatpush.bf16.msra.mxu0 %v4893
        %5125 = vmatpush.bf16.msra.mxu0 %v4888
        %5126 = vmatpush.bf16.msra.mxu0 %v4883
        %5127 = vmatpush.bf16.msra.mxu0 %v4878
        %5128 = vmatpush.bf16.msra.mxu0 %v4873
        %5129 = vmatpush.bf16.msra.mxu0 %v4868
        %5130 = vmatpush.bf16.msra.mxu0 %v4863
        %5131 = vmatpush.bf16.msra.mxu0 %v4858
        %5132 = vmatmul.bf16.gmra.mxu0 %v2758
        %v5133 = vpop.f32.mrf.mxu0
        %v5134 = vadd.f32 %v5121, %v5133
        %v5135 = vpop.f32.mrf.mxu0
        %5136 = vdwg.mxu0
        %5137 = vmatpush.bf16.msra.mxu0 %v4933
        %5138 = vmatpush.bf16.msra.mxu0 %v4928
        %5139 = vmatpush.bf16.msra.mxu0 %v4923
        %5140 = vmatpush.bf16.msra.mxu0 %v4918
        %5141 = vmatpush.bf16.msra.mxu0 %v4913
        %5142 = vmatpush.bf16.msra.mxu0 %v4908
        %5143 = vmatpush.bf16.msra.mxu0 %v4903
        %5144 = vmatpush.bf16.msra.mxu0 %v4898
        %5145 = vmatmul.bf16.gmra.mxu0 %v2759
        %v5146 = vpop.f32.mrf.mxu0
        %v5147 = vadd.f32 %v5134, %v5146
        %v5148 = vpop.f32.mrf.mxu0
        %5149 = vdwg.mxu0
        %5150 = vmatpush.bf16.msra.mxu0 %v4814
        %5151 = vmatpush.bf16.msra.mxu0 %v4809
        %5152 = vmatpush.bf16.msra.mxu0 %v4804
        %5153 = vmatpush.bf16.msra.mxu0 %v4799
        %5154 = vmatpush.bf16.msra.mxu0 %v4794
        %5155 = vmatpush.bf16.msra.mxu0 %v4789
        %5156 = vmatpush.bf16.msra.mxu0 %v4784
        %5157 = vmatpush.bf16.msra.mxu0 %v4779
        %5158 = vmatmul.bf16.gmra.mxu0 %v2756
        %v5159 = vpop.f32.mrf.mxu0
        %v5160 = vadd.f32 0.0, %v5159
        %v5161 = vpop.f32.mrf.mxu0
        %5162 = vdwg.mxu0
        %5163 = vmatpush.bf16.msra.mxu0 %v4854
        %5164 = vmatpush.bf16.msra.mxu0 %v4849
        %5165 = vmatpush.bf16.msra.mxu0 %v4844
        %5166 = vmatpush.bf16.msra.mxu0 %v4839
        %5167 = vmatpush.bf16.msra.mxu0 %v4834
        %5168 = vmatpush.bf16.msra.mxu0 %v4829
        %5169 = vmatpush.bf16.msra.mxu0 %v4824
        %5170 = vmatpush.bf16.msra.mxu0 %v4819
        %5171 = vmatmul.bf16.gmra.mxu0 %v2757
        %v5172 = vpop.f32.mrf.mxu0
        %v5173 = vadd.f32 %v5160, %v5172
        %v5174 = vpop.f32.mrf.mxu0
        %5175 = vdwg.mxu0
        %5176 = vmatpush.bf16.msra.mxu0 %v4894
        %5177 = vmatpush.bf16.msra.mxu0 %v4889
        %5178 = vmatpush.bf16.msra.mxu0 %v4884
        %5179 = vmatpush.bf16.msra.mxu0 %v4879
        %5180 = vmatpush.bf16.msra.mxu0 %v4874
        %5181 = vmatpush.bf16.msra.mxu0 %v4869
        %5182 = vmatpush.bf16.msra.mxu0 %v4864
        %5183 = vmatpush.bf16.msra.mxu0 %v4859
        %5184 = vmatmul.bf16.gmra.mxu0 %v2758
        %v5185 = vpop.f32.mrf.mxu0
        %v5186 = vadd.f32 %v5173, %v5185
        %v5187 = vpop.f32.mrf.mxu0
        %5188 = vdwg.mxu0
        %5189 = vmatpush.bf16.msra.mxu0 %v4934
        %5190 = vmatpush.bf16.msra.mxu0 %v4929
        %5191 = vmatpush.bf16.msra.mxu0 %v4924
        %5192 = vmatpush.bf16.msra.mxu0 %v4919
        %5193 = vmatpush.bf16.msra.mxu0 %v4914
        %5194 = vmatpush.bf16.msra.mxu0 %v4909
        %5195 = vmatpush.bf16.msra.mxu0 %v4904
        %5196 = vmatpush.bf16.msra.mxu0 %v4899
        %5197 = vmatmul.bf16.gmra.mxu0 %v2759
        %v5198 = vpop.f32.mrf.mxu0
        %v5199 = vadd.f32 %v5186, %v5198
        %v5200 = vpop.f32.mrf.mxu0
        %5201 = vdwg.mxu0
        %5202 = vmatpush.bf16.msra.mxu0 %v4815
        %5203 = vmatpush.bf16.msra.mxu0 %v4810
        %5204 = vmatpush.bf16.msra.mxu0 %v4805
        %5205 = vmatpush.bf16.msra.mxu0 %v4800
        %5206 = vmatpush.bf16.msra.mxu0 %v4795
        %5207 = vmatpush.bf16.msra.mxu0 %v4790
        %5208 = vmatpush.bf16.msra.mxu0 %v4785
        %5209 = vmatpush.bf16.msra.mxu0 %v4780
        %5210 = vmatmul.bf16.gmra.mxu0 %v2756
        %v5211 = vpop.f32.mrf.mxu0
        %v5212 = vadd.f32 0.0, %v5211
        %v5213 = vpop.f32.mrf.mxu0
        %5214 = vdwg.mxu0
        %5215 = vmatpush.bf16.msra.mxu0 %v4855
        %5216 = vmatpush.bf16.msra.mxu0 %v4850
        %5217 = vmatpush.bf16.msra.mxu0 %v4845
        %5218 = vmatpush.bf16.msra.mxu0 %v4840
        %5219 = vmatpush.bf16.msra.mxu0 %v4835
        %5220 = vmatpush.bf16.msra.mxu0 %v4830
        %5221 = vmatpush.bf16.msra.mxu0 %v4825
        %5222 = vmatpush.bf16.msra.mxu0 %v4820
        %5223 = vmatmul.bf16.gmra.mxu0 %v2757
        %v5224 = vpop.f32.mrf.mxu0
        %v5225 = vadd.f32 %v5212, %v5224
        %v5226 = vpop.f32.mrf.mxu0
        %5227 = vdwg.mxu0
        %5228 = vmatpush.bf16.msra.mxu0 %v4895
        %5229 = vmatpush.bf16.msra.mxu0 %v4890
        %5230 = vmatpush.bf16.msra.mxu0 %v4885
        %5231 = vmatpush.bf16.msra.mxu0 %v4880
        %5232 = vmatpush.bf16.msra.mxu0 %v4875
        %5233 = vmatpush.bf16.msra.mxu0 %v4870
        %5234 = vmatpush.bf16.msra.mxu0 %v4865
        %5235 = vmatpush.bf16.msra.mxu0 %v4860
        %5236 = vmatmul.bf16.gmra.mxu0 %v2758
        %v5237 = vpop.f32.mrf.mxu0
        %v5238 = vadd.f32 %v5225, %v5237
        %v5239 = vpop.f32.mrf.mxu0
        %5240 = vdwg.mxu0
        %5241 = vmatpush.bf16.msra.mxu0 %v4935
        %5242 = vmatpush.bf16.msra.mxu0 %v4930
        %5243 = vmatpush.bf16.msra.mxu0 %v4925
        %5244 = vmatpush.bf16.msra.mxu0 %v4920
        %5245 = vmatpush.bf16.msra.mxu0 %v4915
        %5246 = vmatpush.bf16.msra.mxu0 %v4910
        %5247 = vmatpush.bf16.msra.mxu0 %v4905
        %5248 = vmatpush.bf16.msra.mxu0 %v4900
        %5249 = vmatmul.bf16.gmra.mxu0 %v2759
        %v5250 = vpop.f32.mrf.mxu0
        %v5251 = vadd.f32 %v5238, %v5250
        %v5252 = vpop.f32.mrf.mxu0
        %5253 = vdwg.mxu0
        %5254 = vmatpush.bf16.msra.mxu0 %v4816
        %5255 = vmatpush.bf16.msra.mxu0 %v4811
        %5256 = vmatpush.bf16.msra.mxu0 %v4806
        %5257 = vmatpush.bf16.msra.mxu0 %v4801
        %5258 = vmatpush.bf16.msra.mxu0 %v4796
        %5259 = vmatpush.bf16.msra.mxu0 %v4791
        %5260 = vmatpush.bf16.msra.mxu0 %v4786
        %5261 = vmatpush.bf16.msra.mxu0 %v4781
        %5262 = vmatmul.bf16.gmra.mxu0 %v2756
        %v5263 = vpop.f32.mrf.mxu0
        %v5264 = vadd.f32 0.0, %v5263
        %v5265 = vpop.f32.mrf.mxu0
        %5266 = vdwg.mxu0
        %5267 = vmatpush.bf16.msra.mxu0 %v4856
        %5268 = vmatpush.bf16.msra.mxu0 %v4851
        %5269 = vmatpush.bf16.msra.mxu0 %v4846
        %5270 = vmatpush.bf16.msra.mxu0 %v4841
        %5271 = vmatpush.bf16.msra.mxu0 %v4836
        %5272 = vmatpush.bf16.msra.mxu0 %v4831
        %5273 = vmatpush.bf16.msra.mxu0 %v4826
        %5274 = vmatpush.bf16.msra.mxu0 %v4821
        %5275 = vmatmul.bf16.gmra.mxu0 %v2757
        %v5276 = vpop.f32.mrf.mxu0
        %v5277 = vadd.f32 %v5264, %v5276
        %v5278 = vpop.f32.mrf.mxu0
        %5279 = vdwg.mxu0
        %5280 = vmatpush.bf16.msra.mxu0 %v4896
        %5281 = vmatpush.bf16.msra.mxu0 %v4891
        %5282 = vmatpush.bf16.msra.mxu0 %v4886
        %5283 = vmatpush.bf16.msra.mxu0 %v4881
        %5284 = vmatpush.bf16.msra.mxu0 %v4876
        %5285 = vmatpush.bf16.msra.mxu0 %v4871
        %5286 = vmatpush.bf16.msra.mxu0 %v4866
        %5287 = vmatpush.bf16.msra.mxu0 %v4861
        %5288 = vmatmul.bf16.gmra.mxu0 %v2758
        %v5289 = vpop.f32.mrf.mxu0
        %v5290 = vadd.f32 %v5277, %v5289
        %v5291 = vpop.f32.mrf.mxu0
        %5292 = vdwg.mxu0
        %5293 = vmatpush.bf16.msra.mxu0 %v4936
        %5294 = vmatpush.bf16.msra.mxu0 %v4931
        %5295 = vmatpush.bf16.msra.mxu0 %v4926
        %5296 = vmatpush.bf16.msra.mxu0 %v4921
        %5297 = vmatpush.bf16.msra.mxu0 %v4916
        %5298 = vmatpush.bf16.msra.mxu0 %v4911
        %5299 = vmatpush.bf16.msra.mxu0 %v4906
        %5300 = vmatpush.bf16.msra.mxu0 %v4901
        %5301 = vmatmul.bf16.gmra.mxu0 %v2759
        %v5302 = vpop.f32.mrf.mxu0
        %v5303 = vadd.f32 %v5290, %v5302
        %v5304 = vpop.f32.mrf.mxu0
        %5305 = vdwg.mxu0
        %5306 = vmatpush.bf16.msra.mxu0 %v4817
        %5307 = vmatpush.bf16.msra.mxu0 %v4812
        %5308 = vmatpush.bf16.msra.mxu0 %v4807
        %5309 = vmatpush.bf16.msra.mxu0 %v4802
        %5310 = vmatpush.bf16.msra.mxu0 %v4797
        %5311 = vmatpush.bf16.msra.mxu0 %v4792
        %5312 = vmatpush.bf16.msra.mxu0 %v4787
        %5313 = vmatpush.bf16.msra.mxu0 %v4782
        %5314 = vmatmul.bf16.gmra.mxu0 %v2756
        %v5315 = vpop.f32.mrf.mxu0
        %v5316 = vadd.f32 0.0, %v5315
        %v5317 = vpop.f32.mrf.mxu0
        %5318 = vdwg.mxu0
        %5319 = vmatpush.bf16.msra.mxu0 %v4857
        %5320 = vmatpush.bf16.msra.mxu0 %v4852
        %5321 = vmatpush.bf16.msra.mxu0 %v4847
        %5322 = vmatpush.bf16.msra.mxu0 %v4842
        %5323 = vmatpush.bf16.msra.mxu0 %v4837
        %5324 = vmatpush.bf16.msra.mxu0 %v4832
        %5325 = vmatpush.bf16.msra.mxu0 %v4827
        %5326 = vmatpush.bf16.msra.mxu0 %v4822
        %5327 = vmatmul.bf16.gmra.mxu0 %v2757
        %v5328 = vpop.f32.mrf.mxu0
        %v5329 = vadd.f32 %v5316, %v5328
        %v5330 = vpop.f32.mrf.mxu0
        %5331 = vdwg.mxu0
        %5332 = vmatpush.bf16.msra.mxu0 %v4897
        %5333 = vmatpush.bf16.msra.mxu0 %v4892
        %5334 = vmatpush.bf16.msra.mxu0 %v4887
        %5335 = vmatpush.bf16.msra.mxu0 %v4882
        %5336 = vmatpush.bf16.msra.mxu0 %v4877
        %5337 = vmatpush.bf16.msra.mxu0 %v4872
        %5338 = vmatpush.bf16.msra.mxu0 %v4867
        %5339 = vmatpush.bf16.msra.mxu0 %v4862
        %5340 = vmatmul.bf16.gmra.mxu0 %v2758
        %v5341 = vpop.f32.mrf.mxu0
        %v5342 = vadd.f32 %v5329, %v5341
        %v5343 = vpop.f32.mrf.mxu0
        %5344 = vdwg.mxu0
        %5345 = vmatpush.bf16.msra.mxu0 %v4937
        %5346 = vmatpush.bf16.msra.mxu0 %v4932
        %5347 = vmatpush.bf16.msra.mxu0 %v4927
        %5348 = vmatpush.bf16.msra.mxu0 %v4922
        %5349 = vmatpush.bf16.msra.mxu0 %v4917
        %5350 = vmatpush.bf16.msra.mxu0 %v4912
        %5351 = vmatpush.bf16.msra.mxu0 %v4907
        %5352 = vmatpush.bf16.msra.mxu0 %v4902
        %5353 = vmatmul.bf16.gmra.mxu0 %v2759
        %v5354 = vpop.f32.mrf.mxu0
        %v5355 = vadd.f32 %v5342, %v5354
        %v5356 = vpop.f32.mrf.mxu0
        %5357 = vdwg.mxu0
        %v5358 = vmul.f32 %v5147, 100.0
        %v5359 = vmul.f32 %v5199, 100.0
        %v5360 = vmul.f32 %v5251, 100.0
        %v5361 = vmul.f32 %v5303, 100.0
        %v5362 = vmul.f32 %v5355, 100.0
        %v5363 = vld [vmem:[#allocation2] sm:$0xff]
        %v5364 = vld [vmem:[#allocation2 + $0x8] sm:$0xff]
        %v5365 = vmax.f32 %v4064, %v4066
        %v5366 = vmax.f32 %v4065, %v4067
        %v5367 = vmax.f32 %v5365, %v4068
        %v5368 = vmax.f32 %v5367, %v5366
        %5369 = vmax.xlane.f32.xlu0 %v5368
        %v5370 = vpop.xlane.xlu0 %5369
        %v5371 = vmax.f32 %v4069, %v4071
        %v5372 = vmax.f32 %v4070, %v4072
        %v5373 = vmax.f32 %v5371, %v4073
        %v5374 = vmax.f32 %v5373, %v5372
        %5375 = vmax.xlane.f32.xlu0 %v5374
        %v5376 = vpop.xlane.xlu0 %5375
        %v5377 = vmax.f32 %v5363, %v5370
        %v5378 = vmax.f32 %v5364, %v5376
        %v5379 = vsub.f32 %v5363, %v5377
        %v5380 = vsub.f32 %v5364, %v5378
        %v5381 = vmul.f32 %v5379, 1.442695
        %v5382 = vpow.pop %v5381
        %v5383 = vmul.f32 %v5380, 1.442695
        %v5384 = vpow.pop %v5383
        %5386 = vset.pattern.permute.xlu0 0
        %5387 = vperm.xlu0 %5386, %v5377
        %v5388 = vpop.permute.xlu0 %5387
        %5391 = vset.pattern.permute.xlu0 0
        %5392 = vperm.xlu0 %5391, %v5378
        %v5393 = vpop.permute.xlu0 %5392
        %v5395 = vsub.f32 %v4064, %v5388
        %v5396 = vsub.f32 %v4065, %v5388
        %v5397 = vsub.f32 %v4066, %v5388
        %v5398 = vsub.f32 %v4067, %v5388
        %v5399 = vsub.f32 %v4068, %v5388
        %v5400 = vsub.f32 %v4069, %v5393
        %v5401 = vsub.f32 %v4070, %v5393
        %v5402 = vsub.f32 %v4071, %v5393
        %v5403 = vsub.f32 %v4072, %v5393
        %v5404 = vsub.f32 %v4073, %v5393
        %v5405 = vmul.f32 %v5395, 1.442695
        %v5406 = vpow.pop %v5405
        %v5407 = vmul.f32 %v5396, 1.442695
        %v5408 = vpow.pop %v5407
        %v5409 = vmul.f32 %v5397, 1.442695
        %v5410 = vpow.pop %v5409
        %v5411 = vmul.f32 %v5398, 1.442695
        %v5412 = vpow.pop %v5411
        %v5413 = vmul.f32 %v5399, 1.442695
        %v5414 = vpow.pop %v5413
        %v5415 = vmul.f32 %v5400, 1.442695
        %v5416 = vpow.pop %v5415
        %v5417 = vmul.f32 %v5401, 1.442695
        %v5418 = vpow.pop %v5417
        %v5419 = vmul.f32 %v5402, 1.442695
        %v5420 = vpow.pop %v5419
        %v5421 = vmul.f32 %v5403, 1.442695
        %v5422 = vpow.pop %v5421
        %v5423 = vmul.f32 %v5404, 1.442695
        %v5424 = vpow.pop %v5423
        %v5425 = vld [vmem:[#allocation3] sm:$0xff]
        %v5426 = vld [vmem:[#allocation3 + $0x8] sm:$0xff]
        %v5427 = vmul.f32 %v5425, %v5382
        %v5428 = vmul.f32 %v5426, %v5384
        %v5429 = vadd.f32 %v5406, %v5408
        %v5430 = vadd.f32 %v5429, %v5410
        %v5431 = vadd.f32 %v5430, %v5412
        %v5432 = vadd.f32 %v5431, %v5414
        %5433 = vadd.xlane.f32.xlu0 %v5432
        %v5434 = vpop.xlane.xlu0 %5433
        %v5435 = vadd.f32 %v5416, %v5418
        %v5436 = vadd.f32 %v5435, %v5420
        %v5437 = vadd.f32 %v5436, %v5422
        %v5438 = vadd.f32 %v5437, %v5424
        %5439 = vadd.xlane.f32.xlu0 %v5438
        %v5440 = vpop.xlane.xlu0 %5439
        %v5441 = vadd.f32 %v5427, %v5434
        %v5442 = vadd.f32 %v5428, %v5440
        %vm5443 = vcmask 7168
        %5444 = vst.msk [vmem:[#allocation3] sm:$0xff] %vm5443, %v5441
        %5445 = vst.msk [vmem:[#allocation3 + $0x8] sm:$0xff] %vm5443, %v5442
        %v5446 = vld [vmem:[#allocation4] sm:$0xff]
        %v5447 = vmul.f32 %v5446, %v5384
        %v5448 = vmul.f32 %v5416, %v4064
        %v5449 = vmul.f32 %v5418, %v4065
        %v5450 = vmul.f32 %v5420, %v4066
        %v5451 = vmul.f32 %v5422, %v4067
        %v5452 = vmul.f32 %v5424, %v4068
        %v5453 = vadd.f32 %v5448, %v5449
        %v5454 = vadd.f32 %v5453, %v5450
        %v5455 = vadd.f32 %v5454, %v5451
        %v5456 = vadd.f32 %v5455, %v5452
        %5457 = vadd.xlane.f32.xlu0 %v5456
        %v5458 = vpop.xlane.xlu0 %5457
        %v5459 = vadd.f32 %v5447, %v5458
        %5460 = vst.msk [vmem:[#allocation4] sm:$0xff] %vm5443, %v5459
        %5461 = vst.msk [vmem:[#allocation2] sm:$0xff] %vm5443, %v5377
        %5462 = vst.msk [vmem:[#allocation2 + $0x8] sm:$0xff] %vm5443, %v5378
        %v5463 = vld [vmem:[#allocation5] sm:$0xff]
        %v5464 = vmax.f32 %v5358, %v5362
        %v5465 = vmax.f32 %v5464, %v5359
        %v5466 = vmax.f32 %v5360, %v5361
        %v5467 = vmax.f32 %v5465, %v5466
        %5468 = vmax.xlane.f32.xlu0 %v5467
        %v5469 = vpop.xlane.xlu0 %5468
        %v5470 = vmax.f32 %v5463, %v5469
        %v5471 = vsub.f32 %v5463, %v5470
        %v5472 = vmul.f32 %v5471, 1.442695
        %v5473 = vpow.pop %v5472
        %5475 = vset.pattern.permute.xlu0 0
        %5476 = vperm.xlu0 %5475, %v5470
        %v5477 = vpop.permute.xlu0 %5476
        %v5479 = vsub.f32 %v5358, %v5477
        %v5480 = vsub.f32 %v5359, %v5477
        %v5481 = vsub.f32 %v5360, %v5477
        %v5482 = vsub.f32 %v5361, %v5477
        %v5483 = vsub.f32 %v5362, %v5477
        %v5484 = vmul.f32 %v5479, 1.442695
        %v5485 = vpow.pop %v5484
        %v5486 = vmul.f32 %v5480, 1.442695
        %v5487 = vpow.pop %v5486
        %v5488 = vmul.f32 %v5481, 1.442695
        %v5489 = vpow.pop %v5488
        %v5490 = vmul.f32 %v5482, 1.442695
        %v5491 = vpow.pop %v5490
        %v5492 = vmul.f32 %v5483, 1.442695
        %v5493 = vpow.pop %v5492
        %v5494 = vld [vmem:[#allocation6] sm:$0xff]
        %v5495 = vmul.f32 %v5494, %v5473
        %v5496 = vadd.f32 %v5485, %v5487
        %v5497 = vadd.f32 %v5496, %v5489
        %v5498 = vadd.f32 %v5497, %v5491
        %v5499 = vadd.f32 %v5498, %v5493
        %5500 = vadd.xlane.f32.xlu0 %v5499
        %v5501 = vpop.xlane.xlu0 %5500
        %v5502 = vadd.f32 %v5495, %v5501
        %5503 = vst.msk [vmem:[#allocation6] sm:$0xff] %vm5443, %v5502
        %v5504 = vld [vmem:[#allocation7] sm:$0xff]
        %v5505 = vmul.f32 %v5504, %v5473
        %v5506 = vmul.f32 %v5485, %v5358
        %v5507 = vmul.f32 %v5487, %v5359
        %v5508 = vmul.f32 %v5489, %v5360
        %v5509 = vmul.f32 %v5491, %v5361
        %v5510 = vmul.f32 %v5493, %v5362
        %v5511 = vadd.f32 %v5506, %v5507
        %v5512 = vadd.f32 %v5511, %v5508
        %v5513 = vadd.f32 %v5512, %v5509
        %v5514 = vadd.f32 %v5513, %v5510
        %5515 = vadd.xlane.f32.xlu0 %v5514
        %v5516 = vpop.xlane.xlu0 %5515
        %v5517 = vadd.f32 %v5505, %v5516
        %5518 = vst.msk [vmem:[#allocation7] sm:$0xff] %vm5443, %v5517
        %5519 = vst.msk [vmem:[#allocation5] sm:$0xff] %vm5443, %v5470
        %p5520 = scmp.eq.s32.totalorder %s33, 2
        // Predicated region
        $region121: #{tpu_custom_call.1} parent=67 // pred_check
          %p5521 = pneg %p5520
        $region122: #{tpu_custom_call.1} parent=67 // pred_check_branch
          %5523 = sbr.rel (%p5521) target = $region124
        $region123: #{tpu_custom_call.1} parent=67 // pred_region
          %v5524 = vld [vmem:[#allocation8] sm:$0xff]
          %v5525 = vld [vmem:[#allocation2] sm:$0xff]
          %v5526 = vld [vmem:[#allocation3] sm:$0xff]
          %v5527 = vlog2.pop %v5526
          %v5528 = vmul.f32 %v5527, 0.6931472
          %v5529 = vadd.f32 %v5525, %v5528
          %v5530 = vld [vmem:[#allocation5] sm:$0xff]
          %v5531 = vld [vmem:[#allocation6] sm:$0xff]
          %v5532 = vlog2.pop %v5531
          %v5533 = vmul.f32 %v5532, 0.6931472
          %v5534 = vadd.f32 %v5530, %v5533
          %v5535 = vld [vmem:[#allocation3 + $0x8] sm:$0xff]
          %v5536 = vrcp.pop %v5535
          %v5537 = vrcp.pop %v5531
          %v5538 = vadd.f32 %v5524, %v5529
          %v5539 = vadd.f32 %v5538, %v5534
          %v5540 = vld [vmem:[#allocation4] sm:$0xff]
          %v5541 = vmul.f32 %v5540, %v5536
          %v5542 = vld [vmem:[#allocation7] sm:$0xff]
          %v5543 = vmul.f32 %v5542, %v5537
          %v5544 = vadd.f32 %v5541, %v5543
          %v5545 = vmul.f32 %v5544, 0.4
          %v5546 = vsub.f32 %v5539, %v5545
          %v5547 = vsel %vm5443, %v5546, 0.0
          %5548 = vadd.xlane.f32.xlu0 %v5547
          %v5549 = vpop.xlane.xlu0 %5548
          %v5550 = vrot.slane %v5549, 4
          %v5551 = vadd.f32 %v5549, %v5550
          %v5552 = vrot.slane %v5551, 2
          %v5553 = vadd.f32 %v5551, %v5552
          %v5554 = vrot.slane %v5553, 1
          %v5555 = vadd.f32 %v5553, %v5554
          %s5556 = vtos %v5555
          %s5557 = smul.f32 %s5556, 0.125
          %s5558 = scalar_lea.smem [#allocation30], 0
          %5559 = sst [smem:[%s5558]] %s5557
        $region124: #{tpu_custom_call.1} parent=67 // pred_fallthru
          _
        // Predicated region
        $region125: #{tpu_custom_call.1} parent=67 // pred_check
          %p5560 = pneg %p308
        $region126: #{tpu_custom_call.1} parent=67 // pred_check_branch
          %5562 = sbr.rel (%p5560) target = $region128
        $region127: #{tpu_custom_call.1} parent=67 // pred_region
          %5564 = vsyncadd [#allocation11], 0
          %s5565 = sshll.u32 [#allocation29], 4
          %s5566 = int_to_ptr.vmem [resolvable:$true] %s5565
          %s5567 = sshll.u32 %s12, 4
          %s5568 = int_to_ptr.hbm [resolvable:$true] %s5567
          %5573 = dma.vmem_to_hbm [thread:$0]  %s5566, 1024, %s5568, [#allocation11], 512, 512, 32
        $region128: #{tpu_custom_call.1} parent=67 // pred_fallthru
          _
        // Predicated region
        $region129: #{tpu_custom_call.1} parent=67 // pred_check
          %p5574 = pneg %p329
        $region130: #{tpu_custom_call.1} parent=67 // pred_check_branch
          %5576 = sbr.rel (%p5574) target = $region132
        $region131: #{tpu_custom_call.1} parent=67 // pred_region
          %5578 = vsyncadd [#allocation12], 0
          %s5580 = sshll.u32 %s13, 4
          %s5581 = int_to_ptr.hbm [resolvable:$true] %s5580
          %5583 = dma.smem_to_hbm [#allocation30], 16, %s5581, [#allocation12]
        $region132: #{tpu_custom_call.1} parent=67 // pred_fallthru
          _
        // Predicated region
        $region133: #{tpu_custom_call.1} parent=67 // pred_check
          %p5584 = pneg %p308
        $region134: #{tpu_custom_call.1} parent=67 // pred_check_branch
          %5586 = sbr.rel (%p5584) target = $region136
        $region135: #{tpu_custom_call.1} parent=67 // pred_region
          %5588 = dma.done [#allocation11], 1024
        $region136: #{tpu_custom_call.1} parent=67 // pred_fallthru
          _
        // Predicated region
        $region137: #{tpu_custom_call.1} parent=67 // pred_check
          %p5589 = pneg %p329
        $region138: #{tpu_custom_call.1} parent=67 // pred_check_branch
          %5591 = sbr.rel (%p5589) target = $region140
        $region139: #{tpu_custom_call.1} parent=67 // pred_region
          %5593 = dma.done [#allocation12], 16
        $region140: #{tpu_custom_call.1} parent=67 // pred_fallthru
          _
        %5594 = sfence
      $region68: #{tpu_custom_call.1} parent=5 // pred_fallthru
        _
      %p5595 = scmp.le.s32.totalorder 2, %s28
      // Predicated region
      $region141: #{tpu_custom_call.1} parent=5 // pred_check
        %p5596 = pneg %p5595
      $region142: #{tpu_custom_call.1} parent=5 // pred_check_branch
        %5598 = sbr.rel (%p5596) target = $region144
      $region143: #{tpu_custom_call.1} parent=5 // pred_region
        %s5599 = ssub.s32 %s28, 2
      $region144: #{tpu_custom_call.1} parent=5 // pred_fallthru
        _
    $region6: #{tpu_custom_call.1} parent=1 // loop_footer
      %s32 = sadd.s32 1, %s28
    $region7: #{tpu_custom_call.1} parent=1 // loop_footer_branch
      %27 = sbr.rel target = $region3
    $region8: #{tpu_custom_call.1} parent=1 // loop_exit
      _
    %5600 = vsyncpa [#allocation10], 1
    %s5601 = scalar_lea.sflag [#allocation10], 1
    %5602 = vsyncpa %s5601, 1
    %5603 = vsyncpa [#allocation14], 1
    %5604 = vsyncpa [#allocation17], 1
    %5605 = vsyncpa [#allocation20], 1
    %5606 = vsyncpa [#allocation23], 1
    %5607 = vsyncpa [#allocation26], 1
    %5608 = vsyncpa [#allocation11], 1
    %s5609 = scalar_lea.sflag [#allocation11], 1
    %5610 = vsyncpa %s5609, 1
    %5611 = vsyncpa [#allocation12], 1
    %s5612 = scalar_lea.sflag [#allocation12], 1
    %5613 = vsyncpa %s5612, 1

</llo_original>
